<compile_context>
chip_gen: v6e
topology: v6e:2x2x1
jax: 0.10.0
libtpu: 0.0.40
codegen_flags: <defaults>
</compile_context>

<pallas_src>
import functools

import jax
import jax.numpy as jnp
from jax.experimental import pallas as pl
from jax.experimental.pallas import tpu as pltpu


def _cobi_kernel(x_ref, y_ref, o_ref, cxsp_ref, *, weight_sp, inv_bw, H, W, HW):
    # x_ref   : (1, C, TQ)   L2-normalized x features (queries on lanes)
    # y_ref   : (1, C, HWP)  L2-normalized y features (full padded key extent)
    # o_ref   : (1, N, TQ)   per-query max of combined CX (resident across n)
    # cxsp_ref: (HWP, TQ)    VMEM cache of the weight_sp-scaled spatial CX tile
    q = pl.program_id(0)
    n = pl.program_id(1)
    TQ = x_ref.shape[2]
    HWP = y_ref.shape[2]
    padded = HWP != HW  # compile-time constant

    key_ids = jax.lax.broadcasted_iota(jnp.int32, (HWP, 1), 0)
    if padded:
        key_mask = key_ids < HW                                     # (HWP, 1)

    # ---- spatial CX: batch-invariant, compute once per query block (n == 0) ----
    @pl.when(n == 0)
    def _():
        posq = (q * TQ + jax.lax.broadcasted_iota(jnp.int32, (1, TQ), 1)
                ).astype(jnp.float32)                               # (1, TQ)
        posk = key_ids.astype(jnp.float32)                          # (HWP, 1)
        # floor((p + 0.5) / W) == p // W exactly for realistic H*W.
        qrow = jnp.floor((posq + 0.5) * (1.0 / W))
        qcol = posq - qrow * W
        krow = jnp.floor((posk + 0.5) * (1.0 / W))
        kcol = posk - krow * W
        dr = (krow - qrow) * (1.0 / (H + 1))                        # (HWP, TQ)
        dc = (kcol - qcol) * (1.0 / (W + 1))
        d = dr * dr + dc * dc                                       # >= 0
        # d_min over keys is exactly 0 (self key) -> inv_min = 1/(0 + 1e-5).
        w = jnp.exp((1.0 - d * 1e5) * inv_bw)
        s = jnp.sum(w, axis=0, keepdims=True)                       # (1, TQ)
        if padded:
            w = jnp.where(key_mask, w, 0.0)
            s = jnp.sum(w, axis=0, keepdims=True) + 1e-30           # padded cols
        inv_sum = pl.reciprocal(s, approx=True)
        # Pre-scaled by weight_sp so the combine below is a single add.
        cxsp_ref[...] = w * (inv_sum * weight_sp)

    # ---- feature CX: cosine similarity on the MXU, fused CX normalisation ----
    # TODO(synk): verify via pl.lower_as_mlir that the transposed-lhs contraction
    # does not insert a per-step vxpose when C is large (VGG features).
    cos = jax.lax.dot_general(
        y_ref[0], x_ref[0], (((0,), (0,)), ((), ())),
        preferred_element_type=jnp.float32,
        precision=jax.lax.Precision.HIGHEST)                        # (HWP, TQ)
    if padded:
        cos_v = jnp.where(key_mask, cos, -3.0)   # exclude padded keys from max
    else:
        cos_v = cos
    cos_max = jnp.max(cos_v, axis=0, keepdims=True)                 # (1, TQ)
    # d = 1 - cos, d_min = 1 - cos_max; exact reciprocal (error amplified in exp).
    inv_min = 1.0 / ((1.0 - cos_max) + 1e-5)                        # (1, TQ)
    b_col = inv_bw * inv_min
    a_col = inv_bw - b_col        # == inv_bw * (1 - inv_min)
    # TODO(synk): on v6e/v7x the exp could run in bf16 (~2x EUP) after accuracy
    # re-validation; kept f32 here for exactness across generations (incl. v5e).
    w = jnp.exp(a_col + b_col * cos)                                # (HWP, TQ)
    if padded:
        w = jnp.where(key_mask, w, 0.0)
    inv_sum = pl.reciprocal(jnp.sum(w, axis=0, keepdims=True), approx=True)
    cx_comb = w * (inv_sum * (1.0 - weight_sp)) + cxsp_ref[...]

    # Lane-dense store of the per-query max into this batch's row of the
    # resident (1, N, TQ) output block.
    o_ref[0, pl.ds(n, 1), :] = jnp.max(cx_comb, axis=0, keepdims=True)


def contextual_bilateral_loss(x, y, weight_sp=0.1, band_width=1.0):
    """x, y: (N, C, H, W) float32 (NCHW, same as PyTorch). Returns scalar loss."""
    assert x.shape == y.shape, "input tensors must have the same size."
    N, C, H, W = x.shape
    HW = H * W
    xv = x.reshape(N, C, HW).astype(jnp.float32)
    yv = y.reshape(N, C, HW).astype(jnp.float32)

    # --- cosine-distance preprocessing (glue, matches compute_cosine_distance) ---
    y_mu = jnp.mean(yv, axis=(0, 2), keepdims=True)          # channel-wise mean of y
    xc = xv - y_mu
    yc = yv - y_mu
    xn = xc / jnp.maximum(jnp.sqrt(jnp.sum(xc * xc, axis=1, keepdims=True)), 1e-12)
    yn = yc / jnp.maximum(jnp.sqrt(jnp.sum(yc * yc, axis=1, keepdims=True)), 1e-12)

    # Pad the spatial extent to a lane-dense multiple of 128. Padded keys are
    # masked inside the kernel; padded queries are sliced out of the final mean.
    HWP = ((HW + 127) // 128) * 128
    if HWP != HW:
        pad = HWP - HW
        xn = jnp.pad(xn, ((0, 0), (0, 0), (0, pad)))
        yn = jnp.pad(yn, ((0, 0), (0, 0), (0, pad)))

    # Per-generation VMEM budget (v7x has 64 MiB/TC; v5e/v6e 128 MiB).
    try:
        vmem_cap = int(getattr(pltpu.get_tpu_info(), "vmem_capacity_bytes",
                               64 << 20))
    except Exception:  # pragma: no cover - conservative fallback
        vmem_cap = 64 << 20
    budget = int(vmem_cap * 0.6)

    # Query-block size: prefer 256 only when it keeps >= 2 parallel blocks
    # (megacore) and the ~5 live (HWP, TQ) f32 tiles fit the budget.
    if (HWP % 256 == 0) and (HWP // 256 >= 2) and (5 * HWP * 256 * 4 <= budget):
        TQ = 256
    else:
        TQ = 128
    nq = HWP // TQ
    # TODO(synk): for very large HW even TQ=128 overflows the budget; a
    # flash-style key-tiled two-pass kernel (running max(cos) then exp pass)
    # would be required there.

    # Explicit VMEM limit: double-buffered x/y/out blocks + spatial cache
    # + headroom for the live (HWP, TQ) temporaries. Clamped below physical VMEM.
    est = (2 * C * HWP + 2 * C * TQ + 2 * N * TQ + 6 * HWP * TQ) * 4 + (2 << 20)
    vmem_limit = int(min(max(est, 32 << 20), int(vmem_cap * 0.85)))

    kernel = functools.partial(
        _cobi_kernel, weight_sp=float(weight_sp),
        inv_bw=float(1.0 / band_width), H=H, W=W, HW=HW)

    kmax = pl.pallas_call(
        kernel,
        out_shape=jax.ShapeDtypeStruct((nq, N, TQ), jnp.float32),
        grid_spec=pltpu.PrefetchScalarGridSpec(
            num_scalar_prefetch=0,
            grid=(nq, N),                      # batch innermost -> spatial-CX reuse
            in_specs=[
                pl.BlockSpec((1, C, TQ), lambda q, n: (n, 0, q)),
                pl.BlockSpec((1, C, HWP), lambda q, n: (n, 0, 0)),
            ],
            out_specs=pl.BlockSpec((1, N, TQ), lambda q, n: (q, 0, 0)),
            scratch_shapes=[pltpu.VMEM((HWP, TQ), jnp.float32)],
        ),
        compiler_params=pltpu.CompilerParams(
            dimension_semantics=("parallel", "arbitrary"),
            vmem_limit_bytes=vmem_limit,
        ),
    )(xn, yn)

    # Tiny final reductions (glue): drop padded queries, mean over query rows,
    # -log, mean over batch.
    kmax = jnp.transpose(kmax, (1, 0, 2)).reshape(N, HWP)[:, :HW]
    cx_img = jnp.mean(kmax, axis=1)
    return jnp.mean(-jnp.log(cx_img + 1e-5))


class ContextualBilateralLoss:
    """JAX/Pallas equivalent of the PyTorch ContextualBilateralLoss module."""

    def __init__(self, weight_sp: float = 0.1, band_width: float = 0.5,
                 loss_type: str = "cosine", use_vgg: bool = False,
                 vgg_layer: str = "relu3_4"):
        assert band_width > 0, "band_width parameter must be positive."
        assert loss_type == "cosine", "only the 'cosine' path is exercised by forward."
        # TODO(synk): VGG19 feature extraction (use_vgg=True) not ported; only the
        # raw-feature path of the PyTorch forward is implemented.
        assert not use_vgg, "use_vgg=True path not implemented"
        self.band_width = band_width

    def __call__(self, x, y):
        # Mirror the PyTorch forward exactly: band_width is passed positionally
        # into the functional's weight_sp argument; band_width stays at 1.0.
        return contextual_bilateral_loss(x, y, weight_sp=self.band_width, band_width=1.0)


def _reference(x, y, weight_sp, band_width):
    """Pure-JAX reference of F.contextual_bilateral_loss (cosine)."""
    N, C, H, W = x.shape
    HW = H * W
    xv = x.reshape(N, C, HW)
    yv = y.reshape(N, C, HW)
    y_mu = jnp.mean(yv, axis=(0, 2), keepdims=True)
    xc, yc = xv - y_mu, yv - y_mu
    xn = xc / jnp.maximum(jnp.linalg.norm(xc, axis=1, keepdims=True), 1e-12)
    yn = yc / jnp.maximum(jnp.linalg.norm(yc, axis=1, keepdims=True), 1e-12)
    d_feat = 1.0 - jnp.einsum("nci,ncj->nij", xn, yn,
                              precision=jax.lax.Precision.HIGHEST)

    rows = jnp.arange(H, dtype=jnp.float32) / (H + 1)
    cols = jnp.arange(W, dtype=jnp.float32) / (W + 1)
    rr, cc = jnp.meshgrid(rows, cols, indexing="ij")
    g = jnp.stack([rr.reshape(-1), cc.reshape(-1)], axis=0)  # (2, HW)
    diff = g[:, :, None] - g[:, None, :]
    d_sp = jnp.maximum(jnp.sum(diff * diff, axis=0), 0.0)
    d_sp = jnp.broadcast_to(d_sp[None], (N, HW, HW))

    def cx(d):
        d_min = jnp.min(d, axis=2, keepdims=True)
        dt = d / (d_min + 1e-5)
        w = jnp.exp((1.0 - dt) / band_width)
        return w / jnp.sum(w, axis=2, keepdims=True)

    comb = (1.0 - weight_sp) * cx(d_feat) + weight_sp * cx(d_sp)
    kmax = jnp.max(comb, axis=2)
    cx_img = jnp.mean(kmax, axis=1)
    return jnp.mean(-jnp.log(cx_img + 1e-5))


if __name__ == "__main__":
    key = jax.random.PRNGKey(0)
    kx, ky, kx2, ky2 = jax.random.split(key, 4)

    # Primary shape (module forward semantics; HW multiple of 128, nq=2).
    N, C, H, W = 2, 4, 16, 16
    x = jax.random.uniform(kx, (N, C, H, W), dtype=jnp.float32)
    y = jax.random.uniform(ky, (N, C, H, W), dtype=jnp.float32)

    loss_mod = ContextualBilateralLoss(weight_sp=0.1, band_width=0.5)
    loss = jax.block_until_ready(loss_mod(x, y))
    ref = jax.block_until_ready(_reference(x, y, weight_sp=0.5, band_width=1.0))
    assert jnp.isfinite(loss), "loss is not finite"
    assert jnp.allclose(loss, ref, rtol=5e-3, atol=1e-3), (loss, ref)

    # Secondary shape exercising the HW-not-multiple-of-128 padding path.
    x2 = jax.random.uniform(kx2, (1, 3, 12, 10), dtype=jnp.float32)
    y2 = jax.random.uniform(ky2, (1, 3, 12, 10), dtype=jnp.float32)
    loss2 = jax.block_until_ready(
        contextual_bilateral_loss(x2, y2, weight_sp=0.5, band_width=1.0))
    ref2 = jax.block_until_ready(_reference(x2, y2, weight_sp=0.5, band_width=1.0))
    assert jnp.isfinite(loss2), "padded-path loss is not finite"
    assert jnp.allclose(loss2, ref2, rtol=5e-3, atol=1e-3), (loss2, ref2)

    print("KERNEL_OK")
</pallas_src>

<mosaic_0001>
module attributes {stable_mosaic.version = 11 : i64} {
  func.func @_cobi_kernel(%arg0: i32, %arg1: i32, %arg2: memref<1x4x128xf32, #tpu.memory_space<vmem>>, %arg3: memref<1x4x256xf32, #tpu.memory_space<vmem>>, %arg4: memref<1x2x128xf32, #tpu.memory_space<vmem>>, %arg5: memref<256x128xf32, #tpu.memory_space<vmem>>) attributes {dimension_semantics = [#tpu.dimension_semantics<parallel>, #tpu.dimension_semantics<arbitrary>], iteration_bounds = array<i64: 2, 2>, scalar_prefetch = 0 : i64, scratch_operands = 1 : i64, tpu.core_type = #tpu.core_type<tc>, window_params = [{transform_indices = @transform_0, window_bounds = array<i64: 1, 4, 128>}, {transform_indices = @transform_1, window_bounds = array<i64: 1, 4, 256>}, {transform_indices = @transform_2, window_bounds = array<i64: 1, 2, 128>}]} {
    %0 = tpu.iota {dimensions = array<i32: 0>} : vector<256x1xi32>
    %c0_i32 = arith.constant 0 : i32
    %1 = arith.cmpi eq, %arg1, %c0_i32 : i32
    %2 = arith.extui %1 : i1 to i32
    %c0_i32_0 = arith.constant 0 : i32
    %3 = arith.cmpi ne, %2, %c0_i32_0 : i32
    scf.if %3 {
      %c128_i32 = arith.constant 128 : i32
      %41 = arith.muli %arg0, %c128_i32 : i32
      %42 = tpu.iota {dimensions = array<i32: 1>} : vector<1x128xi32>
      %43 = vector.broadcast %41 : i32 to vector<1x128xi32>
      %44 = arith.addi %43, %42 : vector<1x128xi32>
      %45 = arith.sitofp %44 : vector<1x128xi32> to vector<1x128xf32>
      %46 = arith.sitofp %0 : vector<256x1xi32> to vector<256x1xf32>
      %cst_19 = arith.constant 5.000000e-01 : f32
      %47 = vector.broadcast %cst_19 : f32 to vector<1x128xf32>
      %48 = arith.addf %45, %47 : vector<1x128xf32>
      %cst_20 = arith.constant 6.250000e-02 : f32
      %49 = vector.broadcast %cst_20 : f32 to vector<1x128xf32>
      %50 = arith.mulf %48, %49 : vector<1x128xf32>
      %51 = math.floor %50 : vector<1x128xf32>
      %cst_21 = arith.constant 1.600000e+01 : f32
      %52 = vector.broadcast %cst_21 : f32 to vector<1x128xf32>
      %53 = arith.mulf %51, %52 : vector<1x128xf32>
      %54 = arith.subf %45, %53 : vector<1x128xf32>
      %cst_22 = arith.constant 5.000000e-01 : f32
      %55 = vector.broadcast %cst_22 : f32 to vector<256x1xf32>
      %56 = arith.addf %46, %55 : vector<256x1xf32>
      %cst_23 = arith.constant 6.250000e-02 : f32
      %57 = vector.broadcast %cst_23 : f32 to vector<256x1xf32>
      %58 = arith.mulf %56, %57 : vector<256x1xf32>
      %59 = math.floor %58 : vector<256x1xf32>
      %cst_24 = arith.constant 1.600000e+01 : f32
      %60 = vector.broadcast %cst_24 : f32 to vector<256x1xf32>
      %61 = arith.mulf %59, %60 : vector<256x1xf32>
      %62 = arith.subf %46, %61 : vector<256x1xf32>
      %63 = vector.broadcast %59 : vector<256x1xf32> to vector<256x128xf32>
      %64 = vector.broadcast %51 : vector<1x128xf32> to vector<256x128xf32>
      %65 = arith.subf %63, %64 : vector<256x128xf32>
      %cst_25 = arith.constant 0.0588235296 : f32
      %66 = vector.broadcast %cst_25 : f32 to vector<256x128xf32>
      %67 = arith.mulf %65, %66 : vector<256x128xf32>
      %68 = vector.broadcast %62 : vector<256x1xf32> to vector<256x128xf32>
      %69 = vector.broadcast %54 : vector<1x128xf32> to vector<256x128xf32>
      %70 = arith.subf %68, %69 : vector<256x128xf32>
      %cst_26 = arith.constant 0.0588235296 : f32
      %71 = vector.broadcast %cst_26 : f32 to vector<256x128xf32>
      %72 = arith.mulf %70, %71 : vector<256x128xf32>
      %73 = arith.mulf %67, %67 : vector<256x128xf32>
      %74 = arith.mulf %72, %72 : vector<256x128xf32>
      %75 = arith.addf %73, %74 : vector<256x128xf32>
      %cst_27 = arith.constant 1.000000e+05 : f32
      %76 = vector.broadcast %cst_27 : f32 to vector<256x128xf32>
      %77 = arith.mulf %75, %76 : vector<256x128xf32>
      %cst_28 = arith.constant 1.000000e+00 : f32
      %78 = vector.broadcast %cst_28 : f32 to vector<256x128xf32>
      %79 = arith.subf %78, %77 : vector<256x128xf32>
      %cst_29 = arith.constant 1.000000e+00 : f32
      %80 = vector.broadcast %cst_29 : f32 to vector<256x128xf32>
      %81 = arith.mulf %79, %80 : vector<256x128xf32>
      %82 = math.exp %81 : vector<256x128xf32>
      %cst_30 = arith.constant dense<0.000000e+00> : vector<128xf32>
      %83 = vector.multi_reduction <add>, %82, %cst_30 [0] : vector<256x128xf32> to vector<128xf32>
      %84 = vector.shape_cast %83 : vector<128xf32> to vector<1x128xf32>
      %85 = tpu.reciprocal %84 {approx = true} : vector<1x128xf32> -> vector<1x128xf32>
      %cst_31 = arith.constant 5.000000e-01 : f32
      %86 = vector.broadcast %cst_31 : f32 to vector<1x128xf32>
      %87 = arith.mulf %85, %86 : vector<1x128xf32>
      %88 = vector.broadcast %87 : vector<1x128xf32> to vector<256x128xf32>
      %89 = arith.mulf %82, %88 : vector<256x128xf32>
      %c0_32 = arith.constant 0 : index
      %c0_33 = arith.constant 0 : index
      %90 = vector.load %arg5[%c0_32, %c0_33] : memref<256x128xf32, #tpu.memory_space<vmem>>, vector<256x128xf32>
      tpu.vector_store %arg5[%c0_32, %c0_33], %89 {strides = array<i32>} : memref<256x128xf32, #tpu.memory_space<vmem>>, vector<256x128xf32>,
    } else {
    }
    %c0 = arith.constant 0 : index
    %c0_1 = arith.constant 0 : index
    %c0_2 = arith.constant 0 : index
    %4 = vector.load %arg3[%c0, %c0_1, %c0_2] : memref<1x4x256xf32, #tpu.memory_space<vmem>>, vector<1x4x256xf32>
    %5 = vector.shape_cast %4 : vector<1x4x256xf32> to vector<4x256xf32>
    %c0_3 = arith.constant 0 : index
    %c0_4 = arith.constant 0 : index
    %c0_5 = arith.constant 0 : index
    %6 = vector.load %arg2[%c0_3, %c0_4, %c0_5] : memref<1x4x128xf32, #tpu.memory_space<vmem>>, vector<1x4x128xf32>
    %7 = vector.shape_cast %6 : vector<1x4x128xf32> to vector<4x128xf32>
    %cst = arith.constant dense<0.000000e+00> : vector<256x128xf32>
    %8 = tpu.matmul %5, %7, %cst {dimension_numbers = #tpu.dot_dimension_numbers<[0], [0], [1], [1], [0, 1, 1, 1], [], []>, precision = #tpu.contract_precision<fp32>} : vector<4x256xf32>, vector<4x128xf32>, vector<256x128xf32> -> vector<256x128xf32>
    %cst_6 = arith.constant dense<0xFF800000> : vector<128xf32>
    %9 = vector.multi_reduction <maximumf>, %8, %cst_6 [0] : vector<256x128xf32> to vector<128xf32>
    %10 = vector.shape_cast %9 : vector<128xf32> to vector<1x128xf32>
    %cst_7 = arith.constant 1.000000e+00 : f32
    %11 = vector.broadcast %cst_7 : f32 to vector<1x128xf32>
    %12 = arith.subf %11, %10 : vector<1x128xf32>
    %cst_8 = arith.constant 9.99999974E-6 : f32
    %13 = vector.broadcast %cst_8 : f32 to vector<1x128xf32>
    %14 = arith.addf %12, %13 : vector<1x128xf32>
    %cst_9 = arith.constant 1.000000e+00 : f32
    %15 = vector.broadcast %cst_9 : f32 to vector<1x128xf32>
    %16 = arith.divf %15, %14 : vector<1x128xf32>
    %cst_10 = arith.constant 1.000000e+00 : f32
    %17 = vector.broadcast %cst_10 : f32 to vector<1x128xf32>
    %18 = arith.mulf %17, %16 : vector<1x128xf32>
    %cst_11 = arith.constant 1.000000e+00 : f32
    %19 = vector.broadcast %cst_11 : f32 to vector<1x128xf32>
    %20 = arith.subf %19, %18 : vector<1x128xf32>
    %21 = vector.broadcast %18 : vector<1x128xf32> to vector<256x128xf32>
    %22 = arith.mulf %21, %8 : vector<256x128xf32>
    %23 = vector.broadcast %20 : vector<1x128xf32> to vector<256x128xf32>
    %24 = arith.addf %23, %22 : vector<256x128xf32>
    %25 = math.exp %24 : vector<256x128xf32>
    %cst_12 = arith.constant dense<0.000000e+00> : vector<128xf32>
    %26 = vector.multi_reduction <add>, %25, %cst_12 [0] : vector<256x128xf32> to vector<128xf32>
    %27 = vector.shape_cast %26 : vector<128xf32> to vector<1x128xf32>
    %28 = tpu.reciprocal %27 {approx = true} : vector<1x128xf32> -> vector<1x128xf32>
    %cst_13 = arith.constant 5.000000e-01 : f32
    %29 = vector.broadcast %cst_13 : f32 to vector<1x128xf32>
    %30 = arith.mulf %28, %29 : vector<1x128xf32>
    %31 = vector.broadcast %30 : vector<1x128xf32> to vector<256x128xf32>
    %32 = arith.mulf %25, %31 : vector<256x128xf32>
    %c0_14 = arith.constant 0 : index
    %c0_15 = arith.constant 0 : index
    %33 = vector.load %arg5[%c0_14, %c0_15] : memref<256x128xf32, #tpu.memory_space<vmem>>, vector<256x128xf32>
    %34 = arith.addf %32, %33 : vector<256x128xf32>
    %cst_16 = arith.constant dense<0xFF800000> : vector<128xf32>
    %35 = vector.multi_reduction <maximumf>, %34, %cst_16 [0] : vector<256x128xf32> to vector<128xf32>
    %36 = vector.shape_cast %35 : vector<128xf32> to vector<1x128xf32>
    %c0_17 = arith.constant 0 : index
    %37 = arith.index_cast %arg1 : i32 to index
    %c0_18 = arith.constant 0 : index
    %38 = vector.load %arg4[%c0_17, %37, %c0_18] : memref<1x2x128xf32, #tpu.memory_space<vmem>>, vector<1x1x128xf32>
    %39 = vector.shape_cast %38 : vector<1x1x128xf32> to vector<1x128xf32>
    %40 = vector.shape_cast %36 : vector<1x128xf32> to vector<1x1x128xf32>
    tpu.vector_store %arg4[%c0_17, %37, %c0_18], %40 {strides = array<i32>} : memref<1x2x128xf32, #tpu.memory_space<vmem>>, vector<1x1x128xf32>,
    return
  }
  func.func @transform_0(%arg0: i32, %arg1: i32) -> (i32, i32, i32) {
    %c0_i32 = arith.constant 0 : i32
    %c0_i32_0 = arith.constant 0 : i32
    return %arg1, %c0_i32, %arg0 : i32, i32, i32
  }
  func.func @transform_1(%arg0: i32, %arg1: i32) -> (i32, i32, i32) {
    %c0_i32 = arith.constant 0 : i32
    %c0_i32_0 = arith.constant 0 : i32
    %c0_i32_1 = arith.constant 0 : i32
    return %arg1, %c0_i32, %c0_i32_0 : i32, i32, i32
  }
  func.func @transform_2(%arg0: i32, %arg1: i32) -> (i32, i32, i32) {
    %c0_i32 = arith.constant 0 : i32
    %c0_i32_0 = arith.constant 0 : i32
    %c0_i32_1 = arith.constant 0 : i32
    return %arg0, %c0_i32, %c0_i32_0 : i32, i32, i32
  }
}

</mosaic_0001>

<llo_original>
// kernel: tpu_custom_call.1
$region0: #{tpu_custom_call.1}
  #allocation0 [shape = 'u32[]', space=smem, size = 0x4, offset = 0x4, fixed_abs, tag = 'smem constant byte address 0x4 - core index']
  #allocation1 [shape = 'u32[144,128]{1,0:T(1,128)}', space=vmem, size = 0x12000, scoped, tag = 'internal scratch']
  #allocation2 [shape = 'f32[256,128]{1,0:T(8,128)}', space=vmem, size = 0x20000, scoped, tag = 'scratch operand']
  %s0 = inlined_call_operand.hbm [shape: f32[2,4,256], index: 0, kind: input, shape index: {}]
  %s1 = inlined_call_operand.hbm [shape: f32[2,4,256], index: 1, kind: input, shape index: {}]
  %s2 = inlined_call_operand.hbm [shape: f32[2,2,128], index: 2, kind: output, shape index: {}]
  %s3 = sld [smem:[#allocation0]]
  $region53: #{tpu_custom_call.1} parent=0
    _
  %s5 = ssub.s32 1, %s3
  %s6 = scalar_select 0, %s5, %s3
  $region1: #{tpu_custom_call.1} parent=0
    #allocation3 [shape = 'u8[4096]{0}', space=vmem, size = 0x1000, scoped, tag = 'input window, operand 0']
    #allocation4 [shape = 's32[2]{0}', space=sflag, size = 0x8, scoped, tag = 'scoped memory for tpu_custom_call.1']
    #allocation5 [shape = 's32[2]{0}', space=sflag, size = 0x8, scoped, tag = 'scoped memory for tpu_custom_call.1']
    #allocation6 [shape = 'u8[8192]{0}', space=vmem, size = 0x2000, scoped, tag = 'input window, operand 1']
    #allocation7 [shape = 's32[2]{0}', space=sflag, size = 0x8, scoped, tag = 'scoped memory for tpu_custom_call.1']
    #allocation8 [shape = 'u8[2048]{0}', space=vmem, size = 0x800, scoped, tag = 'output window, operand 0']
    %7 = vsyncpa [#allocation4], 0
    %s8 = scalar_lea.sflag [#allocation4], 1
    %9 = vsyncpa %s8, 0
    %10 = vsyncpa [#allocation7], 0
    %s11 = scalar_lea.sflag [#allocation7], 1
    %12 = vsyncpa %s11, 0
    %13 = vsyncpa [#allocation5], 0
    %s14 = scalar_lea.sflag [#allocation5], 1
    %15 = vsyncpa %s14, 0
    loop: start=0, step=1, limit=6
    $region2: #{tpu_custom_call.1} parent=1 // loop_pre_header
      _
    $region3: #{tpu_custom_call.1} parent=1 // loop_header
      %s17 = sphi 0, %s21
      %p18 = scmp.ge.s32.totalorder %s17, 6
      %s24 = sphi 0, %s36
      %s25 = sphi 0, %s32
      %s26 = sphi 0, %s24
      %s27 = sphi 0, %s25
      %s28 = sphi 0, %s26
      %s29 = sphi 0, %s27
      %s41 = sphi 0, %s43
      %s44 = sphi 0, %s41
      %s45 = sphi 0, %s44
      %s61 = sphi 0, %s45
      %s67 = sphi 0, %s69
      %s70 = sphi 0, %s67
      %s71 = sphi 0, %s70
      %s87 = sphi 0, %s71
      %s93 = sphi 0, %s95
      %s96 = sphi 0, %s93
      %s97 = sphi 0, %s96
      %s113 = sphi 0, %s97
    $region4: #{tpu_custom_call.1} parent=1 // loop_header_branch
      %20 = sbr.rel (%p18) target = $region8
    $region5: #{tpu_custom_call.1} parent=1 // loop_body
      %s22 = ssub.s32 %s17, 1
      %s23 = ssub.s32 %s17, 2
      %s30 = sadd.s32 1, %s25
      %p31 = scmp.ge.s32.totalorder %s30, 2
      %s32 = scalar_select %p31, 0, %s30
      %s33 = sadd.s32 1, %s24
      %s34 = scalar_select %p31, %s33, %s24
      %p35 = scmp.ge.s32.totalorder %s34, 2
      %s36 = scalar_select %p35, 0, %s34
      %s37 = ssub.s32 %s25, %s32
      %s38 = ssub.s32 %s24, %s36
      %s39 = sor.u32 %s37, %s38
      %p40 = scmp.eq.s32.totalorder %s39, 0
      %s42 = sadd.s32 %s41, 1
      %s43 = scalar_select %p40, %s41, %s42
      %p46 = pneg %p40
      %p47 = scmp.eq.s32.totalorder %s17, 3
      %p48 = por %p46, %p47
      %p49 = scmp.ne.s32.totalorder %s41, %s44
      %p50 = scmp.eq.s32.totalorder %s17, 0
      %p51 = por %p49, %p50
      %p52 = scmp.ne.s32.totalorder %s41, %s44
      %p53 = scmp.eq.s32.totalorder %s22, 3
      %p54 = por %p52, %p53
      %p55 = scmp.ne.s32.totalorder %s44, %s45
      %p56 = scmp.eq.s32.totalorder %s22, 0
      %p57 = por %p55, %p56
      %p58 = scmp.ne.s32.totalorder %s44, %s45
      %p59 = scmp.eq.s32.totalorder %s23, 3
      %p60 = por %p58, %p59
      %p62 = scmp.ne.s32.totalorder %s45, %s61
      %p63 = scmp.eq.s32.totalorder %s23, 0
      %p64 = por %p62, %p63
      %s65 = ssub.s32 %s25, %s32
      %p66 = scmp.eq.s32.totalorder %s65, 0
      %s68 = sadd.s32 %s67, 1
      %s69 = scalar_select %p66, %s67, %s68
      %p72 = pneg %p66
      %p73 = scmp.eq.s32.totalorder %s17, 3
      %p74 = por %p72, %p73
      %p75 = scmp.ne.s32.totalorder %s67, %s70
      %p76 = scmp.eq.s32.totalorder %s17, 0
      %p77 = por %p75, %p76
      %p78 = scmp.ne.s32.totalorder %s67, %s70
      %p79 = scmp.eq.s32.totalorder %s22, 3
      %p80 = por %p78, %p79
      %p81 = scmp.ne.s32.totalorder %s70, %s71
      %p82 = scmp.eq.s32.totalorder %s22, 0
      %p83 = por %p81, %p82
      %p84 = scmp.ne.s32.totalorder %s70, %s71
      %p85 = scmp.eq.s32.totalorder %s23, 3
      %p86 = por %p84, %p85
      %p88 = scmp.ne.s32.totalorder %s71, %s87
      %p89 = scmp.eq.s32.totalorder %s23, 0
      %p90 = por %p88, %p89
      %s91 = ssub.s32 %s24, %s36
      %p92 = scmp.eq.s32.totalorder %s91, 0
      %s94 = sadd.s32 %s93, 1
      %s95 = scalar_select %p92, %s93, %s94
      %p98 = pneg %p92
      %p99 = scmp.eq.s32.totalorder %s17, 3
      %p100 = por %p98, %p99
      %p101 = scmp.ne.s32.totalorder %s93, %s96
      %p102 = scmp.eq.s32.totalorder %s17, 0
      %p103 = por %p101, %p102
      %p104 = scmp.ne.s32.totalorder %s93, %s96
      %p105 = scmp.eq.s32.totalorder %s22, 3
      %p106 = por %p104, %p105
      %p107 = scmp.ne.s32.totalorder %s96, %s97
      %p108 = scmp.eq.s32.totalorder %s22, 0
      %p109 = por %p107, %p108
      %p110 = scmp.ne.s32.totalorder %s96, %s97
      %p111 = scmp.eq.s32.totalorder %s23, 3
      %p112 = por %p110, %p111
      %p114 = scmp.ne.s32.totalorder %s97, %s113
      %p115 = scmp.eq.s32.totalorder %s23, 0
      %p116 = por %p114, %p115
      %p117 = scmp.le.s32.totalorder 1, %s17
      %p118 = scmp.lt.s32.totalorder %s17, 5
      %p119 = pnand %p117, %p118
      %p120 = pneg %p119
      // Predicated region
      $region9: #{tpu_custom_call.1} parent=5 // pred_check
        _
      $region10: #{tpu_custom_call.1} parent=5 // pred_check_branch
        %122 = sbr.rel (%p119) target = $region12
      $region11: #{tpu_custom_call.1} parent=5 // pred_region
        %s123 = ssub.s32 %s17, 1
      $region12: #{tpu_custom_call.1} parent=5 // pred_fallthru
        _
      %p124 = scmp.lt.s32.totalorder %s17, 4
      // Predicated region
      $region13: #{tpu_custom_call.1} parent=5 // pred_check
        %p125 = pneg %p124
      $region14: #{tpu_custom_call.1} parent=5 // pred_check_branch
        %127 = sbr.rel (%p125) target = $region16
      $region15: #{tpu_custom_call.1} parent=5 // pred_region
        // Predicated region
        $region17: #{tpu_custom_call.1} parent=15 // pred_check
          %p128 = pneg %p51
        $region18: #{tpu_custom_call.1} parent=15 // pred_check_branch
          %130 = sbr.rel (%p128) target = $region20
        $region19: #{tpu_custom_call.1} parent=15 // pred_region
          %s131 = sand.u32 %s41, 1
          %s132 = scalar_lea.sflag [#allocation4], %s131
          %s133 = sand.u32 %s41, 1
          %s134 = smul.addr %s133, 4
          %s135 = scalar_lea.vmem [#allocation3], %s134
          %s137 = ssub.s32 64, 64
          %138 = vsyncadd %s132, %s137
          %s139 = smul.addr %s25, 2
          %s140 = sadd.s32 %s24, %s139
          %s141 = smul.addr %s140, 64
          %s142 = scalar_lea.hbm %s0, %s141
          %s144 = sshll.u32 %s135, 4
          %s145 = int_to_ptr.vmem [resolvable:$true] %s144
          %147 = dma.hbm_to_vmem [thread:$0]  %s142, 64, %s145, %s132
        $region20: #{tpu_custom_call.1} parent=15 // pred_fallthru
          _
        // Predicated region
        $region21: #{tpu_custom_call.1} parent=15 // pred_check
          %p148 = pneg %p77
        $region22: #{tpu_custom_call.1} parent=15 // pred_check_branch
          %150 = sbr.rel (%p148) target = $region24
        $region23: #{tpu_custom_call.1} parent=15 // pred_region
          %s151 = sand.u32 %s67, 1
          %s152 = scalar_lea.sflag [#allocation7], %s151
          %s153 = sand.u32 %s67, 1
          %s154 = smul.addr %s153, 8
          %s155 = scalar_lea.vmem [#allocation6], %s154
          %s157 = ssub.s32 128, 128
          %158 = vsyncadd %s152, %s157
          %s159 = smul.addr %s25, 2
          %s160 = smul.addr %s159, 64
          %s161 = scalar_lea.hbm %s1, %s160
          %s163 = sshll.u32 %s155, 4
          %s164 = int_to_ptr.vmem [resolvable:$true] %s163
          %166 = dma.hbm_to_vmem [thread:$0]  %s161, 128, %s164, %s152
        $region24: #{tpu_custom_call.1} parent=15 // pred_fallthru
          _
      $region16: #{tpu_custom_call.1} parent=5 // pred_fallthru
        _
      %p167 = scmp.le.s32.totalorder 1, %s17
      %p168 = scmp.lt.s32.totalorder %s17, 5
      %p169 = pnand %p167, %p168
      %p170 = pneg %p169
      // Predicated region
      $region25: #{tpu_custom_call.1} parent=5 // pred_check
        _
      $region26: #{tpu_custom_call.1} parent=5 // pred_check_branch
        %172 = sbr.rel (%p169) target = $region28
      $region27: #{tpu_custom_call.1} parent=5 // pred_region
        %s173 = ssub.s32 %s17, 1
        %s174 = sand.u32 %s44, 1
        %s175 = scalar_lea.sflag [#allocation4], %s174
        %s176 = sand.u32 %s44, 1
        %s177 = smul.addr %s176, 4
        %s178 = scalar_lea.vmem [#allocation3], %s177
        // Predicated region
        $region29: #{tpu_custom_call.1} parent=27 // pred_check
          %p179 = pneg %p57
        $region30: #{tpu_custom_call.1} parent=27 // pred_check_branch
          %181 = sbr.rel (%p179) target = $region32
        $region31: #{tpu_custom_call.1} parent=27 // pred_region
          %182 = dma.done %s175, 64
        $region32: #{tpu_custom_call.1} parent=27 // pred_fallthru
          _
        %s183 = sand.u32 %s70, 1
        %s184 = scalar_lea.sflag [#allocation7], %s183
        %s185 = sand.u32 %s70, 1
        %s186 = smul.addr %s185, 8
        %s187 = scalar_lea.vmem [#allocation6], %s186
        // Predicated region
        $region33: #{tpu_custom_call.1} parent=27 // pred_check
          %p188 = pneg %p83
        $region34: #{tpu_custom_call.1} parent=27 // pred_check_branch
          %190 = sbr.rel (%p188) target = $region36
        $region35: #{tpu_custom_call.1} parent=27 // pred_region
          %191 = dma.done %s184, 128
        $region36: #{tpu_custom_call.1} parent=27 // pred_fallthru
          _
        %s192 = sand.u32 %s44, 1
        %s193 = scalar_lea.sflag [#allocation4], %s192
        %s194 = sand.u32 %s44, 1
        %s195 = smul.addr %s194, 4
        %s196 = scalar_lea.vmem [#allocation3], %s195
        %p197 = pneg %p57
        %p198 = pneg %p54
        %s199 = sand.u32 %s70, 1
        %s200 = scalar_lea.sflag [#allocation7], %s199
        %s201 = sand.u32 %s70, 1
        %s202 = smul.addr %s201, 8
        %s203 = scalar_lea.vmem [#allocation6], %s202
        %p204 = pneg %p83
        %p205 = pneg %p80
        %p206 = pneg %p109
        %p207 = pneg %p106
        %s208 = sand.u32 %s96, 1
        %s209 = scalar_lea.sflag [#allocation5], %s208
        %s210 = sand.u32 %s96, 1
        %s211 = smul.addr %s210, 2
        %s212 = scalar_lea.vmem [#allocation8], %s211
        %v213 = vlaneseq
        %v214 = vshrl.u32 %v213, 7
        %v215 = vadd.s32 %v214, 8
        %v216 = vadd.s32 %v214, 16
        %v217 = vadd.s32 %v214, 24
        %v218 = vadd.s32 %v214, 32
        %v219 = vadd.s32 %v214, 40
        %v220 = vadd.s32 %v214, 48
        %v221 = vadd.s32 %v214, 56
        %v222 = vadd.s32 %v214, 64
        %v223 = vadd.s32 %v214, 72
        %v224 = vadd.s32 %v214, 80
        %v225 = vadd.s32 %v214, 88
        %v226 = vadd.s32 %v214, 96
        %v227 = vadd.s32 %v214, 104
        %v228 = vadd.s32 %v214, 112
        %v229 = vadd.s32 %v214, 120
        %v230 = vadd.s32 %v214, 128
        %v231 = vadd.s32 %v214, 136
        %v232 = vadd.s32 %v214, 144
        %v233 = vadd.s32 %v214, 152
        %v234 = vadd.s32 %v214, 160
        %v235 = vadd.s32 %v214, 168
        %v236 = vadd.s32 %v214, 176
        %v237 = vadd.s32 %v214, 184
        %v238 = vadd.s32 %v214, 192
        %v239 = vadd.s32 %v214, 200
        %v240 = vadd.s32 %v214, 208
        %v241 = vadd.s32 %v214, 216
        %v242 = vadd.s32 %v214, 224
        %v243 = vadd.s32 %v214, 232
        %v244 = vadd.s32 %v214, 240
        %v245 = vadd.s32 %v214, 248
        %p246 = scmp.eq.s32.totalorder %s27, 0
        // Predicated region
        $region37: #{tpu_custom_call.1} parent=27 // pred_check
          %p247 = pneg %p246
        $region38: #{tpu_custom_call.1} parent=27 // pred_check_branch
          %249 = sbr.rel (%p247) target = $region40
        $region39: #{tpu_custom_call.1} parent=27 // pred_region
          %s250 = smul.u32 %s26, 128
          %v251 = vlaneseq
          %v252 = vand.u32 %v251, 127
          %v253 = vstv %s250
          %v254 = vadd.s32 %v253, %v252
          %v255 = vcvt.s32.f32 %v254
          %v256 = vcvt.s32.f32 %v214
          %v257 = vcvt.s32.f32 %v215
          %v258 = vcvt.s32.f32 %v216
          %v259 = vcvt.s32.f32 %v217
          %v260 = vcvt.s32.f32 %v218
          %v261 = vcvt.s32.f32 %v219
          %v262 = vcvt.s32.f32 %v220
          %v263 = vcvt.s32.f32 %v221
          %v264 = vcvt.s32.f32 %v222
          %v265 = vcvt.s32.f32 %v223
          %v266 = vcvt.s32.f32 %v224
          %v267 = vcvt.s32.f32 %v225
          %v268 = vcvt.s32.f32 %v226
          %v269 = vcvt.s32.f32 %v227
          %v270 = vcvt.s32.f32 %v228
          %v271 = vcvt.s32.f32 %v229
          %v272 = vcvt.s32.f32 %v230
          %v273 = vcvt.s32.f32 %v231
          %v274 = vcvt.s32.f32 %v232
          %v275 = vcvt.s32.f32 %v233
          %v276 = vcvt.s32.f32 %v234
          %v277 = vcvt.s32.f32 %v235
          %v278 = vcvt.s32.f32 %v236
          %v279 = vcvt.s32.f32 %v237
          %v280 = vcvt.s32.f32 %v238
          %v281 = vcvt.s32.f32 %v239
          %v282 = vcvt.s32.f32 %v240
          %v283 = vcvt.s32.f32 %v241
          %v284 = vcvt.s32.f32 %v242
          %v285 = vcvt.s32.f32 %v243
          %v286 = vcvt.s32.f32 %v244
          %v287 = vcvt.s32.f32 %v245
          %v288 = vadd.f32 %v255, 0.5
          %v289 = vmul.f32 %v288, 0.0625
          %v290 = vfloor.f32 %v289
          %v291 = vmul.f32 %v290, 16.0
          %v292 = vsub.f32 %v255, %v291
          %v293 = vadd.f32 %v256, 0.5
          %v294 = vadd.f32 %v257, 0.5
          %v295 = vadd.f32 %v258, 0.5
          %v296 = vadd.f32 %v259, 0.5
          %v297 = vadd.f32 %v260, 0.5
          %v298 = vadd.f32 %v261, 0.5
          %v299 = vadd.f32 %v262, 0.5
          %v300 = vadd.f32 %v263, 0.5
          %v301 = vadd.f32 %v264, 0.5
          %v302 = vadd.f32 %v265, 0.5
          %v303 = vadd.f32 %v266, 0.5
          %v304 = vadd.f32 %v267, 0.5
          %v305 = vadd.f32 %v268, 0.5
          %v306 = vadd.f32 %v269, 0.5
          %v307 = vadd.f32 %v270, 0.5
          %v308 = vadd.f32 %v271, 0.5
          %v309 = vadd.f32 %v272, 0.5
          %v310 = vadd.f32 %v273, 0.5
          %v311 = vadd.f32 %v274, 0.5
          %v312 = vadd.f32 %v275, 0.5
          %v313 = vadd.f32 %v276, 0.5
          %v314 = vadd.f32 %v277, 0.5
          %v315 = vadd.f32 %v278, 0.5
          %v316 = vadd.f32 %v279, 0.5
          %v317 = vadd.f32 %v280, 0.5
          %v318 = vadd.f32 %v281, 0.5
          %v319 = vadd.f32 %v282, 0.5
          %v320 = vadd.f32 %v283, 0.5
          %v321 = vadd.f32 %v284, 0.5
          %v322 = vadd.f32 %v285, 0.5
          %v323 = vadd.f32 %v286, 0.5
          %v324 = vadd.f32 %v287, 0.5
          %v325 = vmul.f32 %v293, 0.0625
          %v326 = vmul.f32 %v294, 0.0625
          %v327 = vmul.f32 %v295, 0.0625
          %v328 = vmul.f32 %v296, 0.0625
          %v329 = vmul.f32 %v297, 0.0625
          %v330 = vmul.f32 %v298, 0.0625
          %v331 = vmul.f32 %v299, 0.0625
          %v332 = vmul.f32 %v300, 0.0625
          %v333 = vmul.f32 %v301, 0.0625
          %v334 = vmul.f32 %v302, 0.0625
          %v335 = vmul.f32 %v303, 0.0625
          %v336 = vmul.f32 %v304, 0.0625
          %v337 = vmul.f32 %v305, 0.0625
          %v338 = vmul.f32 %v306, 0.0625
          %v339 = vmul.f32 %v307, 0.0625
          %v340 = vmul.f32 %v308, 0.0625
          %v341 = vmul.f32 %v309, 0.0625
          %v342 = vmul.f32 %v310, 0.0625
          %v343 = vmul.f32 %v311, 0.0625
          %v344 = vmul.f32 %v312, 0.0625
          %v345 = vmul.f32 %v313, 0.0625
          %v346 = vmul.f32 %v314, 0.0625
          %v347 = vmul.f32 %v315, 0.0625
          %v348 = vmul.f32 %v316, 0.0625
          %v349 = vmul.f32 %v317, 0.0625
          %v350 = vmul.f32 %v318, 0.0625
          %v351 = vmul.f32 %v319, 0.0625
          %v352 = vmul.f32 %v320, 0.0625
          %v353 = vmul.f32 %v321, 0.0625
          %v354 = vmul.f32 %v322, 0.0625
          %v355 = vmul.f32 %v323, 0.0625
          %v356 = vmul.f32 %v324, 0.0625
          %v357 = vfloor.f32 %v325
          %v358 = vfloor.f32 %v326
          %v359 = vfloor.f32 %v327
          %v360 = vfloor.f32 %v328
          %v361 = vfloor.f32 %v329
          %v362 = vfloor.f32 %v330
          %v363 = vfloor.f32 %v331
          %v364 = vfloor.f32 %v332
          %v365 = vfloor.f32 %v333
          %v366 = vfloor.f32 %v334
          %v367 = vfloor.f32 %v335
          %v368 = vfloor.f32 %v336
          %v369 = vfloor.f32 %v337
          %v370 = vfloor.f32 %v338
          %v371 = vfloor.f32 %v339
          %v372 = vfloor.f32 %v340
          %v373 = vfloor.f32 %v341
          %v374 = vfloor.f32 %v342
          %v375 = vfloor.f32 %v343
          %v376 = vfloor.f32 %v344
          %v377 = vfloor.f32 %v345
          %v378 = vfloor.f32 %v346
          %v379 = vfloor.f32 %v347
          %v380 = vfloor.f32 %v348
          %v381 = vfloor.f32 %v349
          %v382 = vfloor.f32 %v350
          %v383 = vfloor.f32 %v351
          %v384 = vfloor.f32 %v352
          %v385 = vfloor.f32 %v353
          %v386 = vfloor.f32 %v354
          %v387 = vfloor.f32 %v355
          %v388 = vfloor.f32 %v356
          %v389 = vmul.f32 %v357, 16.0
          %v390 = vmul.f32 %v358, 16.0
          %v391 = vmul.f32 %v359, 16.0
          %v392 = vmul.f32 %v360, 16.0
          %v393 = vmul.f32 %v361, 16.0
          %v394 = vmul.f32 %v362, 16.0
          %v395 = vmul.f32 %v363, 16.0
          %v396 = vmul.f32 %v364, 16.0
          %v397 = vmul.f32 %v365, 16.0
          %v398 = vmul.f32 %v366, 16.0
          %v399 = vmul.f32 %v367, 16.0
          %v400 = vmul.f32 %v368, 16.0
          %v401 = vmul.f32 %v369, 16.0
          %v402 = vmul.f32 %v370, 16.0
          %v403 = vmul.f32 %v371, 16.0
          %v404 = vmul.f32 %v372, 16.0
          %v405 = vmul.f32 %v373, 16.0
          %v406 = vmul.f32 %v374, 16.0
          %v407 = vmul.f32 %v375, 16.0
          %v408 = vmul.f32 %v376, 16.0
          %v409 = vmul.f32 %v377, 16.0
          %v410 = vmul.f32 %v378, 16.0
          %v411 = vmul.f32 %v379, 16.0
          %v412 = vmul.f32 %v380, 16.0
          %v413 = vmul.f32 %v381, 16.0
          %v414 = vmul.f32 %v382, 16.0
          %v415 = vmul.f32 %v383, 16.0
          %v416 = vmul.f32 %v384, 16.0
          %v417 = vmul.f32 %v385, 16.0
          %v418 = vmul.f32 %v386, 16.0
          %v419 = vmul.f32 %v387, 16.0
          %v420 = vmul.f32 %v388, 16.0
          %v421 = vsub.f32 %v256, %v389
          %v422 = vsub.f32 %v257, %v390
          %v423 = vsub.f32 %v258, %v391
          %v424 = vsub.f32 %v259, %v392
          %v425 = vsub.f32 %v260, %v393
          %v426 = vsub.f32 %v261, %v394
          %v427 = vsub.f32 %v262, %v395
          %v428 = vsub.f32 %v263, %v396
          %v429 = vsub.f32 %v264, %v397
          %v430 = vsub.f32 %v265, %v398
          %v431 = vsub.f32 %v266, %v399
          %v432 = vsub.f32 %v267, %v400
          %v433 = vsub.f32 %v268, %v401
          %v434 = vsub.f32 %v269, %v402
          %v435 = vsub.f32 %v270, %v403
          %v436 = vsub.f32 %v271, %v404
          %v437 = vsub.f32 %v272, %v405
          %v438 = vsub.f32 %v273, %v406
          %v439 = vsub.f32 %v274, %v407
          %v440 = vsub.f32 %v275, %v408
          %v441 = vsub.f32 %v276, %v409
          %v442 = vsub.f32 %v277, %v410
          %v443 = vsub.f32 %v278, %v411
          %v444 = vsub.f32 %v279, %v412
          %v445 = vsub.f32 %v280, %v413
          %v446 = vsub.f32 %v281, %v414
          %v447 = vsub.f32 %v282, %v415
          %v448 = vsub.f32 %v283, %v416
          %v449 = vsub.f32 %v284, %v417
          %v450 = vsub.f32 %v285, %v418
          %v451 = vsub.f32 %v286, %v419
          %v452 = vsub.f32 %v287, %v420
          %v453 = vsub.f32 %v357, %v290
          %v454 = vsub.f32 %v358, %v290
          %v455 = vsub.f32 %v359, %v290
          %v456 = vsub.f32 %v360, %v290
          %v457 = vsub.f32 %v361, %v290
          %v458 = vsub.f32 %v362, %v290
          %v459 = vsub.f32 %v363, %v290
          %v460 = vsub.f32 %v364, %v290
          %v461 = vsub.f32 %v365, %v290
          %v462 = vsub.f32 %v366, %v290
          %v463 = vsub.f32 %v367, %v290
          %v464 = vsub.f32 %v368, %v290
          %v465 = vsub.f32 %v369, %v290
          %v466 = vsub.f32 %v370, %v290
          %v467 = vsub.f32 %v371, %v290
          %v468 = vsub.f32 %v372, %v290
          %v469 = vsub.f32 %v373, %v290
          %v470 = vsub.f32 %v374, %v290
          %v471 = vsub.f32 %v375, %v290
          %v472 = vsub.f32 %v376, %v290
          %v473 = vsub.f32 %v377, %v290
          %v474 = vsub.f32 %v378, %v290
          %v475 = vsub.f32 %v379, %v290
          %v476 = vsub.f32 %v380, %v290
          %v477 = vsub.f32 %v381, %v290
          %v478 = vsub.f32 %v382, %v290
          %v479 = vsub.f32 %v383, %v290
          %v480 = vsub.f32 %v384, %v290
          %v481 = vsub.f32 %v385, %v290
          %v482 = vsub.f32 %v386, %v290
          %v483 = vsub.f32 %v387, %v290
          %v484 = vsub.f32 %v388, %v290
          %v485 = vmul.f32 %v453, 0.05882353
          %v486 = vmul.f32 %v454, 0.05882353
          %v487 = vmul.f32 %v455, 0.05882353
          %v488 = vmul.f32 %v456, 0.05882353
          %v489 = vmul.f32 %v457, 0.05882353
          %v490 = vmul.f32 %v458, 0.05882353
          %v491 = vmul.f32 %v459, 0.05882353
          %v492 = vmul.f32 %v460, 0.05882353
          %v493 = vmul.f32 %v461, 0.05882353
          %v494 = vmul.f32 %v462, 0.05882353
          %v495 = vmul.f32 %v463, 0.05882353
          %v496 = vmul.f32 %v464, 0.05882353
          %v497 = vmul.f32 %v465, 0.05882353
          %v498 = vmul.f32 %v466, 0.05882353
          %v499 = vmul.f32 %v467, 0.05882353
          %v500 = vmul.f32 %v468, 0.05882353
          %v501 = vmul.f32 %v469, 0.05882353
          %v502 = vmul.f32 %v470, 0.05882353
          %v503 = vmul.f32 %v471, 0.05882353
          %v504 = vmul.f32 %v472, 0.05882353
          %v505 = vmul.f32 %v473, 0.05882353
          %v506 = vmul.f32 %v474, 0.05882353
          %v507 = vmul.f32 %v475, 0.05882353
          %v508 = vmul.f32 %v476, 0.05882353
          %v509 = vmul.f32 %v477, 0.05882353
          %v510 = vmul.f32 %v478, 0.05882353
          %v511 = vmul.f32 %v479, 0.05882353
          %v512 = vmul.f32 %v480, 0.05882353
          %v513 = vmul.f32 %v481, 0.05882353
          %v514 = vmul.f32 %v482, 0.05882353
          %v515 = vmul.f32 %v483, 0.05882353
          %v516 = vmul.f32 %v484, 0.05882353
          %v517 = vsub.f32 %v421, %v292
          %v518 = vsub.f32 %v422, %v292
          %v519 = vsub.f32 %v423, %v292
          %v520 = vsub.f32 %v424, %v292
          %v521 = vsub.f32 %v425, %v292
          %v522 = vsub.f32 %v426, %v292
          %v523 = vsub.f32 %v427, %v292
          %v524 = vsub.f32 %v428, %v292
          %v525 = vsub.f32 %v429, %v292
          %v526 = vsub.f32 %v430, %v292
          %v527 = vsub.f32 %v431, %v292
          %v528 = vsub.f32 %v432, %v292
          %v529 = vsub.f32 %v433, %v292
          %v530 = vsub.f32 %v434, %v292
          %v531 = vsub.f32 %v435, %v292
          %v532 = vsub.f32 %v436, %v292
          %v533 = vsub.f32 %v437, %v292
          %v534 = vsub.f32 %v438, %v292
          %v535 = vsub.f32 %v439, %v292
          %v536 = vsub.f32 %v440, %v292
          %v537 = vsub.f32 %v441, %v292
          %v538 = vsub.f32 %v442, %v292
          %v539 = vsub.f32 %v443, %v292
          %v540 = vsub.f32 %v444, %v292
          %v541 = vsub.f32 %v445, %v292
          %v542 = vsub.f32 %v446, %v292
          %v543 = vsub.f32 %v447, %v292
          %v544 = vsub.f32 %v448, %v292
          %v545 = vsub.f32 %v449, %v292
          %v546 = vsub.f32 %v450, %v292
          %v547 = vsub.f32 %v451, %v292
          %v548 = vsub.f32 %v452, %v292
          %v549 = vmul.f32 %v517, 0.05882353
          %v550 = vmul.f32 %v518, 0.05882353
          %v551 = vmul.f32 %v519, 0.05882353
          %v552 = vmul.f32 %v520, 0.05882353
          %v553 = vmul.f32 %v521, 0.05882353
          %v554 = vmul.f32 %v522, 0.05882353
          %v555 = vmul.f32 %v523, 0.05882353
          %v556 = vmul.f32 %v524, 0.05882353
          %v557 = vmul.f32 %v525, 0.05882353
          %v558 = vmul.f32 %v526, 0.05882353
          %v559 = vmul.f32 %v527, 0.05882353
          %v560 = vmul.f32 %v528, 0.05882353
          %v561 = vmul.f32 %v529, 0.05882353
          %v562 = vmul.f32 %v530, 0.05882353
          %v563 = vmul.f32 %v531, 0.05882353
          %v564 = vmul.f32 %v532, 0.05882353
          %v565 = vmul.f32 %v533, 0.05882353
          %v566 = vmul.f32 %v534, 0.05882353
          %v567 = vmul.f32 %v535, 0.05882353
          %v568 = vmul.f32 %v536, 0.05882353
          %v569 = vmul.f32 %v537, 0.05882353
          %v570 = vmul.f32 %v538, 0.05882353
          %v571 = vmul.f32 %v539, 0.05882353
          %v572 = vmul.f32 %v540, 0.05882353
          %v573 = vmul.f32 %v541, 0.05882353
          %v574 = vmul.f32 %v542, 0.05882353
          %v575 = vmul.f32 %v543, 0.05882353
          %v576 = vmul.f32 %v544, 0.05882353
          %v577 = vmul.f32 %v545, 0.05882353
          %v578 = vmul.f32 %v546, 0.05882353
          %v579 = vmul.f32 %v547, 0.05882353
          %v580 = vmul.f32 %v548, 0.05882353
          %v581 = vmul.f32 %v485, %v485
          %v582 = vmul.f32 %v486, %v486
          %v583 = vmul.f32 %v487, %v487
          %v584 = vmul.f32 %v488, %v488
          %v585 = vmul.f32 %v489, %v489
          %v586 = vmul.f32 %v490, %v490
          %v587 = vmul.f32 %v491, %v491
          %v588 = vmul.f32 %v492, %v492
          %v589 = vmul.f32 %v493, %v493
          %v590 = vmul.f32 %v494, %v494
          %v591 = vmul.f32 %v495, %v495
          %v592 = vmul.f32 %v496, %v496
          %v593 = vmul.f32 %v497, %v497
          %v594 = vmul.f32 %v498, %v498
          %v595 = vmul.f32 %v499, %v499
          %v596 = vmul.f32 %v500, %v500
          %v597 = vmul.f32 %v501, %v501
          %v598 = vmul.f32 %v502, %v502
          %v599 = vmul.f32 %v503, %v503
          %v600 = vmul.f32 %v504, %v504
          %v601 = vmul.f32 %v505, %v505
          %v602 = vmul.f32 %v506, %v506
          %v603 = vmul.f32 %v507, %v507
          %v604 = vmul.f32 %v508, %v508
          %v605 = vmul.f32 %v509, %v509
          %v606 = vmul.f32 %v510, %v510
          %v607 = vmul.f32 %v511, %v511
          %v608 = vmul.f32 %v512, %v512
          %v609 = vmul.f32 %v513, %v513
          %v610 = vmul.f32 %v514, %v514
          %v611 = vmul.f32 %v515, %v515
          %v612 = vmul.f32 %v516, %v516
          %v613 = vmul.f32 %v549, %v549
          %v614 = vmul.f32 %v550, %v550
          %v615 = vmul.f32 %v551, %v551
          %v616 = vmul.f32 %v552, %v552
          %v617 = vmul.f32 %v553, %v553
          %v618 = vmul.f32 %v554, %v554
          %v619 = vmul.f32 %v555, %v555
          %v620 = vmul.f32 %v556, %v556
          %v621 = vmul.f32 %v557, %v557
          %v622 = vmul.f32 %v558, %v558
          %v623 = vmul.f32 %v559, %v559
          %v624 = vmul.f32 %v560, %v560
          %v625 = vmul.f32 %v561, %v561
          %v626 = vmul.f32 %v562, %v562
          %v627 = vmul.f32 %v563, %v563
          %v628 = vmul.f32 %v564, %v564
          %v629 = vmul.f32 %v565, %v565
          %v630 = vmul.f32 %v566, %v566
          %v631 = vmul.f32 %v567, %v567
          %v632 = vmul.f32 %v568, %v568
          %v633 = vmul.f32 %v569, %v569
          %v634 = vmul.f32 %v570, %v570
          %v635 = vmul.f32 %v571, %v571
          %v636 = vmul.f32 %v572, %v572
          %v637 = vmul.f32 %v573, %v573
          %v638 = vmul.f32 %v574, %v574
          %v639 = vmul.f32 %v575, %v575
          %v640 = vmul.f32 %v576, %v576
          %v641 = vmul.f32 %v577, %v577
          %v642 = vmul.f32 %v578, %v578
          %v643 = vmul.f32 %v579, %v579
          %v644 = vmul.f32 %v580, %v580
          %v645 = vadd.f32 %v581, %v613
          %v646 = vadd.f32 %v582, %v614
          %v647 = vadd.f32 %v583, %v615
          %v648 = vadd.f32 %v584, %v616
          %v649 = vadd.f32 %v585, %v617
          %v650 = vadd.f32 %v586, %v618
          %v651 = vadd.f32 %v587, %v619
          %v652 = vadd.f32 %v588, %v620
          %v653 = vadd.f32 %v589, %v621
          %v654 = vadd.f32 %v590, %v622
          %v655 = vadd.f32 %v591, %v623
          %v656 = vadd.f32 %v592, %v624
          %v657 = vadd.f32 %v593, %v625
          %v658 = vadd.f32 %v594, %v626
          %v659 = vadd.f32 %v595, %v627
          %v660 = vadd.f32 %v596, %v628
          %v661 = vadd.f32 %v597, %v629
          %v662 = vadd.f32 %v598, %v630
          %v663 = vadd.f32 %v599, %v631
          %v664 = vadd.f32 %v600, %v632
          %v665 = vadd.f32 %v601, %v633
          %v666 = vadd.f32 %v602, %v634
          %v667 = vadd.f32 %v603, %v635
          %v668 = vadd.f32 %v604, %v636
          %v669 = vadd.f32 %v605, %v637
          %v670 = vadd.f32 %v606, %v638
          %v671 = vadd.f32 %v607, %v639
          %v672 = vadd.f32 %v608, %v640
          %v673 = vadd.f32 %v609, %v641
          %v674 = vadd.f32 %v610, %v642
          %v675 = vadd.f32 %v611, %v643
          %v676 = vadd.f32 %v612, %v644
          %v677 = vmul.f32 %v645, 100000.0
          %v678 = vmul.f32 %v646, 100000.0
          %v679 = vmul.f32 %v647, 100000.0
          %v680 = vmul.f32 %v648, 100000.0
          %v681 = vmul.f32 %v649, 100000.0
          %v682 = vmul.f32 %v650, 100000.0
          %v683 = vmul.f32 %v651, 100000.0
          %v684 = vmul.f32 %v652, 100000.0
          %v685 = vmul.f32 %v653, 100000.0
          %v686 = vmul.f32 %v654, 100000.0
          %v687 = vmul.f32 %v655, 100000.0
          %v688 = vmul.f32 %v656, 100000.0
          %v689 = vmul.f32 %v657, 100000.0
          %v690 = vmul.f32 %v658, 100000.0
          %v691 = vmul.f32 %v659, 100000.0
          %v692 = vmul.f32 %v660, 100000.0
          %v693 = vmul.f32 %v661, 100000.0
          %v694 = vmul.f32 %v662, 100000.0
          %v695 = vmul.f32 %v663, 100000.0
          %v696 = vmul.f32 %v664, 100000.0
          %v697 = vmul.f32 %v665, 100000.0
          %v698 = vmul.f32 %v666, 100000.0
          %v699 = vmul.f32 %v667, 100000.0
          %v700 = vmul.f32 %v668, 100000.0
          %v701 = vmul.f32 %v669, 100000.0
          %v702 = vmul.f32 %v670, 100000.0
          %v703 = vmul.f32 %v671, 100000.0
          %v704 = vmul.f32 %v672, 100000.0
          %v705 = vmul.f32 %v673, 100000.0
          %v706 = vmul.f32 %v674, 100000.0
          %v707 = vmul.f32 %v675, 100000.0
          %v708 = vmul.f32 %v676, 100000.0
          %v709 = vsub.f32 1.0, %v677
          %v710 = vsub.f32 1.0, %v678
          %v711 = vsub.f32 1.0, %v679
          %v712 = vsub.f32 1.0, %v680
          %v713 = vsub.f32 1.0, %v681
          %v714 = vsub.f32 1.0, %v682
          %v715 = vsub.f32 1.0, %v683
          %v716 = vsub.f32 1.0, %v684
          %v717 = vsub.f32 1.0, %v685
          %v718 = vsub.f32 1.0, %v686
          %v719 = vsub.f32 1.0, %v687
          %v720 = vsub.f32 1.0, %v688
          %v721 = vsub.f32 1.0, %v689
          %v722 = vsub.f32 1.0, %v690
          %v723 = vsub.f32 1.0, %v691
          %v724 = vsub.f32 1.0, %v692
          %v725 = vsub.f32 1.0, %v693
          %v726 = vsub.f32 1.0, %v694
          %v727 = vsub.f32 1.0, %v695
          %v728 = vsub.f32 1.0, %v696
          %v729 = vsub.f32 1.0, %v697
          %v730 = vsub.f32 1.0, %v698
          %v731 = vsub.f32 1.0, %v699
          %v732 = vsub.f32 1.0, %v700
          %v733 = vsub.f32 1.0, %v701
          %v734 = vsub.f32 1.0, %v702
          %v735 = vsub.f32 1.0, %v703
          %v736 = vsub.f32 1.0, %v704
          %v737 = vsub.f32 1.0, %v705
          %v738 = vsub.f32 1.0, %v706
          %v739 = vsub.f32 1.0, %v707
          %v740 = vsub.f32 1.0, %v708
          %v741 = vmul.f32 %v709, 1.442695
          %v742 = vpow.pop %v741
          %v743 = vmul.f32 %v710, 1.442695
          %v744 = vpow.pop %v743
          %v745 = vmul.f32 %v711, 1.442695
          %v746 = vpow.pop %v745
          %v747 = vmul.f32 %v712, 1.442695
          %v748 = vpow.pop %v747
          %v749 = vmul.f32 %v713, 1.442695
          %v750 = vpow.pop %v749
          %v751 = vmul.f32 %v714, 1.442695
          %v752 = vpow.pop %v751
          %v753 = vmul.f32 %v715, 1.442695
          %v754 = vpow.pop %v753
          %v755 = vmul.f32 %v716, 1.442695
          %v756 = vpow.pop %v755
          %v757 = vmul.f32 %v717, 1.442695
          %v758 = vpow.pop %v757
          %v759 = vmul.f32 %v718, 1.442695
          %v760 = vpow.pop %v759
          %v761 = vmul.f32 %v719, 1.442695
          %v762 = vpow.pop %v761
          %v763 = vmul.f32 %v720, 1.442695
          %v764 = vpow.pop %v763
          %v765 = vmul.f32 %v721, 1.442695
          %v766 = vpow.pop %v765
          %v767 = vmul.f32 %v722, 1.442695
          %v768 = vpow.pop %v767
          %v769 = vmul.f32 %v723, 1.442695
          %v770 = vpow.pop %v769
          %v771 = vmul.f32 %v724, 1.442695
          %v772 = vpow.pop %v771
          %v773 = vmul.f32 %v725, 1.442695
          %v774 = vpow.pop %v773
          %v775 = vmul.f32 %v726, 1.442695
          %v776 = vpow.pop %v775
          %v777 = vmul.f32 %v727, 1.442695
          %v778 = vpow.pop %v777
          %v779 = vmul.f32 %v728, 1.442695
          %v780 = vpow.pop %v779
          %v781 = vmul.f32 %v729, 1.442695
          %v782 = vpow.pop %v781
          %v783 = vmul.f32 %v730, 1.442695
          %v784 = vpow.pop %v783
          %v785 = vmul.f32 %v731, 1.442695
          %v786 = vpow.pop %v785
          %v787 = vmul.f32 %v732, 1.442695
          %v788 = vpow.pop %v787
          %v789 = vmul.f32 %v733, 1.442695
          %v790 = vpow.pop %v789
          %v791 = vmul.f32 %v734, 1.442695
          %v792 = vpow.pop %v791
          %v793 = vmul.f32 %v735, 1.442695
          %v794 = vpow.pop %v793
          %v795 = vmul.f32 %v736, 1.442695
          %v796 = vpow.pop %v795
          %v797 = vmul.f32 %v737, 1.442695
          %v798 = vpow.pop %v797
          %v799 = vmul.f32 %v738, 1.442695
          %v800 = vpow.pop %v799
          %v801 = vmul.f32 %v739, 1.442695
          %v802 = vpow.pop %v801
          %v803 = vmul.f32 %v740, 1.442695
          %v804 = vpow.pop %v803
          %v805 = vadd.f32 %v742, %v744
          %v806 = vadd.f32 %v805, %v746
          %v807 = vadd.f32 %v806, %v748
          %v808 = vadd.f32 %v807, %v750
          %v809 = vadd.f32 %v808, %v752
          %v810 = vadd.f32 %v809, %v754
          %v811 = vadd.f32 %v810, %v756
          %v812 = vadd.f32 %v811, %v758
          %v813 = vadd.f32 %v812, %v760
          %v814 = vadd.f32 %v813, %v762
          %v815 = vadd.f32 %v814, %v764
          %v816 = vadd.f32 %v815, %v766
          %v817 = vadd.f32 %v816, %v768
          %v818 = vadd.f32 %v817, %v770
          %v819 = vadd.f32 %v818, %v772
          %v820 = vadd.f32 %v819, %v774
          %v821 = vadd.f32 %v820, %v776
          %v822 = vadd.f32 %v821, %v778
          %v823 = vadd.f32 %v822, %v780
          %v824 = vadd.f32 %v823, %v782
          %v825 = vadd.f32 %v824, %v784
          %v826 = vadd.f32 %v825, %v786
          %v827 = vadd.f32 %v826, %v788
          %v828 = vadd.f32 %v827, %v790
          %v829 = vadd.f32 %v828, %v792
          %v830 = vadd.f32 %v829, %v794
          %v831 = vadd.f32 %v830, %v796
          %v832 = vadd.f32 %v831, %v798
          %v833 = vadd.f32 %v832, %v800
          %v834 = vadd.f32 %v833, %v802
          %v835 = vadd.f32 %v834, %v804
          %v836 = vrot.slane %v835, 4
          %v837 = vadd.f32 %v835, %v836
          %v838 = vrot.slane %v837, 2
          %v839 = vadd.f32 %v837, %v838
          %v840 = vrot.slane %v839, 1
          %v841 = vadd.f32 %v839, %v840
          %v842 = vrcp.pop %v841
          %v843 = vmul.f32 %v842, 0.5
          %v844 = vmul.f32 %v742, %v843
          %v845 = vmul.f32 %v744, %v843
          %v846 = vmul.f32 %v746, %v843
          %v847 = vmul.f32 %v748, %v843
          %v848 = vmul.f32 %v750, %v843
          %v849 = vmul.f32 %v752, %v843
          %v850 = vmul.f32 %v754, %v843
          %v851 = vmul.f32 %v756, %v843
          %v852 = vmul.f32 %v758, %v843
          %v853 = vmul.f32 %v760, %v843
          %v854 = vmul.f32 %v762, %v843
          %v855 = vmul.f32 %v764, %v843
          %v856 = vmul.f32 %v766, %v843
          %v857 = vmul.f32 %v768, %v843
          %v858 = vmul.f32 %v770, %v843
          %v859 = vmul.f32 %v772, %v843
          %v860 = vmul.f32 %v774, %v843
          %v861 = vmul.f32 %v776, %v843
          %v862 = vmul.f32 %v778, %v843
          %v863 = vmul.f32 %v780, %v843
          %v864 = vmul.f32 %v782, %v843
          %v865 = vmul.f32 %v784, %v843
          %v866 = vmul.f32 %v786, %v843
          %v867 = vmul.f32 %v788, %v843
          %v868 = vmul.f32 %v790, %v843
          %v869 = vmul.f32 %v792, %v843
          %v870 = vmul.f32 %v794, %v843
          %v871 = vmul.f32 %v796, %v843
          %v872 = vmul.f32 %v798, %v843
          %v873 = vmul.f32 %v800, %v843
          %v874 = vmul.f32 %v802, %v843
          %v875 = vmul.f32 %v804, %v843
          %876 = vst [vmem:[#allocation2] sm:$0xff] %v844
          %877 = vst [vmem:[#allocation2 + $0x8] sm:$0xff] %v845
          %878 = vst [vmem:[#allocation2 + $0x10] sm:$0xff] %v846
          %879 = vst [vmem:[#allocation2 + $0x18] sm:$0xff] %v847
          %880 = vst [vmem:[#allocation2 + $0x20] sm:$0xff] %v848
          %881 = vst [vmem:[#allocation2 + $0x28] sm:$0xff] %v849
          %882 = vst [vmem:[#allocation2 + $0x30] sm:$0xff] %v850
          %883 = vst [vmem:[#allocation2 + $0x38] sm:$0xff] %v851
          %884 = vst [vmem:[#allocation2 + $0x40] sm:$0xff] %v852
          %885 = vst [vmem:[#allocation2 + $0x48] sm:$0xff] %v853
          %886 = vst [vmem:[#allocation2 + $0x50] sm:$0xff] %v854
          %887 = vst [vmem:[#allocation2 + $0x58] sm:$0xff] %v855
          %888 = vst [vmem:[#allocation2 + $0x60] sm:$0xff] %v856
          %889 = vst [vmem:[#allocation2 + $0x68] sm:$0xff] %v857
          %890 = vst [vmem:[#allocation2 + $0x70] sm:$0xff] %v858
          %891 = vst [vmem:[#allocation2 + $0x78] sm:$0xff] %v859
          %892 = vst [vmem:[#allocation2 + $0x80] sm:$0xff] %v860
          %893 = vst [vmem:[#allocation2 + $0x88] sm:$0xff] %v861
          %894 = vst [vmem:[#allocation2 + $0x90] sm:$0xff] %v862
          %895 = vst [vmem:[#allocation2 + $0x98] sm:$0xff] %v863
          %896 = vst [vmem:[#allocation2 + $0xa0] sm:$0xff] %v864
          %897 = vst [vmem:[#allocation2 + $0xa8] sm:$0xff] %v865
          %898 = vst [vmem:[#allocation2 + $0xb0] sm:$0xff] %v866
          %899 = vst [vmem:[#allocation2 + $0xb8] sm:$0xff] %v867
          %900 = vst [vmem:[#allocation2 + $0xc0] sm:$0xff] %v868
          %901 = vst [vmem:[#allocation2 + $0xc8] sm:$0xff] %v869
          %902 = vst [vmem:[#allocation2 + $0xd0] sm:$0xff] %v870
          %903 = vst [vmem:[#allocation2 + $0xd8] sm:$0xff] %v871
          %904 = vst [vmem:[#allocation2 + $0xe0] sm:$0xff] %v872
          %905 = vst [vmem:[#allocation2 + $0xe8] sm:$0xff] %v873
          %906 = vst [vmem:[#allocation2 + $0xf0] sm:$0xff] %v874
          %907 = vst [vmem:[#allocation2 + $0xf8] sm:$0xff] %v875
        $region40: #{tpu_custom_call.1} parent=27 // pred_fallthru
          _
        %v908 = vld [vmem:[%s187] sm:$0xff]
        %v909 = vld [vmem:[%s178] sm:$0xf]
        %v911 = vcombine.high %v908, %v908
        %913 = vxpose.xlu0.b32.start [1/16] %v908, 128
        %914 = vxpose.xlu0.b32.cont [2/16] 0.0, 128
        %915 = vxpose.xlu0.b32.cont [3/16] 0.0, 128
        %916 = vxpose.xlu0.b32.cont [4/16] 0.0, 128
        %917 = vxpose.xlu0.b32.cont [5/16] 0.0, 128
        %918 = vxpose.xlu0.b32.cont [6/16] 0.0, 128
        %919 = vxpose.xlu0.b32.cont [7/16] 0.0, 128
        %920 = vxpose.xlu0.b32.cont [8/16] 0.0, 128
        %921 = vxpose.xlu0.b32.cont [9/16] 0.0, 128
        %922 = vxpose.xlu0.b32.cont [10/16] 0.0, 128
        %923 = vxpose.xlu0.b32.cont [11/16] 0.0, 128
        %924 = vxpose.xlu0.b32.cont [12/16] 0.0, 128
        %925 = vxpose.xlu0.b32.cont [13/16] 0.0, 128
        %926 = vxpose.xlu0.b32.cont [14/16] 0.0, 128
        %927 = vxpose.xlu0.b32.cont [15/16] 0.0, 128
        %928 = vxpose.xlu0.b32.end [16/16] 0.0, 128
        %v929 = vpop.trf.xlu0
        %v930 = vpop.trf.xlu0
        %v931 = vpop.trf.xlu0
        %v932 = vpop.trf.xlu0
        %v933 = vpop.trf.xlu0
        %v934 = vpop.trf.xlu0
        %v935 = vpop.trf.xlu0
        %v936 = vpop.trf.xlu0
        %v937 = vpop.trf.xlu0
        %v938 = vpop.trf.xlu0
        %v939 = vpop.trf.xlu0
        %v940 = vpop.trf.xlu0
        %v941 = vpop.trf.xlu0
        %v942 = vpop.trf.xlu0
        %v943 = vpop.trf.xlu0
        %v944 = vpop.trf.xlu0
        %945 = vxpose.xlu0.b32.start [1/16] %v911, 128
        %946 = vxpose.xlu0.b32.cont [2/16] 0.0, 128
        %947 = vxpose.xlu0.b32.cont [3/16] 0.0, 128
        %948 = vxpose.xlu0.b32.cont [4/16] 0.0, 128
        %949 = vxpose.xlu0.b32.cont [5/16] 0.0, 128
        %950 = vxpose.xlu0.b32.cont [6/16] 0.0, 128
        %951 = vxpose.xlu0.b32.cont [7/16] 0.0, 128
        %952 = vxpose.xlu0.b32.cont [8/16] 0.0, 128
        %953 = vxpose.xlu0.b32.cont [9/16] 0.0, 128
        %954 = vxpose.xlu0.b32.cont [10/16] 0.0, 128
        %955 = vxpose.xlu0.b32.cont [11/16] 0.0, 128
        %956 = vxpose.xlu0.b32.cont [12/16] 0.0, 128
        %957 = vxpose.xlu0.b32.cont [13/16] 0.0, 128
        %958 = vxpose.xlu0.b32.cont [14/16] 0.0, 128
        %959 = vxpose.xlu0.b32.cont [15/16] 0.0, 128
        %960 = vxpose.xlu0.b32.end [16/16] 0.0, 128
        %v961 = vpop.trf.xlu0
        %v962 = vpop.trf.xlu0
        %v963 = vpop.trf.xlu0
        %v964 = vpop.trf.xlu0
        %v965 = vpop.trf.xlu0
        %v966 = vpop.trf.xlu0
        %v967 = vpop.trf.xlu0
        %v968 = vpop.trf.xlu0
        %v969 = vpop.trf.xlu0
        %v970 = vpop.trf.xlu0
        %v971 = vpop.trf.xlu0
        %v972 = vpop.trf.xlu0
        %v973 = vpop.trf.xlu0
        %v974 = vpop.trf.xlu0
        %v975 = vpop.trf.xlu0
        %v976 = vpop.trf.xlu0
        %vm977 = vcmask 31744
        %v979 = vsel %vm977, %v929, 0
        %v982 = vsel %vm977, %v930, 0
        %v985 = vsel %vm977, %v931, 0
        %v988 = vsel %vm977, %v932, 0
        %v991 = vsel %vm977, %v933, 0
        %v994 = vsel %vm977, %v934, 0
        %v997 = vsel %vm977, %v935, 0
        %v1000 = vsel %vm977, %v936, 0
        %v1003 = vsel %vm977, %v937, 0
        %v1006 = vsel %vm977, %v938, 0
        %v1009 = vsel %vm977, %v939, 0
        %v1012 = vsel %vm977, %v940, 0
        %v1015 = vsel %vm977, %v941, 0
        %v1018 = vsel %vm977, %v942, 0
        %v1021 = vsel %vm977, %v943, 0
        %v1024 = vsel %vm977, %v944, 0
        %v1027 = vsel %vm977, %v961, 0
        %v1030 = vsel %vm977, %v962, 0
        %v1033 = vsel %vm977, %v963, 0
        %v1036 = vsel %vm977, %v964, 0
        %v1039 = vsel %vm977, %v965, 0
        %v1042 = vsel %vm977, %v966, 0
        %v1045 = vsel %vm977, %v967, 0
        %v1048 = vsel %vm977, %v968, 0
        %v1051 = vsel %vm977, %v969, 0
        %v1054 = vsel %vm977, %v970, 0
        %v1057 = vsel %vm977, %v971, 0
        %v1060 = vsel %vm977, %v972, 0
        %v1063 = vsel %vm977, %v973, 0
        %v1066 = vsel %vm977, %v974, 0
        %v1069 = vsel %vm977, %v975, 0
        %v1072 = vsel %vm977, %v976, 0
        %vm1074 = vcmask 1043456
        %v1076 = vsel %vm1074, %v909, 0
        %1078 = vmatprep.subr.mxu0 0.0
        %1079 = vmatpush1.msra.mxu0 0.0
        %1080 = vmatprep.subr.mxu0 0.0
        %1081 = vmatpush1.msra.mxu0 0.0
        %1082 = vmatprep.subr.mxu0 0.0
        %1083 = vmatpush1.msra.mxu0 0.0
        %1084 = vmatprep.subr.mxu0 0.0
        %1085 = vmatpush1.msra.mxu0 0.0
        %1086 = vmatprep.subr.mxu0 0.0
        %1087 = vmatpush1.msra.mxu0 0.0
        %1088 = vmatprep.subr.mxu0 0.0
        %1089 = vmatpush1.msra.mxu0 0.0
        %1090 = vmatprep.subr.mxu0 0.0
        %1091 = vmatpush1.msra.mxu0 0.0
        %1092 = vmatprep.subr.mxu0 0.0
        %1093 = vmatpush1.msra.mxu0 0.0
        %1094 = vmatprep.subr.mxu0 0.0
        %1095 = vmatpush1.msra.mxu0 0.0
        %1096 = vmatprep.subr.mxu0 0.0
        %1097 = vmatpush1.msra.mxu0 0.0
        %1098 = vmatprep.subr.mxu0 0.0
        %1099 = vmatpush1.msra.mxu0 0.0
        %1100 = vmatprep.subr.mxu0 0.0
        %1101 = vmatpush1.msra.mxu0 0.0
        %1102 = vmatprep.subr.mxu0 0.0
        %1103 = vmatpush1.msra.mxu0 0.0
        %1104 = vmatprep.subr.mxu0 0.0
        %1105 = vmatpush1.msra.mxu0 0.0
        %1106 = vmatprep.subr.mxu0 0.0
        %1107 = vmatpush1.msra.mxu0 0.0
        %1108 = vmatprep.subr.mxu0 0.0
        %v1109 = vand.u32 %v1076, 4294901760
        %1110 = vmatpush1.msra.mxu0 %v1109
        %1111 = vmatprep.subr.mxu0 0.0
        %1112 = vmatpush2.msra.mxu0 0.0
        %1113 = vmatprep.subr.mxu0 0.0
        %1114 = vmatpush2.msra.mxu0 0.0
        %1115 = vmatprep.subr.mxu0 0.0
        %1116 = vmatpush2.msra.mxu0 0.0
        %1117 = vmatprep.subr.mxu0 0.0
        %1118 = vmatpush2.msra.mxu0 0.0
        %1119 = vmatprep.subr.mxu0 0.0
        %1120 = vmatpush2.msra.mxu0 0.0
        %1121 = vmatprep.subr.mxu0 0.0
        %1122 = vmatpush2.msra.mxu0 0.0
        %1123 = vmatprep.subr.mxu0 0.0
        %1124 = vmatpush2.msra.mxu0 0.0
        %1125 = vmatprep.subr.mxu0 0.0
        %1126 = vmatpush2.msra.mxu0 0.0
        %1127 = vmatprep.subr.mxu0 0.0
        %1128 = vmatpush2.msra.mxu0 0.0
        %1129 = vmatprep.subr.mxu0 0.0
        %1130 = vmatpush2.msra.mxu0 0.0
        %1131 = vmatprep.subr.mxu0 0.0
        %1132 = vmatpush2.msra.mxu0 0.0
        %1133 = vmatprep.subr.mxu0 0.0
        %1134 = vmatpush2.msra.mxu0 0.0
        %1135 = vmatprep.subr.mxu0 0.0
        %1136 = vmatpush2.msra.mxu0 0.0
        %1137 = vmatprep.subr.mxu0 0.0
        %1138 = vmatpush2.msra.mxu0 0.0
        %1139 = vmatprep.subr.mxu0 0.0
        %1140 = vmatpush2.msra.mxu0 0.0
        %1141 = vmatprep.subr.mxu0 0.0
        %1142 = vmatpush2.msra.mxu0 0.0
        %1143 = vmatprep.mubr.f32.mxu0 0.0
        %v1144 = vand.u32 %v979, 4294901760
        %v1145 = vsub.f32 %v979, %v1144
        %v1146 = vand.u32 %v1145, 4294901760
        %v1147 = vsub.f32 %v1145, %v1146
        %v1148 = vand.u32 %v1147, 4294901760
        %1149 = vmatmul.mubr.f32.gmra.mxu0 %v1148
        %v1150 = vpop.f32.mrf.mxu0
        %v1151 = vadd.f32 0.0, %v1150
        %v1152 = vpop.f32.mrf.mxu0
        %1153 = vmatprep.mubr.f32.mxu0 0.0
        %v1154 = vand.u32 %v982, 4294901760
        %v1155 = vsub.f32 %v982, %v1154
        %v1156 = vand.u32 %v1155, 4294901760
        %v1157 = vsub.f32 %v1155, %v1156
        %v1158 = vand.u32 %v1157, 4294901760
        %1159 = vmatmul.mubr.f32.gmra.mxu0 %v1158
        %v1160 = vpop.f32.mrf.mxu0
        %v1161 = vadd.f32 0.0, %v1160
        %v1162 = vpop.f32.mrf.mxu0
        %1163 = vmatprep.mubr.f32.mxu0 0.0
        %v1164 = vand.u32 %v985, 4294901760
        %v1165 = vsub.f32 %v985, %v1164
        %v1166 = vand.u32 %v1165, 4294901760
        %v1167 = vsub.f32 %v1165, %v1166
        %v1168 = vand.u32 %v1167, 4294901760
        %1169 = vmatmul.mubr.f32.gmra.mxu0 %v1168
        %v1170 = vpop.f32.mrf.mxu0
        %v1171 = vadd.f32 0.0, %v1170
        %v1172 = vpop.f32.mrf.mxu0
        %1173 = vmatprep.mubr.f32.mxu0 0.0
        %v1174 = vand.u32 %v988, 4294901760
        %v1175 = vsub.f32 %v988, %v1174
        %v1176 = vand.u32 %v1175, 4294901760
        %v1177 = vsub.f32 %v1175, %v1176
        %v1178 = vand.u32 %v1177, 4294901760
        %1179 = vmatmul.mubr.f32.gmra.mxu0 %v1178
        %v1180 = vpop.f32.mrf.mxu0
        %v1181 = vadd.f32 0.0, %v1180
        %v1182 = vpop.f32.mrf.mxu0
        %1183 = vmatprep.mubr.f32.mxu0 0.0
        %v1184 = vand.u32 %v991, 4294901760
        %v1185 = vsub.f32 %v991, %v1184
        %v1186 = vand.u32 %v1185, 4294901760
        %v1187 = vsub.f32 %v1185, %v1186
        %v1188 = vand.u32 %v1187, 4294901760
        %1189 = vmatmul.mubr.f32.gmra.mxu0 %v1188
        %v1190 = vpop.f32.mrf.mxu0
        %v1191 = vadd.f32 0.0, %v1190
        %v1192 = vpop.f32.mrf.mxu0
        %1193 = vmatprep.mubr.f32.mxu0 0.0
        %v1194 = vand.u32 %v994, 4294901760
        %v1195 = vsub.f32 %v994, %v1194
        %v1196 = vand.u32 %v1195, 4294901760
        %v1197 = vsub.f32 %v1195, %v1196
        %v1198 = vand.u32 %v1197, 4294901760
        %1199 = vmatmul.mubr.f32.gmra.mxu0 %v1198
        %v1200 = vpop.f32.mrf.mxu0
        %v1201 = vadd.f32 0.0, %v1200
        %v1202 = vpop.f32.mrf.mxu0
        %1203 = vmatprep.mubr.f32.mxu0 0.0
        %v1204 = vand.u32 %v997, 4294901760
        %v1205 = vsub.f32 %v997, %v1204
        %v1206 = vand.u32 %v1205, 4294901760
        %v1207 = vsub.f32 %v1205, %v1206
        %v1208 = vand.u32 %v1207, 4294901760
        %1209 = vmatmul.mubr.f32.gmra.mxu0 %v1208
        %v1210 = vpop.f32.mrf.mxu0
        %v1211 = vadd.f32 0.0, %v1210
        %v1212 = vpop.f32.mrf.mxu0
        %1213 = vmatprep.mubr.f32.mxu0 0.0
        %v1214 = vand.u32 %v1000, 4294901760
        %v1215 = vsub.f32 %v1000, %v1214
        %v1216 = vand.u32 %v1215, 4294901760
        %v1217 = vsub.f32 %v1215, %v1216
        %v1218 = vand.u32 %v1217, 4294901760
        %1219 = vmatmul.mubr.f32.gmra.mxu0 %v1218
        %v1220 = vpop.f32.mrf.mxu0
        %v1221 = vadd.f32 0.0, %v1220
        %v1222 = vpop.f32.mrf.mxu0
        %1223 = vmatprep.mubr.f32.mxu0 0.0
        %v1224 = vand.u32 %v1003, 4294901760
        %v1225 = vsub.f32 %v1003, %v1224
        %v1226 = vand.u32 %v1225, 4294901760
        %v1227 = vsub.f32 %v1225, %v1226
        %v1228 = vand.u32 %v1227, 4294901760
        %1229 = vmatmul.mubr.f32.gmra.mxu0 %v1228
        %v1230 = vpop.f32.mrf.mxu0
        %v1231 = vadd.f32 0.0, %v1230
        %v1232 = vpop.f32.mrf.mxu0
        %1233 = vmatprep.mubr.f32.mxu0 0.0
        %v1234 = vand.u32 %v1006, 4294901760
        %v1235 = vsub.f32 %v1006, %v1234
        %v1236 = vand.u32 %v1235, 4294901760
        %v1237 = vsub.f32 %v1235, %v1236
        %v1238 = vand.u32 %v1237, 4294901760
        %1239 = vmatmul.mubr.f32.gmra.mxu0 %v1238
        %v1240 = vpop.f32.mrf.mxu0
        %v1241 = vadd.f32 0.0, %v1240
        %v1242 = vpop.f32.mrf.mxu0
        %1243 = vmatprep.mubr.f32.mxu0 0.0
        %v1244 = vand.u32 %v1009, 4294901760
        %v1245 = vsub.f32 %v1009, %v1244
        %v1246 = vand.u32 %v1245, 4294901760
        %v1247 = vsub.f32 %v1245, %v1246
        %v1248 = vand.u32 %v1247, 4294901760
        %1249 = vmatmul.mubr.f32.gmra.mxu0 %v1248
        %v1250 = vpop.f32.mrf.mxu0
        %v1251 = vadd.f32 0.0, %v1250
        %v1252 = vpop.f32.mrf.mxu0
        %1253 = vmatprep.mubr.f32.mxu0 0.0
        %v1254 = vand.u32 %v1012, 4294901760
        %v1255 = vsub.f32 %v1012, %v1254
        %v1256 = vand.u32 %v1255, 4294901760
        %v1257 = vsub.f32 %v1255, %v1256
        %v1258 = vand.u32 %v1257, 4294901760
        %1259 = vmatmul.mubr.f32.gmra.mxu0 %v1258
        %v1260 = vpop.f32.mrf.mxu0
        %v1261 = vadd.f32 0.0, %v1260
        %v1262 = vpop.f32.mrf.mxu0
        %1263 = vmatprep.mubr.f32.mxu0 0.0
        %v1264 = vand.u32 %v1015, 4294901760
        %v1265 = vsub.f32 %v1015, %v1264
        %v1266 = vand.u32 %v1265, 4294901760
        %v1267 = vsub.f32 %v1265, %v1266
        %v1268 = vand.u32 %v1267, 4294901760
        %1269 = vmatmul.mubr.f32.gmra.mxu0 %v1268
        %v1270 = vpop.f32.mrf.mxu0
        %v1271 = vadd.f32 0.0, %v1270
        %v1272 = vpop.f32.mrf.mxu0
        %1273 = vmatprep.mubr.f32.mxu0 0.0
        %v1274 = vand.u32 %v1018, 4294901760
        %v1275 = vsub.f32 %v1018, %v1274
        %v1276 = vand.u32 %v1275, 4294901760
        %v1277 = vsub.f32 %v1275, %v1276
        %v1278 = vand.u32 %v1277, 4294901760
        %1279 = vmatmul.mubr.f32.gmra.mxu0 %v1278
        %v1280 = vpop.f32.mrf.mxu0
        %v1281 = vadd.f32 0.0, %v1280
        %v1282 = vpop.f32.mrf.mxu0
        %1283 = vmatprep.mubr.f32.mxu0 0.0
        %v1284 = vand.u32 %v1021, 4294901760
        %v1285 = vsub.f32 %v1021, %v1284
        %v1286 = vand.u32 %v1285, 4294901760
        %v1287 = vsub.f32 %v1285, %v1286
        %v1288 = vand.u32 %v1287, 4294901760
        %1289 = vmatmul.mubr.f32.gmra.mxu0 %v1288
        %v1290 = vpop.f32.mrf.mxu0
        %v1291 = vadd.f32 0.0, %v1290
        %v1292 = vpop.f32.mrf.mxu0
        %1293 = vmatprep.mubr.f32.mxu0 0.0
        %v1294 = vand.u32 %v1024, 4294901760
        %v1295 = vsub.f32 %v1024, %v1294
        %v1296 = vand.u32 %v1295, 4294901760
        %v1297 = vsub.f32 %v1295, %v1296
        %v1298 = vand.u32 %v1297, 4294901760
        %1299 = vmatmul.mubr.f32.gmra.mxu0 %v1298
        %v1300 = vpop.f32.mrf.mxu0
        %v1301 = vadd.f32 0.0, %v1300
        %v1302 = vpop.f32.mrf.mxu0
        %1303 = vmatprep.mubr.f32.mxu0 0.0
        %v1304 = vand.u32 %v1027, 4294901760
        %v1305 = vsub.f32 %v1027, %v1304
        %v1306 = vand.u32 %v1305, 4294901760
        %v1307 = vsub.f32 %v1305, %v1306
        %v1308 = vand.u32 %v1307, 4294901760
        %1309 = vmatmul.mubr.f32.gmra.mxu0 %v1308
        %v1310 = vpop.f32.mrf.mxu0
        %v1311 = vadd.f32 0.0, %v1310
        %v1312 = vpop.f32.mrf.mxu0
        %1313 = vmatprep.mubr.f32.mxu0 0.0
        %v1314 = vand.u32 %v1030, 4294901760
        %v1315 = vsub.f32 %v1030, %v1314
        %v1316 = vand.u32 %v1315, 4294901760
        %v1317 = vsub.f32 %v1315, %v1316
        %v1318 = vand.u32 %v1317, 4294901760
        %1319 = vmatmul.mubr.f32.gmra.mxu0 %v1318
        %v1320 = vpop.f32.mrf.mxu0
        %v1321 = vadd.f32 0.0, %v1320
        %v1322 = vpop.f32.mrf.mxu0
        %1323 = vmatprep.mubr.f32.mxu0 0.0
        %v1324 = vand.u32 %v1033, 4294901760
        %v1325 = vsub.f32 %v1033, %v1324
        %v1326 = vand.u32 %v1325, 4294901760
        %v1327 = vsub.f32 %v1325, %v1326
        %v1328 = vand.u32 %v1327, 4294901760
        %1329 = vmatmul.mubr.f32.gmra.mxu0 %v1328
        %v1330 = vpop.f32.mrf.mxu0
        %v1331 = vadd.f32 0.0, %v1330
        %v1332 = vpop.f32.mrf.mxu0
        %1333 = vmatprep.mubr.f32.mxu0 0.0
        %v1334 = vand.u32 %v1036, 4294901760
        %v1335 = vsub.f32 %v1036, %v1334
        %v1336 = vand.u32 %v1335, 4294901760
        %v1337 = vsub.f32 %v1335, %v1336
        %v1338 = vand.u32 %v1337, 4294901760
        %1339 = vmatmul.mubr.f32.gmra.mxu0 %v1338
        %v1340 = vpop.f32.mrf.mxu0
        %v1341 = vadd.f32 0.0, %v1340
        %v1342 = vpop.f32.mrf.mxu0
        %1343 = vmatprep.mubr.f32.mxu0 0.0
        %v1344 = vand.u32 %v1039, 4294901760
        %v1345 = vsub.f32 %v1039, %v1344
        %v1346 = vand.u32 %v1345, 4294901760
        %v1347 = vsub.f32 %v1345, %v1346
        %v1348 = vand.u32 %v1347, 4294901760
        %1349 = vmatmul.mubr.f32.gmra.mxu0 %v1348
        %v1350 = vpop.f32.mrf.mxu0
        %v1351 = vadd.f32 0.0, %v1350
        %v1352 = vpop.f32.mrf.mxu0
        %1353 = vmatprep.mubr.f32.mxu0 0.0
        %v1354 = vand.u32 %v1042, 4294901760
        %v1355 = vsub.f32 %v1042, %v1354
        %v1356 = vand.u32 %v1355, 4294901760
        %v1357 = vsub.f32 %v1355, %v1356
        %v1358 = vand.u32 %v1357, 4294901760
        %1359 = vmatmul.mubr.f32.gmra.mxu0 %v1358
        %v1360 = vpop.f32.mrf.mxu0
        %v1361 = vadd.f32 0.0, %v1360
        %v1362 = vpop.f32.mrf.mxu0
        %1363 = vmatprep.mubr.f32.mxu0 0.0
        %v1364 = vand.u32 %v1045, 4294901760
        %v1365 = vsub.f32 %v1045, %v1364
        %v1366 = vand.u32 %v1365, 4294901760
        %v1367 = vsub.f32 %v1365, %v1366
        %v1368 = vand.u32 %v1367, 4294901760
        %1369 = vmatmul.mubr.f32.gmra.mxu0 %v1368
        %v1370 = vpop.f32.mrf.mxu0
        %v1371 = vadd.f32 0.0, %v1370
        %v1372 = vpop.f32.mrf.mxu0
        %1373 = vmatprep.mubr.f32.mxu0 0.0
        %v1374 = vand.u32 %v1048, 4294901760
        %v1375 = vsub.f32 %v1048, %v1374
        %v1376 = vand.u32 %v1375, 4294901760
        %v1377 = vsub.f32 %v1375, %v1376
        %v1378 = vand.u32 %v1377, 4294901760
        %1379 = vmatmul.mubr.f32.gmra.mxu0 %v1378
        %v1380 = vpop.f32.mrf.mxu0
        %v1381 = vadd.f32 0.0, %v1380
        %v1382 = vpop.f32.mrf.mxu0
        %1383 = vmatprep.mubr.f32.mxu0 0.0
        %v1384 = vand.u32 %v1051, 4294901760
        %v1385 = vsub.f32 %v1051, %v1384
        %v1386 = vand.u32 %v1385, 4294901760
        %v1387 = vsub.f32 %v1385, %v1386
        %v1388 = vand.u32 %v1387, 4294901760
        %1389 = vmatmul.mubr.f32.gmra.mxu0 %v1388
        %v1390 = vpop.f32.mrf.mxu0
        %v1391 = vadd.f32 0.0, %v1390
        %v1392 = vpop.f32.mrf.mxu0
        %1393 = vmatprep.mubr.f32.mxu0 0.0
        %v1394 = vand.u32 %v1054, 4294901760
        %v1395 = vsub.f32 %v1054, %v1394
        %v1396 = vand.u32 %v1395, 4294901760
        %v1397 = vsub.f32 %v1395, %v1396
        %v1398 = vand.u32 %v1397, 4294901760
        %1399 = vmatmul.mubr.f32.gmra.mxu0 %v1398
        %v1400 = vpop.f32.mrf.mxu0
        %v1401 = vadd.f32 0.0, %v1400
        %v1402 = vpop.f32.mrf.mxu0
        %1403 = vmatprep.mubr.f32.mxu0 0.0
        %v1404 = vand.u32 %v1057, 4294901760
        %v1405 = vsub.f32 %v1057, %v1404
        %v1406 = vand.u32 %v1405, 4294901760
        %v1407 = vsub.f32 %v1405, %v1406
        %v1408 = vand.u32 %v1407, 4294901760
        %1409 = vmatmul.mubr.f32.gmra.mxu0 %v1408
        %v1410 = vpop.f32.mrf.mxu0
        %v1411 = vadd.f32 0.0, %v1410
        %v1412 = vpop.f32.mrf.mxu0
        %1413 = vmatprep.mubr.f32.mxu0 0.0
        %v1414 = vand.u32 %v1060, 4294901760
        %v1415 = vsub.f32 %v1060, %v1414
        %v1416 = vand.u32 %v1415, 4294901760
        %v1417 = vsub.f32 %v1415, %v1416
        %v1418 = vand.u32 %v1417, 4294901760
        %1419 = vmatmul.mubr.f32.gmra.mxu0 %v1418
        %v1420 = vpop.f32.mrf.mxu0
        %v1421 = vadd.f32 0.0, %v1420
        %v1422 = vpop.f32.mrf.mxu0
        %1423 = vmatprep.mubr.f32.mxu0 0.0
        %v1424 = vand.u32 %v1063, 4294901760
        %v1425 = vsub.f32 %v1063, %v1424
        %v1426 = vand.u32 %v1425, 4294901760
        %v1427 = vsub.f32 %v1425, %v1426
        %v1428 = vand.u32 %v1427, 4294901760
        %1429 = vmatmul.mubr.f32.gmra.mxu0 %v1428
        %v1430 = vpop.f32.mrf.mxu0
        %v1431 = vadd.f32 0.0, %v1430
        %v1432 = vpop.f32.mrf.mxu0
        %1433 = vmatprep.mubr.f32.mxu0 0.0
        %v1434 = vand.u32 %v1066, 4294901760
        %v1435 = vsub.f32 %v1066, %v1434
        %v1436 = vand.u32 %v1435, 4294901760
        %v1437 = vsub.f32 %v1435, %v1436
        %v1438 = vand.u32 %v1437, 4294901760
        %1439 = vmatmul.mubr.f32.gmra.mxu0 %v1438
        %v1440 = vpop.f32.mrf.mxu0
        %v1441 = vadd.f32 0.0, %v1440
        %v1442 = vpop.f32.mrf.mxu0
        %1443 = vmatprep.mubr.f32.mxu0 0.0
        %v1444 = vand.u32 %v1069, 4294901760
        %v1445 = vsub.f32 %v1069, %v1444
        %v1446 = vand.u32 %v1445, 4294901760
        %v1447 = vsub.f32 %v1445, %v1446
        %v1448 = vand.u32 %v1447, 4294901760
        %1449 = vmatmul.mubr.f32.gmra.mxu0 %v1448
        %v1450 = vpop.f32.mrf.mxu0
        %v1451 = vadd.f32 0.0, %v1450
        %v1452 = vpop.f32.mrf.mxu0
        %1453 = vmatprep.mubr.f32.mxu0 0.0
        %v1454 = vand.u32 %v1072, 4294901760
        %v1455 = vsub.f32 %v1072, %v1454
        %v1456 = vand.u32 %v1455, 4294901760
        %v1457 = vsub.f32 %v1455, %v1456
        %v1458 = vand.u32 %v1457, 4294901760
        %1459 = vmatmul.mubr.f32.gmra.mxu0 %v1458
        %v1460 = vpop.f32.mrf.mxu0
        %v1461 = vadd.f32 0.0, %v1460
        %v1462 = vpop.f32.mrf.mxu0
        %1463 = vdwg.mxu0
        %1464 = vmatprep.subr.mxu0 0.0
        %1465 = vmatpush1.msra.mxu0 0.0
        %1466 = vmatprep.subr.mxu0 0.0
        %1467 = vmatpush1.msra.mxu0 0.0
        %1468 = vmatprep.subr.mxu0 0.0
        %1469 = vmatpush1.msra.mxu0 0.0
        %1470 = vmatprep.subr.mxu0 0.0
        %1471 = vmatpush1.msra.mxu0 0.0
        %1472 = vmatprep.subr.mxu0 0.0
        %1473 = vmatpush1.msra.mxu0 0.0
        %1474 = vmatprep.subr.mxu0 0.0
        %1475 = vmatpush1.msra.mxu0 0.0
        %1476 = vmatprep.subr.mxu0 0.0
        %1477 = vmatpush1.msra.mxu0 0.0
        %1478 = vmatprep.subr.mxu0 0.0
        %1479 = vmatpush1.msra.mxu0 0.0
        %1480 = vmatprep.subr.mxu0 0.0
        %1481 = vmatpush1.msra.mxu0 0.0
        %1482 = vmatprep.subr.mxu0 0.0
        %1483 = vmatpush1.msra.mxu0 0.0
        %1484 = vmatprep.subr.mxu0 0.0
        %1485 = vmatpush1.msra.mxu0 0.0
        %1486 = vmatprep.subr.mxu0 0.0
        %1487 = vmatpush1.msra.mxu0 0.0
        %1488 = vmatprep.subr.mxu0 0.0
        %1489 = vmatpush1.msra.mxu0 0.0
        %1490 = vmatprep.subr.mxu0 0.0
        %1491 = vmatpush1.msra.mxu0 0.0
        %1492 = vmatprep.subr.mxu0 0.0
        %1493 = vmatpush1.msra.mxu0 0.0
        %1494 = vmatprep.subr.mxu0 0.0
        %v1495 = vand.u32 %v1076, 4294901760
        %v1496 = vsub.f32 %v1076, %v1495
        %v1497 = vand.u32 %v1496, 4294901760
        %v1498 = vsub.f32 %v1496, %v1497
        %v1499 = vand.u32 %v1498, 4294901760
        %1500 = vmatpush1.msra.mxu0 %v1499
        %1501 = vmatprep.subr.mxu0 0.0
        %1502 = vmatpush2.msra.mxu0 0.0
        %1503 = vmatprep.subr.mxu0 0.0
        %1504 = vmatpush2.msra.mxu0 0.0
        %1505 = vmatprep.subr.mxu0 0.0
        %1506 = vmatpush2.msra.mxu0 0.0
        %1507 = vmatprep.subr.mxu0 0.0
        %1508 = vmatpush2.msra.mxu0 0.0
        %1509 = vmatprep.subr.mxu0 0.0
        %1510 = vmatpush2.msra.mxu0 0.0
        %1511 = vmatprep.subr.mxu0 0.0
        %1512 = vmatpush2.msra.mxu0 0.0
        %1513 = vmatprep.subr.mxu0 0.0
        %1514 = vmatpush2.msra.mxu0 0.0
        %1515 = vmatprep.subr.mxu0 0.0
        %1516 = vmatpush2.msra.mxu0 0.0
        %1517 = vmatprep.subr.mxu0 0.0
        %1518 = vmatpush2.msra.mxu0 0.0
        %1519 = vmatprep.subr.mxu0 0.0
        %1520 = vmatpush2.msra.mxu0 0.0
        %1521 = vmatprep.subr.mxu0 0.0
        %1522 = vmatpush2.msra.mxu0 0.0
        %1523 = vmatprep.subr.mxu0 0.0
        %1524 = vmatpush2.msra.mxu0 0.0
        %1525 = vmatprep.subr.mxu0 0.0
        %1526 = vmatpush2.msra.mxu0 0.0
        %1527 = vmatprep.subr.mxu0 0.0
        %1528 = vmatpush2.msra.mxu0 0.0
        %1529 = vmatprep.subr.mxu0 0.0
        %1530 = vmatpush2.msra.mxu0 0.0
        %1531 = vmatprep.subr.mxu0 0.0
        %1532 = vmatpush2.msra.mxu0 0.0
        %1533 = vmatprep.mubr.f32.mxu0 0.0
        %v1534 = vand.u32 %v979, 4294901760
        %1535 = vmatmul.mubr.f32.gmra.mxu0 %v1534
        %v1536 = vpop.f32.mrf.mxu0
        %v1537 = vadd.f32 %v1151, %v1536
        %v1538 = vpop.f32.mrf.mxu0
        %1539 = vmatprep.mubr.f32.mxu0 0.0
        %v1540 = vand.u32 %v982, 4294901760
        %1541 = vmatmul.mubr.f32.gmra.mxu0 %v1540
        %v1542 = vpop.f32.mrf.mxu0
        %v1543 = vadd.f32 %v1161, %v1542
        %v1544 = vpop.f32.mrf.mxu0
        %1545 = vmatprep.mubr.f32.mxu0 0.0
        %v1546 = vand.u32 %v985, 4294901760
        %1547 = vmatmul.mubr.f32.gmra.mxu0 %v1546
        %v1548 = vpop.f32.mrf.mxu0
        %v1549 = vadd.f32 %v1171, %v1548
        %v1550 = vpop.f32.mrf.mxu0
        %1551 = vmatprep.mubr.f32.mxu0 0.0
        %v1552 = vand.u32 %v988, 4294901760
        %1553 = vmatmul.mubr.f32.gmra.mxu0 %v1552
        %v1554 = vpop.f32.mrf.mxu0
        %v1555 = vadd.f32 %v1181, %v1554
        %v1556 = vpop.f32.mrf.mxu0
        %1557 = vmatprep.mubr.f32.mxu0 0.0
        %v1558 = vand.u32 %v991, 4294901760
        %1559 = vmatmul.mubr.f32.gmra.mxu0 %v1558
        %v1560 = vpop.f32.mrf.mxu0
        %v1561 = vadd.f32 %v1191, %v1560
        %v1562 = vpop.f32.mrf.mxu0
        %1563 = vmatprep.mubr.f32.mxu0 0.0
        %v1564 = vand.u32 %v994, 4294901760
        %1565 = vmatmul.mubr.f32.gmra.mxu0 %v1564
        %v1566 = vpop.f32.mrf.mxu0
        %v1567 = vadd.f32 %v1201, %v1566
        %v1568 = vpop.f32.mrf.mxu0
        %1569 = vmatprep.mubr.f32.mxu0 0.0
        %v1570 = vand.u32 %v997, 4294901760
        %1571 = vmatmul.mubr.f32.gmra.mxu0 %v1570
        %v1572 = vpop.f32.mrf.mxu0
        %v1573 = vadd.f32 %v1211, %v1572
        %v1574 = vpop.f32.mrf.mxu0
        %1575 = vmatprep.mubr.f32.mxu0 0.0
        %v1576 = vand.u32 %v1000, 4294901760
        %1577 = vmatmul.mubr.f32.gmra.mxu0 %v1576
        %v1578 = vpop.f32.mrf.mxu0
        %v1579 = vadd.f32 %v1221, %v1578
        %v1580 = vpop.f32.mrf.mxu0
        %1581 = vmatprep.mubr.f32.mxu0 0.0
        %v1582 = vand.u32 %v1003, 4294901760
        %1583 = vmatmul.mubr.f32.gmra.mxu0 %v1582
        %v1584 = vpop.f32.mrf.mxu0
        %v1585 = vadd.f32 %v1231, %v1584
        %v1586 = vpop.f32.mrf.mxu0
        %1587 = vmatprep.mubr.f32.mxu0 0.0
        %v1588 = vand.u32 %v1006, 4294901760
        %1589 = vmatmul.mubr.f32.gmra.mxu0 %v1588
        %v1590 = vpop.f32.mrf.mxu0
        %v1591 = vadd.f32 %v1241, %v1590
        %v1592 = vpop.f32.mrf.mxu0
        %1593 = vmatprep.mubr.f32.mxu0 0.0
        %v1594 = vand.u32 %v1009, 4294901760
        %1595 = vmatmul.mubr.f32.gmra.mxu0 %v1594
        %v1596 = vpop.f32.mrf.mxu0
        %v1597 = vadd.f32 %v1251, %v1596
        %v1598 = vpop.f32.mrf.mxu0
        %1599 = vmatprep.mubr.f32.mxu0 0.0
        %v1600 = vand.u32 %v1012, 4294901760
        %1601 = vmatmul.mubr.f32.gmra.mxu0 %v1600
        %v1602 = vpop.f32.mrf.mxu0
        %v1603 = vadd.f32 %v1261, %v1602
        %v1604 = vpop.f32.mrf.mxu0
        %1605 = vmatprep.mubr.f32.mxu0 0.0
        %v1606 = vand.u32 %v1015, 4294901760
        %1607 = vmatmul.mubr.f32.gmra.mxu0 %v1606
        %v1608 = vpop.f32.mrf.mxu0
        %v1609 = vadd.f32 %v1271, %v1608
        %v1610 = vpop.f32.mrf.mxu0
        %1611 = vmatprep.mubr.f32.mxu0 0.0
        %v1612 = vand.u32 %v1018, 4294901760
        %1613 = vmatmul.mubr.f32.gmra.mxu0 %v1612
        %v1614 = vpop.f32.mrf.mxu0
        %v1615 = vadd.f32 %v1281, %v1614
        %v1616 = vpop.f32.mrf.mxu0
        %1617 = vmatprep.mubr.f32.mxu0 0.0
        %v1618 = vand.u32 %v1021, 4294901760
        %1619 = vmatmul.mubr.f32.gmra.mxu0 %v1618
        %v1620 = vpop.f32.mrf.mxu0
        %v1621 = vadd.f32 %v1291, %v1620
        %v1622 = vpop.f32.mrf.mxu0
        %1623 = vmatprep.mubr.f32.mxu0 0.0
        %v1624 = vand.u32 %v1024, 4294901760
        %1625 = vmatmul.mubr.f32.gmra.mxu0 %v1624
        %v1626 = vpop.f32.mrf.mxu0
        %v1627 = vadd.f32 %v1301, %v1626
        %v1628 = vpop.f32.mrf.mxu0
        %1629 = vmatprep.mubr.f32.mxu0 0.0
        %v1630 = vand.u32 %v1027, 4294901760
        %1631 = vmatmul.mubr.f32.gmra.mxu0 %v1630
        %v1632 = vpop.f32.mrf.mxu0
        %v1633 = vadd.f32 %v1311, %v1632
        %v1634 = vpop.f32.mrf.mxu0
        %1635 = vmatprep.mubr.f32.mxu0 0.0
        %v1636 = vand.u32 %v1030, 4294901760
        %1637 = vmatmul.mubr.f32.gmra.mxu0 %v1636
        %v1638 = vpop.f32.mrf.mxu0
        %v1639 = vadd.f32 %v1321, %v1638
        %v1640 = vpop.f32.mrf.mxu0
        %1641 = vmatprep.mubr.f32.mxu0 0.0
        %v1642 = vand.u32 %v1033, 4294901760
        %1643 = vmatmul.mubr.f32.gmra.mxu0 %v1642
        %v1644 = vpop.f32.mrf.mxu0
        %v1645 = vadd.f32 %v1331, %v1644
        %v1646 = vpop.f32.mrf.mxu0
        %1647 = vmatprep.mubr.f32.mxu0 0.0
        %v1648 = vand.u32 %v1036, 4294901760
        %1649 = vmatmul.mubr.f32.gmra.mxu0 %v1648
        %v1650 = vpop.f32.mrf.mxu0
        %v1651 = vadd.f32 %v1341, %v1650
        %v1652 = vpop.f32.mrf.mxu0
        %1653 = vmatprep.mubr.f32.mxu0 0.0
        %v1654 = vand.u32 %v1039, 4294901760
        %1655 = vmatmul.mubr.f32.gmra.mxu0 %v1654
        %v1656 = vpop.f32.mrf.mxu0
        %v1657 = vadd.f32 %v1351, %v1656
        %v1658 = vpop.f32.mrf.mxu0
        %1659 = vmatprep.mubr.f32.mxu0 0.0
        %v1660 = vand.u32 %v1042, 4294901760
        %1661 = vmatmul.mubr.f32.gmra.mxu0 %v1660
        %v1662 = vpop.f32.mrf.mxu0
        %v1663 = vadd.f32 %v1361, %v1662
        %v1664 = vpop.f32.mrf.mxu0
        %1665 = vmatprep.mubr.f32.mxu0 0.0
        %v1666 = vand.u32 %v1045, 4294901760
        %1667 = vmatmul.mubr.f32.gmra.mxu0 %v1666
        %v1668 = vpop.f32.mrf.mxu0
        %v1669 = vadd.f32 %v1371, %v1668
        %v1670 = vpop.f32.mrf.mxu0
        %1671 = vmatprep.mubr.f32.mxu0 0.0
        %v1672 = vand.u32 %v1048, 4294901760
        %1673 = vmatmul.mubr.f32.gmra.mxu0 %v1672
        %v1674 = vpop.f32.mrf.mxu0
        %v1675 = vadd.f32 %v1381, %v1674
        %v1676 = vpop.f32.mrf.mxu0
        %1677 = vmatprep.mubr.f32.mxu0 0.0
        %v1678 = vand.u32 %v1051, 4294901760
        %1679 = vmatmul.mubr.f32.gmra.mxu0 %v1678
        %v1680 = vpop.f32.mrf.mxu0
        %v1681 = vadd.f32 %v1391, %v1680
        %v1682 = vpop.f32.mrf.mxu0
        %1683 = vmatprep.mubr.f32.mxu0 0.0
        %v1684 = vand.u32 %v1054, 4294901760
        %1685 = vmatmul.mubr.f32.gmra.mxu0 %v1684
        %v1686 = vpop.f32.mrf.mxu0
        %v1687 = vadd.f32 %v1401, %v1686
        %v1688 = vpop.f32.mrf.mxu0
        %1689 = vmatprep.mubr.f32.mxu0 0.0
        %v1690 = vand.u32 %v1057, 4294901760
        %1691 = vmatmul.mubr.f32.gmra.mxu0 %v1690
        %v1692 = vpop.f32.mrf.mxu0
        %v1693 = vadd.f32 %v1411, %v1692
        %v1694 = vpop.f32.mrf.mxu0
        %1695 = vmatprep.mubr.f32.mxu0 0.0
        %v1696 = vand.u32 %v1060, 4294901760
        %1697 = vmatmul.mubr.f32.gmra.mxu0 %v1696
        %v1698 = vpop.f32.mrf.mxu0
        %v1699 = vadd.f32 %v1421, %v1698
        %v1700 = vpop.f32.mrf.mxu0
        %1701 = vmatprep.mubr.f32.mxu0 0.0
        %v1702 = vand.u32 %v1063, 4294901760
        %1703 = vmatmul.mubr.f32.gmra.mxu0 %v1702
        %v1704 = vpop.f32.mrf.mxu0
        %v1705 = vadd.f32 %v1431, %v1704
        %v1706 = vpop.f32.mrf.mxu0
        %1707 = vmatprep.mubr.f32.mxu0 0.0
        %v1708 = vand.u32 %v1066, 4294901760
        %1709 = vmatmul.mubr.f32.gmra.mxu0 %v1708
        %v1710 = vpop.f32.mrf.mxu0
        %v1711 = vadd.f32 %v1441, %v1710
        %v1712 = vpop.f32.mrf.mxu0
        %1713 = vmatprep.mubr.f32.mxu0 0.0
        %v1714 = vand.u32 %v1069, 4294901760
        %1715 = vmatmul.mubr.f32.gmra.mxu0 %v1714
        %v1716 = vpop.f32.mrf.mxu0
        %v1717 = vadd.f32 %v1451, %v1716
        %v1718 = vpop.f32.mrf.mxu0
        %1719 = vmatprep.mubr.f32.mxu0 0.0
        %v1720 = vand.u32 %v1072, 4294901760
        %1721 = vmatmul.mubr.f32.gmra.mxu0 %v1720
        %v1722 = vpop.f32.mrf.mxu0
        %v1723 = vadd.f32 %v1461, %v1722
        %v1724 = vpop.f32.mrf.mxu0
        %1725 = vdwg.mxu0
        %1726 = vmatprep.subr.mxu0 0.0
        %1727 = vmatpush1.msra.mxu0 0.0
        %1728 = vmatprep.subr.mxu0 0.0
        %1729 = vmatpush1.msra.mxu0 0.0
        %1730 = vmatprep.subr.mxu0 0.0
        %1731 = vmatpush1.msra.mxu0 0.0
        %1732 = vmatprep.subr.mxu0 0.0
        %1733 = vmatpush1.msra.mxu0 0.0
        %1734 = vmatprep.subr.mxu0 0.0
        %1735 = vmatpush1.msra.mxu0 0.0
        %1736 = vmatprep.subr.mxu0 0.0
        %1737 = vmatpush1.msra.mxu0 0.0
        %1738 = vmatprep.subr.mxu0 0.0
        %1739 = vmatpush1.msra.mxu0 0.0
        %1740 = vmatprep.subr.mxu0 0.0
        %1741 = vmatpush1.msra.mxu0 0.0
        %1742 = vmatprep.subr.mxu0 0.0
        %1743 = vmatpush1.msra.mxu0 0.0
        %1744 = vmatprep.subr.mxu0 0.0
        %1745 = vmatpush1.msra.mxu0 0.0
        %1746 = vmatprep.subr.mxu0 0.0
        %1747 = vmatpush1.msra.mxu0 0.0
        %1748 = vmatprep.subr.mxu0 0.0
        %1749 = vmatpush1.msra.mxu0 0.0
        %1750 = vmatprep.subr.mxu0 0.0
        %1751 = vmatpush1.msra.mxu0 0.0
        %1752 = vmatprep.subr.mxu0 0.0
        %1753 = vmatpush1.msra.mxu0 0.0
        %1754 = vmatprep.subr.mxu0 0.0
        %1755 = vmatpush1.msra.mxu0 0.0
        %1756 = vmatprep.subr.mxu0 0.0
        %v1757 = vand.u32 %v1076, 4294901760
        %v1758 = vsub.f32 %v1076, %v1757
        %1759 = vmatpush1.msra.mxu0 %v1758
        %1760 = vmatprep.subr.mxu0 0.0
        %1761 = vmatpush2.msra.mxu0 0.0
        %1762 = vmatprep.subr.mxu0 0.0
        %1763 = vmatpush2.msra.mxu0 0.0
        %1764 = vmatprep.subr.mxu0 0.0
        %1765 = vmatpush2.msra.mxu0 0.0
        %1766 = vmatprep.subr.mxu0 0.0
        %1767 = vmatpush2.msra.mxu0 0.0
        %1768 = vmatprep.subr.mxu0 0.0
        %1769 = vmatpush2.msra.mxu0 0.0
        %1770 = vmatprep.subr.mxu0 0.0
        %1771 = vmatpush2.msra.mxu0 0.0
        %1772 = vmatprep.subr.mxu0 0.0
        %1773 = vmatpush2.msra.mxu0 0.0
        %1774 = vmatprep.subr.mxu0 0.0
        %1775 = vmatpush2.msra.mxu0 0.0
        %1776 = vmatprep.subr.mxu0 0.0
        %1777 = vmatpush2.msra.mxu0 0.0
        %1778 = vmatprep.subr.mxu0 0.0
        %1779 = vmatpush2.msra.mxu0 0.0
        %1780 = vmatprep.subr.mxu0 0.0
        %1781 = vmatpush2.msra.mxu0 0.0
        %1782 = vmatprep.subr.mxu0 0.0
        %1783 = vmatpush2.msra.mxu0 0.0
        %1784 = vmatprep.subr.mxu0 0.0
        %1785 = vmatpush2.msra.mxu0 0.0
        %1786 = vmatprep.subr.mxu0 0.0
        %1787 = vmatpush2.msra.mxu0 0.0
        %1788 = vmatprep.subr.mxu0 0.0
        %1789 = vmatpush2.msra.mxu0 0.0
        %1790 = vmatprep.subr.mxu0 0.0
        %1791 = vmatpush2.msra.mxu0 0.0
        %1792 = vmatprep.mubr.f32.mxu0 0.0
        %v1793 = vand.u32 %v979, 4294901760
        %v1794 = vsub.f32 %v979, %v1793
        %1795 = vmatmul.mubr.f32.gmra.mxu0 %v1794
        %v1796 = vpop.f32.mrf.mxu0
        %v1797 = vadd.f32 %v1537, %v1796
        %v1798 = vpop.f32.mrf.mxu0
        %1799 = vmatprep.mubr.f32.mxu0 0.0
        %v1800 = vand.u32 %v982, 4294901760
        %v1801 = vsub.f32 %v982, %v1800
        %1802 = vmatmul.mubr.f32.gmra.mxu0 %v1801
        %v1803 = vpop.f32.mrf.mxu0
        %v1804 = vadd.f32 %v1543, %v1803
        %v1805 = vpop.f32.mrf.mxu0
        %1806 = vmatprep.mubr.f32.mxu0 0.0
        %v1807 = vand.u32 %v985, 4294901760
        %v1808 = vsub.f32 %v985, %v1807
        %1809 = vmatmul.mubr.f32.gmra.mxu0 %v1808
        %v1810 = vpop.f32.mrf.mxu0
        %v1811 = vadd.f32 %v1549, %v1810
        %v1812 = vpop.f32.mrf.mxu0
        %1813 = vmatprep.mubr.f32.mxu0 0.0
        %v1814 = vand.u32 %v988, 4294901760
        %v1815 = vsub.f32 %v988, %v1814
        %1816 = vmatmul.mubr.f32.gmra.mxu0 %v1815
        %v1817 = vpop.f32.mrf.mxu0
        %v1818 = vadd.f32 %v1555, %v1817
        %v1819 = vpop.f32.mrf.mxu0
        %1820 = vmatprep.mubr.f32.mxu0 0.0
        %v1821 = vand.u32 %v991, 4294901760
        %v1822 = vsub.f32 %v991, %v1821
        %1823 = vmatmul.mubr.f32.gmra.mxu0 %v1822
        %v1824 = vpop.f32.mrf.mxu0
        %v1825 = vadd.f32 %v1561, %v1824
        %v1826 = vpop.f32.mrf.mxu0
        %1827 = vmatprep.mubr.f32.mxu0 0.0
        %v1828 = vand.u32 %v994, 4294901760
        %v1829 = vsub.f32 %v994, %v1828
        %1830 = vmatmul.mubr.f32.gmra.mxu0 %v1829
        %v1831 = vpop.f32.mrf.mxu0
        %v1832 = vadd.f32 %v1567, %v1831
        %v1833 = vpop.f32.mrf.mxu0
        %1834 = vmatprep.mubr.f32.mxu0 0.0
        %v1835 = vand.u32 %v997, 4294901760
        %v1836 = vsub.f32 %v997, %v1835
        %1837 = vmatmul.mubr.f32.gmra.mxu0 %v1836
        %v1838 = vpop.f32.mrf.mxu0
        %v1839 = vadd.f32 %v1573, %v1838
        %v1840 = vpop.f32.mrf.mxu0
        %1841 = vmatprep.mubr.f32.mxu0 0.0
        %v1842 = vand.u32 %v1000, 4294901760
        %v1843 = vsub.f32 %v1000, %v1842
        %1844 = vmatmul.mubr.f32.gmra.mxu0 %v1843
        %v1845 = vpop.f32.mrf.mxu0
        %v1846 = vadd.f32 %v1579, %v1845
        %v1847 = vpop.f32.mrf.mxu0
        %1848 = vmatprep.mubr.f32.mxu0 0.0
        %v1849 = vand.u32 %v1003, 4294901760
        %v1850 = vsub.f32 %v1003, %v1849
        %1851 = vmatmul.mubr.f32.gmra.mxu0 %v1850
        %v1852 = vpop.f32.mrf.mxu0
        %v1853 = vadd.f32 %v1585, %v1852
        %v1854 = vpop.f32.mrf.mxu0
        %1855 = vmatprep.mubr.f32.mxu0 0.0
        %v1856 = vand.u32 %v1006, 4294901760
        %v1857 = vsub.f32 %v1006, %v1856
        %1858 = vmatmul.mubr.f32.gmra.mxu0 %v1857
        %v1859 = vpop.f32.mrf.mxu0
        %v1860 = vadd.f32 %v1591, %v1859
        %v1861 = vpop.f32.mrf.mxu0
        %1862 = vmatprep.mubr.f32.mxu0 0.0
        %v1863 = vand.u32 %v1009, 4294901760
        %v1864 = vsub.f32 %v1009, %v1863
        %1865 = vmatmul.mubr.f32.gmra.mxu0 %v1864
        %v1866 = vpop.f32.mrf.mxu0
        %v1867 = vadd.f32 %v1597, %v1866
        %v1868 = vpop.f32.mrf.mxu0
        %1869 = vmatprep.mubr.f32.mxu0 0.0
        %v1870 = vand.u32 %v1012, 4294901760
        %v1871 = vsub.f32 %v1012, %v1870
        %1872 = vmatmul.mubr.f32.gmra.mxu0 %v1871
        %v1873 = vpop.f32.mrf.mxu0
        %v1874 = vadd.f32 %v1603, %v1873
        %v1875 = vpop.f32.mrf.mxu0
        %1876 = vmatprep.mubr.f32.mxu0 0.0
        %v1877 = vand.u32 %v1015, 4294901760
        %v1878 = vsub.f32 %v1015, %v1877
        %1879 = vmatmul.mubr.f32.gmra.mxu0 %v1878
        %v1880 = vpop.f32.mrf.mxu0
        %v1881 = vadd.f32 %v1609, %v1880
        %v1882 = vpop.f32.mrf.mxu0
        %1883 = vmatprep.mubr.f32.mxu0 0.0
        %v1884 = vand.u32 %v1018, 4294901760
        %v1885 = vsub.f32 %v1018, %v1884
        %1886 = vmatmul.mubr.f32.gmra.mxu0 %v1885
        %v1887 = vpop.f32.mrf.mxu0
        %v1888 = vadd.f32 %v1615, %v1887
        %v1889 = vpop.f32.mrf.mxu0
        %1890 = vmatprep.mubr.f32.mxu0 0.0
        %v1891 = vand.u32 %v1021, 4294901760
        %v1892 = vsub.f32 %v1021, %v1891
        %1893 = vmatmul.mubr.f32.gmra.mxu0 %v1892
        %v1894 = vpop.f32.mrf.mxu0
        %v1895 = vadd.f32 %v1621, %v1894
        %v1896 = vpop.f32.mrf.mxu0
        %1897 = vmatprep.mubr.f32.mxu0 0.0
        %v1898 = vand.u32 %v1024, 4294901760
        %v1899 = vsub.f32 %v1024, %v1898
        %1900 = vmatmul.mubr.f32.gmra.mxu0 %v1899
        %v1901 = vpop.f32.mrf.mxu0
        %v1902 = vadd.f32 %v1627, %v1901
        %v1903 = vpop.f32.mrf.mxu0
        %1904 = vmatprep.mubr.f32.mxu0 0.0
        %v1905 = vand.u32 %v1027, 4294901760
        %v1906 = vsub.f32 %v1027, %v1905
        %1907 = vmatmul.mubr.f32.gmra.mxu0 %v1906
        %v1908 = vpop.f32.mrf.mxu0
        %v1909 = vadd.f32 %v1633, %v1908
        %v1910 = vpop.f32.mrf.mxu0
        %1911 = vmatprep.mubr.f32.mxu0 0.0
        %v1912 = vand.u32 %v1030, 4294901760
        %v1913 = vsub.f32 %v1030, %v1912
        %1914 = vmatmul.mubr.f32.gmra.mxu0 %v1913
        %v1915 = vpop.f32.mrf.mxu0
        %v1916 = vadd.f32 %v1639, %v1915
        %v1917 = vpop.f32.mrf.mxu0
        %1918 = vmatprep.mubr.f32.mxu0 0.0
        %v1919 = vand.u32 %v1033, 4294901760
        %v1920 = vsub.f32 %v1033, %v1919
        %1921 = vmatmul.mubr.f32.gmra.mxu0 %v1920
        %v1922 = vpop.f32.mrf.mxu0
        %v1923 = vadd.f32 %v1645, %v1922
        %v1924 = vpop.f32.mrf.mxu0
        %1925 = vmatprep.mubr.f32.mxu0 0.0
        %v1926 = vand.u32 %v1036, 4294901760
        %v1927 = vsub.f32 %v1036, %v1926
        %1928 = vmatmul.mubr.f32.gmra.mxu0 %v1927
        %v1929 = vpop.f32.mrf.mxu0
        %v1930 = vadd.f32 %v1651, %v1929
        %v1931 = vpop.f32.mrf.mxu0
        %1932 = vmatprep.mubr.f32.mxu0 0.0
        %v1933 = vand.u32 %v1039, 4294901760
        %v1934 = vsub.f32 %v1039, %v1933
        %1935 = vmatmul.mubr.f32.gmra.mxu0 %v1934
        %v1936 = vpop.f32.mrf.mxu0
        %v1937 = vadd.f32 %v1657, %v1936
        %v1938 = vpop.f32.mrf.mxu0
        %1939 = vmatprep.mubr.f32.mxu0 0.0
        %v1940 = vand.u32 %v1042, 4294901760
        %v1941 = vsub.f32 %v1042, %v1940
        %1942 = vmatmul.mubr.f32.gmra.mxu0 %v1941
        %v1943 = vpop.f32.mrf.mxu0
        %v1944 = vadd.f32 %v1663, %v1943
        %v1945 = vpop.f32.mrf.mxu0
        %1946 = vmatprep.mubr.f32.mxu0 0.0
        %v1947 = vand.u32 %v1045, 4294901760
        %v1948 = vsub.f32 %v1045, %v1947
        %1949 = vmatmul.mubr.f32.gmra.mxu0 %v1948
        %v1950 = vpop.f32.mrf.mxu0
        %v1951 = vadd.f32 %v1669, %v1950
        %v1952 = vpop.f32.mrf.mxu0
        %1953 = vmatprep.mubr.f32.mxu0 0.0
        %v1954 = vand.u32 %v1048, 4294901760
        %v1955 = vsub.f32 %v1048, %v1954
        %1956 = vmatmul.mubr.f32.gmra.mxu0 %v1955
        %v1957 = vpop.f32.mrf.mxu0
        %v1958 = vadd.f32 %v1675, %v1957
        %v1959 = vpop.f32.mrf.mxu0
        %1960 = vmatprep.mubr.f32.mxu0 0.0
        %v1961 = vand.u32 %v1051, 4294901760
        %v1962 = vsub.f32 %v1051, %v1961
        %1963 = vmatmul.mubr.f32.gmra.mxu0 %v1962
        %v1964 = vpop.f32.mrf.mxu0
        %v1965 = vadd.f32 %v1681, %v1964
        %v1966 = vpop.f32.mrf.mxu0
        %1967 = vmatprep.mubr.f32.mxu0 0.0
        %v1968 = vand.u32 %v1054, 4294901760
        %v1969 = vsub.f32 %v1054, %v1968
        %1970 = vmatmul.mubr.f32.gmra.mxu0 %v1969
        %v1971 = vpop.f32.mrf.mxu0
        %v1972 = vadd.f32 %v1687, %v1971
        %v1973 = vpop.f32.mrf.mxu0
        %1974 = vmatprep.mubr.f32.mxu0 0.0
        %v1975 = vand.u32 %v1057, 4294901760
        %v1976 = vsub.f32 %v1057, %v1975
        %1977 = vmatmul.mubr.f32.gmra.mxu0 %v1976
        %v1978 = vpop.f32.mrf.mxu0
        %v1979 = vadd.f32 %v1693, %v1978
        %v1980 = vpop.f32.mrf.mxu0
        %1981 = vmatprep.mubr.f32.mxu0 0.0
        %v1982 = vand.u32 %v1060, 4294901760
        %v1983 = vsub.f32 %v1060, %v1982
        %1984 = vmatmul.mubr.f32.gmra.mxu0 %v1983
        %v1985 = vpop.f32.mrf.mxu0
        %v1986 = vadd.f32 %v1699, %v1985
        %v1987 = vpop.f32.mrf.mxu0
        %1988 = vmatprep.mubr.f32.mxu0 0.0
        %v1989 = vand.u32 %v1063, 4294901760
        %v1990 = vsub.f32 %v1063, %v1989
        %1991 = vmatmul.mubr.f32.gmra.mxu0 %v1990
        %v1992 = vpop.f32.mrf.mxu0
        %v1993 = vadd.f32 %v1705, %v1992
        %v1994 = vpop.f32.mrf.mxu0
        %1995 = vmatprep.mubr.f32.mxu0 0.0
        %v1996 = vand.u32 %v1066, 4294901760
        %v1997 = vsub.f32 %v1066, %v1996
        %1998 = vmatmul.mubr.f32.gmra.mxu0 %v1997
        %v1999 = vpop.f32.mrf.mxu0
        %v2000 = vadd.f32 %v1711, %v1999
        %v2001 = vpop.f32.mrf.mxu0
        %2002 = vmatprep.mubr.f32.mxu0 0.0
        %v2003 = vand.u32 %v1069, 4294901760
        %v2004 = vsub.f32 %v1069, %v2003
        %2005 = vmatmul.mubr.f32.gmra.mxu0 %v2004
        %v2006 = vpop.f32.mrf.mxu0
        %v2007 = vadd.f32 %v1717, %v2006
        %v2008 = vpop.f32.mrf.mxu0
        %2009 = vmatprep.mubr.f32.mxu0 0.0
        %v2010 = vand.u32 %v1072, 4294901760
        %v2011 = vsub.f32 %v1072, %v2010
        %2012 = vmatmul.mubr.f32.gmra.mxu0 %v2011
        %v2013 = vpop.f32.mrf.mxu0
        %v2014 = vadd.f32 %v1723, %v2013
        %v2015 = vpop.f32.mrf.mxu0
        %2016 = vdwg.mxu0
        %2017 = vmatprep.subr.mxu0 0.0
        %2018 = vmatpush1.msra.mxu0 0.0
        %2019 = vmatprep.subr.mxu0 0.0
        %2020 = vmatpush1.msra.mxu0 0.0
        %2021 = vmatprep.subr.mxu0 0.0
        %2022 = vmatpush1.msra.mxu0 0.0
        %2023 = vmatprep.subr.mxu0 0.0
        %2024 = vmatpush1.msra.mxu0 0.0
        %2025 = vmatprep.subr.mxu0 0.0
        %2026 = vmatpush1.msra.mxu0 0.0
        %2027 = vmatprep.subr.mxu0 0.0
        %2028 = vmatpush1.msra.mxu0 0.0
        %2029 = vmatprep.subr.mxu0 0.0
        %2030 = vmatpush1.msra.mxu0 0.0
        %2031 = vmatprep.subr.mxu0 0.0
        %2032 = vmatpush1.msra.mxu0 0.0
        %2033 = vmatprep.subr.mxu0 0.0
        %2034 = vmatpush1.msra.mxu0 0.0
        %2035 = vmatprep.subr.mxu0 0.0
        %2036 = vmatpush1.msra.mxu0 0.0
        %2037 = vmatprep.subr.mxu0 0.0
        %2038 = vmatpush1.msra.mxu0 0.0
        %2039 = vmatprep.subr.mxu0 0.0
        %2040 = vmatpush1.msra.mxu0 0.0
        %2041 = vmatprep.subr.mxu0 0.0
        %2042 = vmatpush1.msra.mxu0 0.0
        %2043 = vmatprep.subr.mxu0 0.0
        %2044 = vmatpush1.msra.mxu0 0.0
        %2045 = vmatprep.subr.mxu0 0.0
        %2046 = vmatpush1.msra.mxu0 0.0
        %2047 = vmatprep.subr.mxu0 0.0
        %v2048 = vand.u32 %v1076, 4294901760
        %2049 = vmatpush1.msra.mxu0 %v2048
        %2050 = vmatprep.subr.mxu0 0.0
        %2051 = vmatpush2.msra.mxu0 0.0
        %2052 = vmatprep.subr.mxu0 0.0
        %2053 = vmatpush2.msra.mxu0 0.0
        %2054 = vmatprep.subr.mxu0 0.0
        %2055 = vmatpush2.msra.mxu0 0.0
        %2056 = vmatprep.subr.mxu0 0.0
        %2057 = vmatpush2.msra.mxu0 0.0
        %2058 = vmatprep.subr.mxu0 0.0
        %2059 = vmatpush2.msra.mxu0 0.0
        %2060 = vmatprep.subr.mxu0 0.0
        %2061 = vmatpush2.msra.mxu0 0.0
        %2062 = vmatprep.subr.mxu0 0.0
        %2063 = vmatpush2.msra.mxu0 0.0
        %2064 = vmatprep.subr.mxu0 0.0
        %2065 = vmatpush2.msra.mxu0 0.0
        %2066 = vmatprep.subr.mxu0 0.0
        %2067 = vmatpush2.msra.mxu0 0.0
        %2068 = vmatprep.subr.mxu0 0.0
        %2069 = vmatpush2.msra.mxu0 0.0
        %2070 = vmatprep.subr.mxu0 0.0
        %2071 = vmatpush2.msra.mxu0 0.0
        %2072 = vmatprep.subr.mxu0 0.0
        %2073 = vmatpush2.msra.mxu0 0.0
        %2074 = vmatprep.subr.mxu0 0.0
        %2075 = vmatpush2.msra.mxu0 0.0
        %2076 = vmatprep.subr.mxu0 0.0
        %2077 = vmatpush2.msra.mxu0 0.0
        %2078 = vmatprep.subr.mxu0 0.0
        %2079 = vmatpush2.msra.mxu0 0.0
        %2080 = vmatprep.subr.mxu0 0.0
        %2081 = vmatpush2.msra.mxu0 0.0
        %2082 = vmatprep.mubr.f32.mxu0 0.0
        %v2083 = vand.u32 %v979, 4294901760
        %v2084 = vsub.f32 %v979, %v2083
        %v2085 = vand.u32 %v2084, 4294901760
        %2086 = vmatmul.mubr.f32.gmra.mxu0 %v2085
        %v2087 = vpop.f32.mrf.mxu0
        %v2088 = vadd.f32 %v1797, %v2087
        %v2089 = vpop.f32.mrf.mxu0
        %2090 = vmatprep.mubr.f32.mxu0 0.0
        %v2091 = vand.u32 %v982, 4294901760
        %v2092 = vsub.f32 %v982, %v2091
        %v2093 = vand.u32 %v2092, 4294901760
        %2094 = vmatmul.mubr.f32.gmra.mxu0 %v2093
        %v2095 = vpop.f32.mrf.mxu0
        %v2096 = vadd.f32 %v1804, %v2095
        %v2097 = vpop.f32.mrf.mxu0
        %2098 = vmatprep.mubr.f32.mxu0 0.0
        %v2099 = vand.u32 %v985, 4294901760
        %v2100 = vsub.f32 %v985, %v2099
        %v2101 = vand.u32 %v2100, 4294901760
        %2102 = vmatmul.mubr.f32.gmra.mxu0 %v2101
        %v2103 = vpop.f32.mrf.mxu0
        %v2104 = vadd.f32 %v1811, %v2103
        %v2105 = vpop.f32.mrf.mxu0
        %2106 = vmatprep.mubr.f32.mxu0 0.0
        %v2107 = vand.u32 %v988, 4294901760
        %v2108 = vsub.f32 %v988, %v2107
        %v2109 = vand.u32 %v2108, 4294901760
        %2110 = vmatmul.mubr.f32.gmra.mxu0 %v2109
        %v2111 = vpop.f32.mrf.mxu0
        %v2112 = vadd.f32 %v1818, %v2111
        %v2113 = vpop.f32.mrf.mxu0
        %2114 = vmatprep.mubr.f32.mxu0 0.0
        %v2115 = vand.u32 %v991, 4294901760
        %v2116 = vsub.f32 %v991, %v2115
        %v2117 = vand.u32 %v2116, 4294901760
        %2118 = vmatmul.mubr.f32.gmra.mxu0 %v2117
        %v2119 = vpop.f32.mrf.mxu0
        %v2120 = vadd.f32 %v1825, %v2119
        %v2121 = vpop.f32.mrf.mxu0
        %2122 = vmatprep.mubr.f32.mxu0 0.0
        %v2123 = vand.u32 %v994, 4294901760
        %v2124 = vsub.f32 %v994, %v2123
        %v2125 = vand.u32 %v2124, 4294901760
        %2126 = vmatmul.mubr.f32.gmra.mxu0 %v2125
        %v2127 = vpop.f32.mrf.mxu0
        %v2128 = vadd.f32 %v1832, %v2127
        %v2129 = vpop.f32.mrf.mxu0
        %2130 = vmatprep.mubr.f32.mxu0 0.0
        %v2131 = vand.u32 %v997, 4294901760
        %v2132 = vsub.f32 %v997, %v2131
        %v2133 = vand.u32 %v2132, 4294901760
        %2134 = vmatmul.mubr.f32.gmra.mxu0 %v2133
        %v2135 = vpop.f32.mrf.mxu0
        %v2136 = vadd.f32 %v1839, %v2135
        %v2137 = vpop.f32.mrf.mxu0
        %2138 = vmatprep.mubr.f32.mxu0 0.0
        %v2139 = vand.u32 %v1000, 4294901760
        %v2140 = vsub.f32 %v1000, %v2139
        %v2141 = vand.u32 %v2140, 4294901760
        %2142 = vmatmul.mubr.f32.gmra.mxu0 %v2141
        %v2143 = vpop.f32.mrf.mxu0
        %v2144 = vadd.f32 %v1846, %v2143
        %v2145 = vpop.f32.mrf.mxu0
        %2146 = vmatprep.mubr.f32.mxu0 0.0
        %v2147 = vand.u32 %v1003, 4294901760
        %v2148 = vsub.f32 %v1003, %v2147
        %v2149 = vand.u32 %v2148, 4294901760
        %2150 = vmatmul.mubr.f32.gmra.mxu0 %v2149
        %v2151 = vpop.f32.mrf.mxu0
        %v2152 = vadd.f32 %v1853, %v2151
        %v2153 = vpop.f32.mrf.mxu0
        %2154 = vmatprep.mubr.f32.mxu0 0.0
        %v2155 = vand.u32 %v1006, 4294901760
        %v2156 = vsub.f32 %v1006, %v2155
        %v2157 = vand.u32 %v2156, 4294901760
        %2158 = vmatmul.mubr.f32.gmra.mxu0 %v2157
        %v2159 = vpop.f32.mrf.mxu0
        %v2160 = vadd.f32 %v1860, %v2159
        %v2161 = vpop.f32.mrf.mxu0
        %2162 = vmatprep.mubr.f32.mxu0 0.0
        %v2163 = vand.u32 %v1009, 4294901760
        %v2164 = vsub.f32 %v1009, %v2163
        %v2165 = vand.u32 %v2164, 4294901760
        %2166 = vmatmul.mubr.f32.gmra.mxu0 %v2165
        %v2167 = vpop.f32.mrf.mxu0
        %v2168 = vadd.f32 %v1867, %v2167
        %v2169 = vpop.f32.mrf.mxu0
        %2170 = vmatprep.mubr.f32.mxu0 0.0
        %v2171 = vand.u32 %v1012, 4294901760
        %v2172 = vsub.f32 %v1012, %v2171
        %v2173 = vand.u32 %v2172, 4294901760
        %2174 = vmatmul.mubr.f32.gmra.mxu0 %v2173
        %v2175 = vpop.f32.mrf.mxu0
        %v2176 = vadd.f32 %v1874, %v2175
        %v2177 = vpop.f32.mrf.mxu0
        %2178 = vmatprep.mubr.f32.mxu0 0.0
        %v2179 = vand.u32 %v1015, 4294901760
        %v2180 = vsub.f32 %v1015, %v2179
        %v2181 = vand.u32 %v2180, 4294901760
        %2182 = vmatmul.mubr.f32.gmra.mxu0 %v2181
        %v2183 = vpop.f32.mrf.mxu0
        %v2184 = vadd.f32 %v1881, %v2183
        %v2185 = vpop.f32.mrf.mxu0
        %2186 = vmatprep.mubr.f32.mxu0 0.0
        %v2187 = vand.u32 %v1018, 4294901760
        %v2188 = vsub.f32 %v1018, %v2187
        %v2189 = vand.u32 %v2188, 4294901760
        %2190 = vmatmul.mubr.f32.gmra.mxu0 %v2189
        %v2191 = vpop.f32.mrf.mxu0
        %v2192 = vadd.f32 %v1888, %v2191
        %v2193 = vpop.f32.mrf.mxu0
        %2194 = vmatprep.mubr.f32.mxu0 0.0
        %v2195 = vand.u32 %v1021, 4294901760
        %v2196 = vsub.f32 %v1021, %v2195
        %v2197 = vand.u32 %v2196, 4294901760
        %2198 = vmatmul.mubr.f32.gmra.mxu0 %v2197
        %v2199 = vpop.f32.mrf.mxu0
        %v2200 = vadd.f32 %v1895, %v2199
        %v2201 = vpop.f32.mrf.mxu0
        %2202 = vmatprep.mubr.f32.mxu0 0.0
        %v2203 = vand.u32 %v1024, 4294901760
        %v2204 = vsub.f32 %v1024, %v2203
        %v2205 = vand.u32 %v2204, 4294901760
        %2206 = vmatmul.mubr.f32.gmra.mxu0 %v2205
        %v2207 = vpop.f32.mrf.mxu0
        %v2208 = vadd.f32 %v1902, %v2207
        %v2209 = vpop.f32.mrf.mxu0
        %2210 = vmatprep.mubr.f32.mxu0 0.0
        %v2211 = vand.u32 %v1027, 4294901760
        %v2212 = vsub.f32 %v1027, %v2211
        %v2213 = vand.u32 %v2212, 4294901760
        %2214 = vmatmul.mubr.f32.gmra.mxu0 %v2213
        %v2215 = vpop.f32.mrf.mxu0
        %v2216 = vadd.f32 %v1909, %v2215
        %v2217 = vpop.f32.mrf.mxu0
        %2218 = vmatprep.mubr.f32.mxu0 0.0
        %v2219 = vand.u32 %v1030, 4294901760
        %v2220 = vsub.f32 %v1030, %v2219
        %v2221 = vand.u32 %v2220, 4294901760
        %2222 = vmatmul.mubr.f32.gmra.mxu0 %v2221
        %v2223 = vpop.f32.mrf.mxu0
        %v2224 = vadd.f32 %v1916, %v2223
        %v2225 = vpop.f32.mrf.mxu0
        %2226 = vmatprep.mubr.f32.mxu0 0.0
        %v2227 = vand.u32 %v1033, 4294901760
        %v2228 = vsub.f32 %v1033, %v2227
        %v2229 = vand.u32 %v2228, 4294901760
        %2230 = vmatmul.mubr.f32.gmra.mxu0 %v2229
        %v2231 = vpop.f32.mrf.mxu0
        %v2232 = vadd.f32 %v1923, %v2231
        %v2233 = vpop.f32.mrf.mxu0
        %2234 = vmatprep.mubr.f32.mxu0 0.0
        %v2235 = vand.u32 %v1036, 4294901760
        %v2236 = vsub.f32 %v1036, %v2235
        %v2237 = vand.u32 %v2236, 4294901760
        %2238 = vmatmul.mubr.f32.gmra.mxu0 %v2237
        %v2239 = vpop.f32.mrf.mxu0
        %v2240 = vadd.f32 %v1930, %v2239
        %v2241 = vpop.f32.mrf.mxu0
        %2242 = vmatprep.mubr.f32.mxu0 0.0
        %v2243 = vand.u32 %v1039, 4294901760
        %v2244 = vsub.f32 %v1039, %v2243
        %v2245 = vand.u32 %v2244, 4294901760
        %2246 = vmatmul.mubr.f32.gmra.mxu0 %v2245
        %v2247 = vpop.f32.mrf.mxu0
        %v2248 = vadd.f32 %v1937, %v2247
        %v2249 = vpop.f32.mrf.mxu0
        %2250 = vmatprep.mubr.f32.mxu0 0.0
        %v2251 = vand.u32 %v1042, 4294901760
        %v2252 = vsub.f32 %v1042, %v2251
        %v2253 = vand.u32 %v2252, 4294901760
        %2254 = vmatmul.mubr.f32.gmra.mxu0 %v2253
        %v2255 = vpop.f32.mrf.mxu0
        %v2256 = vadd.f32 %v1944, %v2255
        %v2257 = vpop.f32.mrf.mxu0
        %2258 = vmatprep.mubr.f32.mxu0 0.0
        %v2259 = vand.u32 %v1045, 4294901760
        %v2260 = vsub.f32 %v1045, %v2259
        %v2261 = vand.u32 %v2260, 4294901760
        %2262 = vmatmul.mubr.f32.gmra.mxu0 %v2261
        %v2263 = vpop.f32.mrf.mxu0
        %v2264 = vadd.f32 %v1951, %v2263
        %v2265 = vpop.f32.mrf.mxu0
        %2266 = vmatprep.mubr.f32.mxu0 0.0
        %v2267 = vand.u32 %v1048, 4294901760
        %v2268 = vsub.f32 %v1048, %v2267
        %v2269 = vand.u32 %v2268, 4294901760
        %2270 = vmatmul.mubr.f32.gmra.mxu0 %v2269
        %v2271 = vpop.f32.mrf.mxu0
        %v2272 = vadd.f32 %v1958, %v2271
        %v2273 = vpop.f32.mrf.mxu0
        %2274 = vmatprep.mubr.f32.mxu0 0.0
        %v2275 = vand.u32 %v1051, 4294901760
        %v2276 = vsub.f32 %v1051, %v2275
        %v2277 = vand.u32 %v2276, 4294901760
        %2278 = vmatmul.mubr.f32.gmra.mxu0 %v2277
        %v2279 = vpop.f32.mrf.mxu0
        %v2280 = vadd.f32 %v1965, %v2279
        %v2281 = vpop.f32.mrf.mxu0
        %2282 = vmatprep.mubr.f32.mxu0 0.0
        %v2283 = vand.u32 %v1054, 4294901760
        %v2284 = vsub.f32 %v1054, %v2283
        %v2285 = vand.u32 %v2284, 4294901760
        %2286 = vmatmul.mubr.f32.gmra.mxu0 %v2285
        %v2287 = vpop.f32.mrf.mxu0
        %v2288 = vadd.f32 %v1972, %v2287
        %v2289 = vpop.f32.mrf.mxu0
        %2290 = vmatprep.mubr.f32.mxu0 0.0
        %v2291 = vand.u32 %v1057, 4294901760
        %v2292 = vsub.f32 %v1057, %v2291
        %v2293 = vand.u32 %v2292, 4294901760
        %2294 = vmatmul.mubr.f32.gmra.mxu0 %v2293
        %v2295 = vpop.f32.mrf.mxu0
        %v2296 = vadd.f32 %v1979, %v2295
        %v2297 = vpop.f32.mrf.mxu0
        %2298 = vmatprep.mubr.f32.mxu0 0.0
        %v2299 = vand.u32 %v1060, 4294901760
        %v2300 = vsub.f32 %v1060, %v2299
        %v2301 = vand.u32 %v2300, 4294901760
        %2302 = vmatmul.mubr.f32.gmra.mxu0 %v2301
        %v2303 = vpop.f32.mrf.mxu0
        %v2304 = vadd.f32 %v1986, %v2303
        %v2305 = vpop.f32.mrf.mxu0
        %2306 = vmatprep.mubr.f32.mxu0 0.0
        %v2307 = vand.u32 %v1063, 4294901760
        %v2308 = vsub.f32 %v1063, %v2307
        %v2309 = vand.u32 %v2308, 4294901760
        %2310 = vmatmul.mubr.f32.gmra.mxu0 %v2309
        %v2311 = vpop.f32.mrf.mxu0
        %v2312 = vadd.f32 %v1993, %v2311
        %v2313 = vpop.f32.mrf.mxu0
        %2314 = vmatprep.mubr.f32.mxu0 0.0
        %v2315 = vand.u32 %v1066, 4294901760
        %v2316 = vsub.f32 %v1066, %v2315
        %v2317 = vand.u32 %v2316, 4294901760
        %2318 = vmatmul.mubr.f32.gmra.mxu0 %v2317
        %v2319 = vpop.f32.mrf.mxu0
        %v2320 = vadd.f32 %v2000, %v2319
        %v2321 = vpop.f32.mrf.mxu0
        %2322 = vmatprep.mubr.f32.mxu0 0.0
        %v2323 = vand.u32 %v1069, 4294901760
        %v2324 = vsub.f32 %v1069, %v2323
        %v2325 = vand.u32 %v2324, 4294901760
        %2326 = vmatmul.mubr.f32.gmra.mxu0 %v2325
        %v2327 = vpop.f32.mrf.mxu0
        %v2328 = vadd.f32 %v2007, %v2327
        %v2329 = vpop.f32.mrf.mxu0
        %2330 = vmatprep.mubr.f32.mxu0 0.0
        %v2331 = vand.u32 %v1072, 4294901760
        %v2332 = vsub.f32 %v1072, %v2331
        %v2333 = vand.u32 %v2332, 4294901760
        %2334 = vmatmul.mubr.f32.gmra.mxu0 %v2333
        %v2335 = vpop.f32.mrf.mxu0
        %v2336 = vadd.f32 %v2014, %v2335
        %v2337 = vpop.f32.mrf.mxu0
        %2338 = vdwg.mxu0
        %2339 = vmatprep.subr.mxu0 0.0
        %2340 = vmatpush1.msra.mxu0 0.0
        %2341 = vmatprep.subr.mxu0 0.0
        %2342 = vmatpush1.msra.mxu0 0.0
        %2343 = vmatprep.subr.mxu0 0.0
        %2344 = vmatpush1.msra.mxu0 0.0
        %2345 = vmatprep.subr.mxu0 0.0
        %2346 = vmatpush1.msra.mxu0 0.0
        %2347 = vmatprep.subr.mxu0 0.0
        %2348 = vmatpush1.msra.mxu0 0.0
        %2349 = vmatprep.subr.mxu0 0.0
        %2350 = vmatpush1.msra.mxu0 0.0
        %2351 = vmatprep.subr.mxu0 0.0
        %2352 = vmatpush1.msra.mxu0 0.0
        %2353 = vmatprep.subr.mxu0 0.0
        %2354 = vmatpush1.msra.mxu0 0.0
        %2355 = vmatprep.subr.mxu0 0.0
        %2356 = vmatpush1.msra.mxu0 0.0
        %2357 = vmatprep.subr.mxu0 0.0
        %2358 = vmatpush1.msra.mxu0 0.0
        %2359 = vmatprep.subr.mxu0 0.0
        %2360 = vmatpush1.msra.mxu0 0.0
        %2361 = vmatprep.subr.mxu0 0.0
        %2362 = vmatpush1.msra.mxu0 0.0
        %2363 = vmatprep.subr.mxu0 0.0
        %2364 = vmatpush1.msra.mxu0 0.0
        %2365 = vmatprep.subr.mxu0 0.0
        %2366 = vmatpush1.msra.mxu0 0.0
        %2367 = vmatprep.subr.mxu0 0.0
        %2368 = vmatpush1.msra.mxu0 0.0
        %2369 = vmatprep.subr.mxu0 0.0
        %v2370 = vand.u32 %v1076, 4294901760
        %v2371 = vsub.f32 %v1076, %v2370
        %v2372 = vand.u32 %v2371, 4294901760
        %2373 = vmatpush1.msra.mxu0 %v2372
        %2374 = vmatprep.subr.mxu0 0.0
        %2375 = vmatpush2.msra.mxu0 0.0
        %2376 = vmatprep.subr.mxu0 0.0
        %2377 = vmatpush2.msra.mxu0 0.0
        %2378 = vmatprep.subr.mxu0 0.0
        %2379 = vmatpush2.msra.mxu0 0.0
        %2380 = vmatprep.subr.mxu0 0.0
        %2381 = vmatpush2.msra.mxu0 0.0
        %2382 = vmatprep.subr.mxu0 0.0
        %2383 = vmatpush2.msra.mxu0 0.0
        %2384 = vmatprep.subr.mxu0 0.0
        %2385 = vmatpush2.msra.mxu0 0.0
        %2386 = vmatprep.subr.mxu0 0.0
        %2387 = vmatpush2.msra.mxu0 0.0
        %2388 = vmatprep.subr.mxu0 0.0
        %2389 = vmatpush2.msra.mxu0 0.0
        %2390 = vmatprep.subr.mxu0 0.0
        %2391 = vmatpush2.msra.mxu0 0.0
        %2392 = vmatprep.subr.mxu0 0.0
        %2393 = vmatpush2.msra.mxu0 0.0
        %2394 = vmatprep.subr.mxu0 0.0
        %2395 = vmatpush2.msra.mxu0 0.0
        %2396 = vmatprep.subr.mxu0 0.0
        %2397 = vmatpush2.msra.mxu0 0.0
        %2398 = vmatprep.subr.mxu0 0.0
        %2399 = vmatpush2.msra.mxu0 0.0
        %2400 = vmatprep.subr.mxu0 0.0
        %2401 = vmatpush2.msra.mxu0 0.0
        %2402 = vmatprep.subr.mxu0 0.0
        %2403 = vmatpush2.msra.mxu0 0.0
        %2404 = vmatprep.subr.mxu0 0.0
        %2405 = vmatpush2.msra.mxu0 0.0
        %2406 = vmatprep.mubr.f32.mxu0 0.0
        %v2407 = vand.u32 %v979, 4294901760
        %2408 = vmatmul.mubr.f32.gmra.mxu0 %v2407
        %v2409 = vpop.f32.mrf.mxu0
        %v2410 = vadd.f32 %v2088, %v2409
        %v2411 = vpop.f32.mrf.mxu0
        %2412 = vmatprep.mubr.f32.mxu0 0.0
        %v2413 = vand.u32 %v982, 4294901760
        %2414 = vmatmul.mubr.f32.gmra.mxu0 %v2413
        %v2415 = vpop.f32.mrf.mxu0
        %v2416 = vadd.f32 %v2096, %v2415
        %v2417 = vpop.f32.mrf.mxu0
        %2418 = vmatprep.mubr.f32.mxu0 0.0
        %v2419 = vand.u32 %v985, 4294901760
        %2420 = vmatmul.mubr.f32.gmra.mxu0 %v2419
        %v2421 = vpop.f32.mrf.mxu0
        %v2422 = vadd.f32 %v2104, %v2421
        %v2423 = vpop.f32.mrf.mxu0
        %2424 = vmatprep.mubr.f32.mxu0 0.0
        %v2425 = vand.u32 %v988, 4294901760
        %2426 = vmatmul.mubr.f32.gmra.mxu0 %v2425
        %v2427 = vpop.f32.mrf.mxu0
        %v2428 = vadd.f32 %v2112, %v2427
        %v2429 = vpop.f32.mrf.mxu0
        %2430 = vmatprep.mubr.f32.mxu0 0.0
        %v2431 = vand.u32 %v991, 4294901760
        %2432 = vmatmul.mubr.f32.gmra.mxu0 %v2431
        %v2433 = vpop.f32.mrf.mxu0
        %v2434 = vadd.f32 %v2120, %v2433
        %v2435 = vpop.f32.mrf.mxu0
        %2436 = vmatprep.mubr.f32.mxu0 0.0
        %v2437 = vand.u32 %v994, 4294901760
        %2438 = vmatmul.mubr.f32.gmra.mxu0 %v2437
        %v2439 = vpop.f32.mrf.mxu0
        %v2440 = vadd.f32 %v2128, %v2439
        %v2441 = vpop.f32.mrf.mxu0
        %2442 = vmatprep.mubr.f32.mxu0 0.0
        %v2443 = vand.u32 %v997, 4294901760
        %2444 = vmatmul.mubr.f32.gmra.mxu0 %v2443
        %v2445 = vpop.f32.mrf.mxu0
        %v2446 = vadd.f32 %v2136, %v2445
        %v2447 = vpop.f32.mrf.mxu0
        %2448 = vmatprep.mubr.f32.mxu0 0.0
        %v2449 = vand.u32 %v1000, 4294901760
        %2450 = vmatmul.mubr.f32.gmra.mxu0 %v2449
        %v2451 = vpop.f32.mrf.mxu0
        %v2452 = vadd.f32 %v2144, %v2451
        %v2453 = vpop.f32.mrf.mxu0
        %2454 = vmatprep.mubr.f32.mxu0 0.0
        %v2455 = vand.u32 %v1003, 4294901760
        %2456 = vmatmul.mubr.f32.gmra.mxu0 %v2455
        %v2457 = vpop.f32.mrf.mxu0
        %v2458 = vadd.f32 %v2152, %v2457
        %v2459 = vpop.f32.mrf.mxu0
        %2460 = vmatprep.mubr.f32.mxu0 0.0
        %v2461 = vand.u32 %v1006, 4294901760
        %2462 = vmatmul.mubr.f32.gmra.mxu0 %v2461
        %v2463 = vpop.f32.mrf.mxu0
        %v2464 = vadd.f32 %v2160, %v2463
        %v2465 = vpop.f32.mrf.mxu0
        %2466 = vmatprep.mubr.f32.mxu0 0.0
        %v2467 = vand.u32 %v1009, 4294901760
        %2468 = vmatmul.mubr.f32.gmra.mxu0 %v2467
        %v2469 = vpop.f32.mrf.mxu0
        %v2470 = vadd.f32 %v2168, %v2469
        %v2471 = vpop.f32.mrf.mxu0
        %2472 = vmatprep.mubr.f32.mxu0 0.0
        %v2473 = vand.u32 %v1012, 4294901760
        %2474 = vmatmul.mubr.f32.gmra.mxu0 %v2473
        %v2475 = vpop.f32.mrf.mxu0
        %v2476 = vadd.f32 %v2176, %v2475
        %v2477 = vpop.f32.mrf.mxu0
        %2478 = vmatprep.mubr.f32.mxu0 0.0
        %v2479 = vand.u32 %v1015, 4294901760
        %2480 = vmatmul.mubr.f32.gmra.mxu0 %v2479
        %v2481 = vpop.f32.mrf.mxu0
        %v2482 = vadd.f32 %v2184, %v2481
        %v2483 = vpop.f32.mrf.mxu0
        %2484 = vmatprep.mubr.f32.mxu0 0.0
        %v2485 = vand.u32 %v1018, 4294901760
        %2486 = vmatmul.mubr.f32.gmra.mxu0 %v2485
        %v2487 = vpop.f32.mrf.mxu0
        %v2488 = vadd.f32 %v2192, %v2487
        %v2489 = vpop.f32.mrf.mxu0
        %2490 = vmatprep.mubr.f32.mxu0 0.0
        %v2491 = vand.u32 %v1021, 4294901760
        %2492 = vmatmul.mubr.f32.gmra.mxu0 %v2491
        %v2493 = vpop.f32.mrf.mxu0
        %v2494 = vadd.f32 %v2200, %v2493
        %v2495 = vpop.f32.mrf.mxu0
        %2496 = vmatprep.mubr.f32.mxu0 0.0
        %v2497 = vand.u32 %v1024, 4294901760
        %2498 = vmatmul.mubr.f32.gmra.mxu0 %v2497
        %v2499 = vpop.f32.mrf.mxu0
        %v2500 = vadd.f32 %v2208, %v2499
        %v2501 = vpop.f32.mrf.mxu0
        %2502 = vmatprep.mubr.f32.mxu0 0.0
        %v2503 = vand.u32 %v1027, 4294901760
        %2504 = vmatmul.mubr.f32.gmra.mxu0 %v2503
        %v2505 = vpop.f32.mrf.mxu0
        %v2506 = vadd.f32 %v2216, %v2505
        %v2507 = vpop.f32.mrf.mxu0
        %2508 = vmatprep.mubr.f32.mxu0 0.0
        %v2509 = vand.u32 %v1030, 4294901760
        %2510 = vmatmul.mubr.f32.gmra.mxu0 %v2509
        %v2511 = vpop.f32.mrf.mxu0
        %v2512 = vadd.f32 %v2224, %v2511
        %v2513 = vpop.f32.mrf.mxu0
        %2514 = vmatprep.mubr.f32.mxu0 0.0
        %v2515 = vand.u32 %v1033, 4294901760
        %2516 = vmatmul.mubr.f32.gmra.mxu0 %v2515
        %v2517 = vpop.f32.mrf.mxu0
        %v2518 = vadd.f32 %v2232, %v2517
        %v2519 = vpop.f32.mrf.mxu0
        %2520 = vmatprep.mubr.f32.mxu0 0.0
        %v2521 = vand.u32 %v1036, 4294901760
        %2522 = vmatmul.mubr.f32.gmra.mxu0 %v2521
        %v2523 = vpop.f32.mrf.mxu0
        %v2524 = vadd.f32 %v2240, %v2523
        %v2525 = vpop.f32.mrf.mxu0
        %2526 = vmatprep.mubr.f32.mxu0 0.0
        %v2527 = vand.u32 %v1039, 4294901760
        %2528 = vmatmul.mubr.f32.gmra.mxu0 %v2527
        %v2529 = vpop.f32.mrf.mxu0
        %v2530 = vadd.f32 %v2248, %v2529
        %v2531 = vpop.f32.mrf.mxu0
        %2532 = vmatprep.mubr.f32.mxu0 0.0
        %v2533 = vand.u32 %v1042, 4294901760
        %2534 = vmatmul.mubr.f32.gmra.mxu0 %v2533
        %v2535 = vpop.f32.mrf.mxu0
        %v2536 = vadd.f32 %v2256, %v2535
        %v2537 = vpop.f32.mrf.mxu0
        %2538 = vmatprep.mubr.f32.mxu0 0.0
        %v2539 = vand.u32 %v1045, 4294901760
        %2540 = vmatmul.mubr.f32.gmra.mxu0 %v2539
        %v2541 = vpop.f32.mrf.mxu0
        %v2542 = vadd.f32 %v2264, %v2541
        %v2543 = vpop.f32.mrf.mxu0
        %2544 = vmatprep.mubr.f32.mxu0 0.0
        %v2545 = vand.u32 %v1048, 4294901760
        %2546 = vmatmul.mubr.f32.gmra.mxu0 %v2545
        %v2547 = vpop.f32.mrf.mxu0
        %v2548 = vadd.f32 %v2272, %v2547
        %v2549 = vpop.f32.mrf.mxu0
        %2550 = vmatprep.mubr.f32.mxu0 0.0
        %v2551 = vand.u32 %v1051, 4294901760
        %2552 = vmatmul.mubr.f32.gmra.mxu0 %v2551
        %v2553 = vpop.f32.mrf.mxu0
        %v2554 = vadd.f32 %v2280, %v2553
        %v2555 = vpop.f32.mrf.mxu0
        %2556 = vmatprep.mubr.f32.mxu0 0.0
        %v2557 = vand.u32 %v1054, 4294901760
        %2558 = vmatmul.mubr.f32.gmra.mxu0 %v2557
        %v2559 = vpop.f32.mrf.mxu0
        %v2560 = vadd.f32 %v2288, %v2559
        %v2561 = vpop.f32.mrf.mxu0
        %2562 = vmatprep.mubr.f32.mxu0 0.0
        %v2563 = vand.u32 %v1057, 4294901760
        %2564 = vmatmul.mubr.f32.gmra.mxu0 %v2563
        %v2565 = vpop.f32.mrf.mxu0
        %v2566 = vadd.f32 %v2296, %v2565
        %v2567 = vpop.f32.mrf.mxu0
        %2568 = vmatprep.mubr.f32.mxu0 0.0
        %v2569 = vand.u32 %v1060, 4294901760
        %2570 = vmatmul.mubr.f32.gmra.mxu0 %v2569
        %v2571 = vpop.f32.mrf.mxu0
        %v2572 = vadd.f32 %v2304, %v2571
        %v2573 = vpop.f32.mrf.mxu0
        %2574 = vmatprep.mubr.f32.mxu0 0.0
        %v2575 = vand.u32 %v1063, 4294901760
        %2576 = vmatmul.mubr.f32.gmra.mxu0 %v2575
        %v2577 = vpop.f32.mrf.mxu0
        %v2578 = vadd.f32 %v2312, %v2577
        %v2579 = vpop.f32.mrf.mxu0
        %2580 = vmatprep.mubr.f32.mxu0 0.0
        %v2581 = vand.u32 %v1066, 4294901760
        %2582 = vmatmul.mubr.f32.gmra.mxu0 %v2581
        %v2583 = vpop.f32.mrf.mxu0
        %v2584 = vadd.f32 %v2320, %v2583
        %v2585 = vpop.f32.mrf.mxu0
        %2586 = vmatprep.mubr.f32.mxu0 0.0
        %v2587 = vand.u32 %v1069, 4294901760
        %2588 = vmatmul.mubr.f32.gmra.mxu0 %v2587
        %v2589 = vpop.f32.mrf.mxu0
        %v2590 = vadd.f32 %v2328, %v2589
        %v2591 = vpop.f32.mrf.mxu0
        %2592 = vmatprep.mubr.f32.mxu0 0.0
        %v2593 = vand.u32 %v1072, 4294901760
        %2594 = vmatmul.mubr.f32.gmra.mxu0 %v2593
        %v2595 = vpop.f32.mrf.mxu0
        %v2596 = vadd.f32 %v2336, %v2595
        %v2597 = vpop.f32.mrf.mxu0
        %2598 = vdwg.mxu0
        %2599 = vmatprep.subr.mxu0 0.0
        %2600 = vmatpush1.msra.mxu0 0.0
        %2601 = vmatprep.subr.mxu0 0.0
        %2602 = vmatpush1.msra.mxu0 0.0
        %2603 = vmatprep.subr.mxu0 0.0
        %2604 = vmatpush1.msra.mxu0 0.0
        %2605 = vmatprep.subr.mxu0 0.0
        %2606 = vmatpush1.msra.mxu0 0.0
        %2607 = vmatprep.subr.mxu0 0.0
        %2608 = vmatpush1.msra.mxu0 0.0
        %2609 = vmatprep.subr.mxu0 0.0
        %2610 = vmatpush1.msra.mxu0 0.0
        %2611 = vmatprep.subr.mxu0 0.0
        %2612 = vmatpush1.msra.mxu0 0.0
        %2613 = vmatprep.subr.mxu0 0.0
        %2614 = vmatpush1.msra.mxu0 0.0
        %2615 = vmatprep.subr.mxu0 0.0
        %2616 = vmatpush1.msra.mxu0 0.0
        %2617 = vmatprep.subr.mxu0 0.0
        %2618 = vmatpush1.msra.mxu0 0.0
        %2619 = vmatprep.subr.mxu0 0.0
        %2620 = vmatpush1.msra.mxu0 0.0
        %2621 = vmatprep.subr.mxu0 0.0
        %2622 = vmatpush1.msra.mxu0 0.0
        %2623 = vmatprep.subr.mxu0 0.0
        %2624 = vmatpush1.msra.mxu0 0.0
        %2625 = vmatprep.subr.mxu0 0.0
        %2626 = vmatpush1.msra.mxu0 0.0
        %2627 = vmatprep.subr.mxu0 0.0
        %2628 = vmatpush1.msra.mxu0 0.0
        %2629 = vmatprep.subr.mxu0 0.0
        %v2630 = vand.u32 %v1076, 4294901760
        %2631 = vmatpush1.msra.mxu0 %v2630
        %2632 = vmatprep.subr.mxu0 0.0
        %2633 = vmatpush2.msra.mxu0 0.0
        %2634 = vmatprep.subr.mxu0 0.0
        %2635 = vmatpush2.msra.mxu0 0.0
        %2636 = vmatprep.subr.mxu0 0.0
        %2637 = vmatpush2.msra.mxu0 0.0
        %2638 = vmatprep.subr.mxu0 0.0
        %2639 = vmatpush2.msra.mxu0 0.0
        %2640 = vmatprep.subr.mxu0 0.0
        %2641 = vmatpush2.msra.mxu0 0.0
        %2642 = vmatprep.subr.mxu0 0.0
        %2643 = vmatpush2.msra.mxu0 0.0
        %2644 = vmatprep.subr.mxu0 0.0
        %2645 = vmatpush2.msra.mxu0 0.0
        %2646 = vmatprep.subr.mxu0 0.0
        %2647 = vmatpush2.msra.mxu0 0.0
        %2648 = vmatprep.subr.mxu0 0.0
        %2649 = vmatpush2.msra.mxu0 0.0
        %2650 = vmatprep.subr.mxu0 0.0
        %2651 = vmatpush2.msra.mxu0 0.0
        %2652 = vmatprep.subr.mxu0 0.0
        %2653 = vmatpush2.msra.mxu0 0.0
        %2654 = vmatprep.subr.mxu0 0.0
        %2655 = vmatpush2.msra.mxu0 0.0
        %2656 = vmatprep.subr.mxu0 0.0
        %2657 = vmatpush2.msra.mxu0 0.0
        %2658 = vmatprep.subr.mxu0 0.0
        %2659 = vmatpush2.msra.mxu0 0.0
        %2660 = vmatprep.subr.mxu0 0.0
        %2661 = vmatpush2.msra.mxu0 0.0
        %2662 = vmatprep.subr.mxu0 0.0
        %2663 = vmatpush2.msra.mxu0 0.0
        %2664 = vmatprep.mubr.f32.mxu0 0.0
        %v2665 = vand.u32 %v979, 4294901760
        %2666 = vmatmul.mubr.f32.gmra.mxu0 %v2665
        %v2667 = vpop.f32.mrf.mxu0
        %v2668 = vadd.f32 %v2410, %v2667
        %v2669 = vpop.f32.mrf.mxu0
        %2670 = vmatprep.mubr.f32.mxu0 0.0
        %v2671 = vand.u32 %v982, 4294901760
        %2672 = vmatmul.mubr.f32.gmra.mxu0 %v2671
        %v2673 = vpop.f32.mrf.mxu0
        %v2674 = vadd.f32 %v2416, %v2673
        %v2675 = vpop.f32.mrf.mxu0
        %2676 = vmatprep.mubr.f32.mxu0 0.0
        %v2677 = vand.u32 %v985, 4294901760
        %2678 = vmatmul.mubr.f32.gmra.mxu0 %v2677
        %v2679 = vpop.f32.mrf.mxu0
        %v2680 = vadd.f32 %v2422, %v2679
        %v2681 = vpop.f32.mrf.mxu0
        %2682 = vmatprep.mubr.f32.mxu0 0.0
        %v2683 = vand.u32 %v988, 4294901760
        %2684 = vmatmul.mubr.f32.gmra.mxu0 %v2683
        %v2685 = vpop.f32.mrf.mxu0
        %v2686 = vadd.f32 %v2428, %v2685
        %v2687 = vpop.f32.mrf.mxu0
        %2688 = vmatprep.mubr.f32.mxu0 0.0
        %v2689 = vand.u32 %v991, 4294901760
        %2690 = vmatmul.mubr.f32.gmra.mxu0 %v2689
        %v2691 = vpop.f32.mrf.mxu0
        %v2692 = vadd.f32 %v2434, %v2691
        %v2693 = vpop.f32.mrf.mxu0
        %2694 = vmatprep.mubr.f32.mxu0 0.0
        %v2695 = vand.u32 %v994, 4294901760
        %2696 = vmatmul.mubr.f32.gmra.mxu0 %v2695
        %v2697 = vpop.f32.mrf.mxu0
        %v2698 = vadd.f32 %v2440, %v2697
        %v2699 = vpop.f32.mrf.mxu0
        %2700 = vmatprep.mubr.f32.mxu0 0.0
        %v2701 = vand.u32 %v997, 4294901760
        %2702 = vmatmul.mubr.f32.gmra.mxu0 %v2701
        %v2703 = vpop.f32.mrf.mxu0
        %v2704 = vadd.f32 %v2446, %v2703
        %v2705 = vpop.f32.mrf.mxu0
        %2706 = vmatprep.mubr.f32.mxu0 0.0
        %v2707 = vand.u32 %v1000, 4294901760
        %2708 = vmatmul.mubr.f32.gmra.mxu0 %v2707
        %v2709 = vpop.f32.mrf.mxu0
        %v2710 = vadd.f32 %v2452, %v2709
        %v2711 = vpop.f32.mrf.mxu0
        %2712 = vmatprep.mubr.f32.mxu0 0.0
        %v2713 = vand.u32 %v1003, 4294901760
        %2714 = vmatmul.mubr.f32.gmra.mxu0 %v2713
        %v2715 = vpop.f32.mrf.mxu0
        %v2716 = vadd.f32 %v2458, %v2715
        %v2717 = vpop.f32.mrf.mxu0
        %2718 = vmatprep.mubr.f32.mxu0 0.0
        %v2719 = vand.u32 %v1006, 4294901760
        %2720 = vmatmul.mubr.f32.gmra.mxu0 %v2719
        %v2721 = vpop.f32.mrf.mxu0
        %v2722 = vadd.f32 %v2464, %v2721
        %v2723 = vpop.f32.mrf.mxu0
        %2724 = vmatprep.mubr.f32.mxu0 0.0
        %v2725 = vand.u32 %v1009, 4294901760
        %2726 = vmatmul.mubr.f32.gmra.mxu0 %v2725
        %v2727 = vpop.f32.mrf.mxu0
        %v2728 = vadd.f32 %v2470, %v2727
        %v2729 = vpop.f32.mrf.mxu0
        %2730 = vmatprep.mubr.f32.mxu0 0.0
        %v2731 = vand.u32 %v1012, 4294901760
        %2732 = vmatmul.mubr.f32.gmra.mxu0 %v2731
        %v2733 = vpop.f32.mrf.mxu0
        %v2734 = vadd.f32 %v2476, %v2733
        %v2735 = vpop.f32.mrf.mxu0
        %2736 = vmatprep.mubr.f32.mxu0 0.0
        %v2737 = vand.u32 %v1015, 4294901760
        %2738 = vmatmul.mubr.f32.gmra.mxu0 %v2737
        %v2739 = vpop.f32.mrf.mxu0
        %v2740 = vadd.f32 %v2482, %v2739
        %v2741 = vpop.f32.mrf.mxu0
        %2742 = vmatprep.mubr.f32.mxu0 0.0
        %v2743 = vand.u32 %v1018, 4294901760
        %2744 = vmatmul.mubr.f32.gmra.mxu0 %v2743
        %v2745 = vpop.f32.mrf.mxu0
        %v2746 = vadd.f32 %v2488, %v2745
        %v2747 = vpop.f32.mrf.mxu0
        %2748 = vmatprep.mubr.f32.mxu0 0.0
        %v2749 = vand.u32 %v1021, 4294901760
        %2750 = vmatmul.mubr.f32.gmra.mxu0 %v2749
        %v2751 = vpop.f32.mrf.mxu0
        %v2752 = vadd.f32 %v2494, %v2751
        %v2753 = vpop.f32.mrf.mxu0
        %2754 = vmatprep.mubr.f32.mxu0 0.0
        %v2755 = vand.u32 %v1024, 4294901760
        %2756 = vmatmul.mubr.f32.gmra.mxu0 %v2755
        %v2757 = vpop.f32.mrf.mxu0
        %v2758 = vadd.f32 %v2500, %v2757
        %v2759 = vpop.f32.mrf.mxu0
        %2760 = vmatprep.mubr.f32.mxu0 0.0
        %v2761 = vand.u32 %v1027, 4294901760
        %2762 = vmatmul.mubr.f32.gmra.mxu0 %v2761
        %v2763 = vpop.f32.mrf.mxu0
        %v2764 = vadd.f32 %v2506, %v2763
        %v2765 = vpop.f32.mrf.mxu0
        %2766 = vmatprep.mubr.f32.mxu0 0.0
        %v2767 = vand.u32 %v1030, 4294901760
        %2768 = vmatmul.mubr.f32.gmra.mxu0 %v2767
        %v2769 = vpop.f32.mrf.mxu0
        %v2770 = vadd.f32 %v2512, %v2769
        %v2771 = vpop.f32.mrf.mxu0
        %2772 = vmatprep.mubr.f32.mxu0 0.0
        %v2773 = vand.u32 %v1033, 4294901760
        %2774 = vmatmul.mubr.f32.gmra.mxu0 %v2773
        %v2775 = vpop.f32.mrf.mxu0
        %v2776 = vadd.f32 %v2518, %v2775
        %v2777 = vpop.f32.mrf.mxu0
        %2778 = vmatprep.mubr.f32.mxu0 0.0
        %v2779 = vand.u32 %v1036, 4294901760
        %2780 = vmatmul.mubr.f32.gmra.mxu0 %v2779
        %v2781 = vpop.f32.mrf.mxu0
        %v2782 = vadd.f32 %v2524, %v2781
        %v2783 = vpop.f32.mrf.mxu0
        %2784 = vmatprep.mubr.f32.mxu0 0.0
        %v2785 = vand.u32 %v1039, 4294901760
        %2786 = vmatmul.mubr.f32.gmra.mxu0 %v2785
        %v2787 = vpop.f32.mrf.mxu0
        %v2788 = vadd.f32 %v2530, %v2787
        %v2789 = vpop.f32.mrf.mxu0
        %2790 = vmatprep.mubr.f32.mxu0 0.0
        %v2791 = vand.u32 %v1042, 4294901760
        %2792 = vmatmul.mubr.f32.gmra.mxu0 %v2791
        %v2793 = vpop.f32.mrf.mxu0
        %v2794 = vadd.f32 %v2536, %v2793
        %v2795 = vpop.f32.mrf.mxu0
        %2796 = vmatprep.mubr.f32.mxu0 0.0
        %v2797 = vand.u32 %v1045, 4294901760
        %2798 = vmatmul.mubr.f32.gmra.mxu0 %v2797
        %v2799 = vpop.f32.mrf.mxu0
        %v2800 = vadd.f32 %v2542, %v2799
        %v2801 = vpop.f32.mrf.mxu0
        %2802 = vmatprep.mubr.f32.mxu0 0.0
        %v2803 = vand.u32 %v1048, 4294901760
        %2804 = vmatmul.mubr.f32.gmra.mxu0 %v2803
        %v2805 = vpop.f32.mrf.mxu0
        %v2806 = vadd.f32 %v2548, %v2805
        %v2807 = vpop.f32.mrf.mxu0
        %2808 = vmatprep.mubr.f32.mxu0 0.0
        %v2809 = vand.u32 %v1051, 4294901760
        %2810 = vmatmul.mubr.f32.gmra.mxu0 %v2809
        %v2811 = vpop.f32.mrf.mxu0
        %v2812 = vadd.f32 %v2554, %v2811
        %v2813 = vpop.f32.mrf.mxu0
        %2814 = vmatprep.mubr.f32.mxu0 0.0
        %v2815 = vand.u32 %v1054, 4294901760
        %2816 = vmatmul.mubr.f32.gmra.mxu0 %v2815
        %v2817 = vpop.f32.mrf.mxu0
        %v2818 = vadd.f32 %v2560, %v2817
        %v2819 = vpop.f32.mrf.mxu0
        %2820 = vmatprep.mubr.f32.mxu0 0.0
        %v2821 = vand.u32 %v1057, 4294901760
        %2822 = vmatmul.mubr.f32.gmra.mxu0 %v2821
        %v2823 = vpop.f32.mrf.mxu0
        %v2824 = vadd.f32 %v2566, %v2823
        %v2825 = vpop.f32.mrf.mxu0
        %2826 = vmatprep.mubr.f32.mxu0 0.0
        %v2827 = vand.u32 %v1060, 4294901760
        %2828 = vmatmul.mubr.f32.gmra.mxu0 %v2827
        %v2829 = vpop.f32.mrf.mxu0
        %v2830 = vadd.f32 %v2572, %v2829
        %v2831 = vpop.f32.mrf.mxu0
        %2832 = vmatprep.mubr.f32.mxu0 0.0
        %v2833 = vand.u32 %v1063, 4294901760
        %2834 = vmatmul.mubr.f32.gmra.mxu0 %v2833
        %v2835 = vpop.f32.mrf.mxu0
        %v2836 = vadd.f32 %v2578, %v2835
        %v2837 = vpop.f32.mrf.mxu0
        %2838 = vmatprep.mubr.f32.mxu0 0.0
        %v2839 = vand.u32 %v1066, 4294901760
        %2840 = vmatmul.mubr.f32.gmra.mxu0 %v2839
        %v2841 = vpop.f32.mrf.mxu0
        %v2842 = vadd.f32 %v2584, %v2841
        %v2843 = vpop.f32.mrf.mxu0
        %2844 = vmatprep.mubr.f32.mxu0 0.0
        %v2845 = vand.u32 %v1069, 4294901760
        %2846 = vmatmul.mubr.f32.gmra.mxu0 %v2845
        %v2847 = vpop.f32.mrf.mxu0
        %v2848 = vadd.f32 %v2590, %v2847
        %v2849 = vpop.f32.mrf.mxu0
        %2850 = vmatprep.mubr.f32.mxu0 0.0
        %v2851 = vand.u32 %v1072, 4294901760
        %2852 = vmatmul.mubr.f32.gmra.mxu0 %v2851
        %v2853 = vpop.f32.mrf.mxu0
        %v2854 = vadd.f32 %v2596, %v2853
        %v2855 = vpop.f32.mrf.mxu0
        %2856 = vdwg.mxu0
        %v2857 = vmax.f32 %v2668, %v2692
        %v2858 = vmax.f32 %v2674, %v2698
        %v2859 = vmax.f32 %v2680, %v2704
        %v2860 = vmax.f32 %v2686, %v2710
        %v2861 = vmax.f32 %v2857, %v2716
        %v2862 = vmax.f32 %v2858, %v2722
        %v2863 = vmax.f32 %v2859, %v2728
        %v2864 = vmax.f32 %v2860, %v2734
        %v2865 = vmax.f32 %v2861, %v2740
        %v2866 = vmax.f32 %v2862, %v2746
        %v2867 = vmax.f32 %v2863, %v2752
        %v2868 = vmax.f32 %v2864, %v2758
        %v2869 = vmax.f32 %v2865, %v2764
        %v2870 = vmax.f32 %v2866, %v2770
        %v2871 = vmax.f32 %v2867, %v2776
        %v2872 = vmax.f32 %v2868, %v2782
        %v2873 = vmax.f32 %v2869, %v2788
        %v2874 = vmax.f32 %v2870, %v2794
        %v2875 = vmax.f32 %v2871, %v2800
        %v2876 = vmax.f32 %v2872, %v2806
        %v2877 = vmax.f32 %v2873, %v2812
        %v2878 = vmax.f32 %v2874, %v2818
        %v2879 = vmax.f32 %v2875, %v2824
        %v2880 = vmax.f32 %v2876, %v2830
        %v2881 = vmax.f32 %v2877, %v2836
        %v2882 = vmax.f32 %v2878, %v2842
        %v2883 = vmax.f32 %v2879, %v2848
        %v2884 = vmax.f32 %v2880, %v2854
        %v2885 = vmax.f32 %v2881, %v2882
        %v2886 = vmax.f32 %v2883, %v2884
        %v2887 = vmax.f32 %v2885, %v2886
        %v2888 = vrot.slane %v2887, 4
        %v2889 = vmax.f32 %v2887, %v2888
        %v2890 = vrot.slane %v2889, 2
        %v2891 = vmax.f32 %v2889, %v2890
        %v2892 = vrot.slane %v2891, 1
        %v2893 = vmax.f32 %v2891, %v2892
        %v2894 = vsub.f32 1.0, %v2893
        %v2895 = vadd.f32 %v2894, 1e-05
        %v2896 = vrcp.pop %v2895
        %v2897 = vmul.f32 1.0, %v2896
        %v2898 = vsub.f32 1.0, %v2897
        %v2899 = vmul.f32 %v2897, %v2668
        %v2900 = vmul.f32 %v2897, %v2674
        %v2901 = vmul.f32 %v2897, %v2680
        %v2902 = vmul.f32 %v2897, %v2686
        %v2903 = vmul.f32 %v2897, %v2692
        %v2904 = vmul.f32 %v2897, %v2698
        %v2905 = vmul.f32 %v2897, %v2704
        %v2906 = vmul.f32 %v2897, %v2710
        %v2907 = vmul.f32 %v2897, %v2716
        %v2908 = vmul.f32 %v2897, %v2722
        %v2909 = vmul.f32 %v2897, %v2728
        %v2910 = vmul.f32 %v2897, %v2734
        %v2911 = vmul.f32 %v2897, %v2740
        %v2912 = vmul.f32 %v2897, %v2746
        %v2913 = vmul.f32 %v2897, %v2752
        %v2914 = vmul.f32 %v2897, %v2758
        %v2915 = vmul.f32 %v2897, %v2764
        %v2916 = vmul.f32 %v2897, %v2770
        %v2917 = vmul.f32 %v2897, %v2776
        %v2918 = vmul.f32 %v2897, %v2782
        %v2919 = vmul.f32 %v2897, %v2788
        %v2920 = vmul.f32 %v2897, %v2794
        %v2921 = vmul.f32 %v2897, %v2800
        %v2922 = vmul.f32 %v2897, %v2806
        %v2923 = vmul.f32 %v2897, %v2812
        %v2924 = vmul.f32 %v2897, %v2818
        %v2925 = vmul.f32 %v2897, %v2824
        %v2926 = vmul.f32 %v2897, %v2830
        %v2927 = vmul.f32 %v2897, %v2836
        %v2928 = vmul.f32 %v2897, %v2842
        %v2929 = vmul.f32 %v2897, %v2848
        %v2930 = vmul.f32 %v2897, %v2854
        %v2931 = vadd.f32 %v2898, %v2899
        %v2932 = vadd.f32 %v2898, %v2900
        %v2933 = vadd.f32 %v2898, %v2901
        %v2934 = vadd.f32 %v2898, %v2902
        %v2935 = vadd.f32 %v2898, %v2903
        %v2936 = vadd.f32 %v2898, %v2904
        %v2937 = vadd.f32 %v2898, %v2905
        %v2938 = vadd.f32 %v2898, %v2906
        %v2939 = vadd.f32 %v2898, %v2907
        %v2940 = vadd.f32 %v2898, %v2908
        %v2941 = vadd.f32 %v2898, %v2909
        %v2942 = vadd.f32 %v2898, %v2910
        %v2943 = vadd.f32 %v2898, %v2911
        %v2944 = vadd.f32 %v2898, %v2912
        %v2945 = vadd.f32 %v2898, %v2913
        %v2946 = vadd.f32 %v2898, %v2914
        %v2947 = vadd.f32 %v2898, %v2915
        %v2948 = vadd.f32 %v2898, %v2916
        %v2949 = vadd.f32 %v2898, %v2917
        %v2950 = vadd.f32 %v2898, %v2918
        %v2951 = vadd.f32 %v2898, %v2919
        %v2952 = vadd.f32 %v2898, %v2920
        %v2953 = vadd.f32 %v2898, %v2921
        %v2954 = vadd.f32 %v2898, %v2922
        %v2955 = vadd.f32 %v2898, %v2923
        %v2956 = vadd.f32 %v2898, %v2924
        %v2957 = vadd.f32 %v2898, %v2925
        %v2958 = vadd.f32 %v2898, %v2926
        %v2959 = vadd.f32 %v2898, %v2927
        %v2960 = vadd.f32 %v2898, %v2928
        %v2961 = vadd.f32 %v2898, %v2929
        %v2962 = vadd.f32 %v2898, %v2930
        %v2963 = vmul.f32 %v2931, 1.442695
        %v2964 = vpow.pop %v2963
        %v2965 = vmul.f32 %v2932, 1.442695
        %v2966 = vpow.pop %v2965
        %v2967 = vmul.f32 %v2933, 1.442695
        %v2968 = vpow.pop %v2967
        %v2969 = vmul.f32 %v2934, 1.442695
        %v2970 = vpow.pop %v2969
        %v2971 = vmul.f32 %v2935, 1.442695
        %v2972 = vpow.pop %v2971
        %v2973 = vmul.f32 %v2936, 1.442695
        %v2974 = vpow.pop %v2973
        %v2975 = vmul.f32 %v2937, 1.442695
        %v2976 = vpow.pop %v2975
        %v2977 = vmul.f32 %v2938, 1.442695
        %v2978 = vpow.pop %v2977
        %v2979 = vmul.f32 %v2939, 1.442695
        %v2980 = vpow.pop %v2979
        %v2981 = vmul.f32 %v2940, 1.442695
        %v2982 = vpow.pop %v2981
        %v2983 = vmul.f32 %v2941, 1.442695
        %v2984 = vpow.pop %v2983
        %v2985 = vmul.f32 %v2942, 1.442695
        %v2986 = vpow.pop %v2985
        %v2987 = vmul.f32 %v2943, 1.442695
        %v2988 = vpow.pop %v2987
        %v2989 = vmul.f32 %v2944, 1.442695
        %v2990 = vpow.pop %v2989
        %v2991 = vmul.f32 %v2945, 1.442695
        %v2992 = vpow.pop %v2991
        %v2993 = vmul.f32 %v2946, 1.442695
        %v2994 = vpow.pop %v2993
        %v2995 = vmul.f32 %v2947, 1.442695
        %v2996 = vpow.pop %v2995
        %v2997 = vmul.f32 %v2948, 1.442695
        %v2998 = vpow.pop %v2997
        %v2999 = vmul.f32 %v2949, 1.442695
        %v3000 = vpow.pop %v2999
        %v3001 = vmul.f32 %v2950, 1.442695
        %v3002 = vpow.pop %v3001
        %v3003 = vmul.f32 %v2951, 1.442695
        %v3004 = vpow.pop %v3003
        %v3005 = vmul.f32 %v2952, 1.442695
        %v3006 = vpow.pop %v3005
        %v3007 = vmul.f32 %v2953, 1.442695
        %v3008 = vpow.pop %v3007
        %v3009 = vmul.f32 %v2954, 1.442695
        %v3010 = vpow.pop %v3009
        %v3011 = vmul.f32 %v2955, 1.442695
        %v3012 = vpow.pop %v3011
        %v3013 = vmul.f32 %v2956, 1.442695
        %v3014 = vpow.pop %v3013
        %v3015 = vmul.f32 %v2957, 1.442695
        %v3016 = vpow.pop %v3015
        %v3017 = vmul.f32 %v2958, 1.442695
        %v3018 = vpow.pop %v3017
        %v3019 = vmul.f32 %v2959, 1.442695
        %v3020 = vpow.pop %v3019
        %v3021 = vmul.f32 %v2960, 1.442695
        %v3022 = vpow.pop %v3021
        %v3023 = vmul.f32 %v2961, 1.442695
        %v3024 = vpow.pop %v3023
        %v3025 = vmul.f32 %v2962, 1.442695
        %v3026 = vpow.pop %v3025
        %v3027 = vadd.f32 %v2964, %v2966
        %v3028 = vadd.f32 %v3027, %v2968
        %v3029 = vadd.f32 %v3028, %v2970
        %v3030 = vadd.f32 %v3029, %v2972
        %v3031 = vadd.f32 %v3030, %v2974
        %v3032 = vadd.f32 %v3031, %v2976
        %v3033 = vadd.f32 %v3032, %v2978
        %v3034 = vadd.f32 %v3033, %v2980
        %v3035 = vadd.f32 %v3034, %v2982
        %v3036 = vadd.f32 %v3035, %v2984
        %v3037 = vadd.f32 %v3036, %v2986
        %v3038 = vadd.f32 %v3037, %v2988
        %v3039 = vadd.f32 %v3038, %v2990
        %v3040 = vadd.f32 %v3039, %v2992
        %v3041 = vadd.f32 %v3040, %v2994
        %v3042 = vadd.f32 %v3041, %v2996
        %v3043 = vadd.f32 %v3042, %v2998
        %v3044 = vadd.f32 %v3043, %v3000
        %v3045 = vadd.f32 %v3044, %v3002
        %v3046 = vadd.f32 %v3045, %v3004
        %v3047 = vadd.f32 %v3046, %v3006
        %v3048 = vadd.f32 %v3047, %v3008
        %v3049 = vadd.f32 %v3048, %v3010
        %v3050 = vadd.f32 %v3049, %v3012
        %v3051 = vadd.f32 %v3050, %v3014
        %v3052 = vadd.f32 %v3051, %v3016
        %v3053 = vadd.f32 %v3052, %v3018
        %v3054 = vadd.f32 %v3053, %v3020
        %v3055 = vadd.f32 %v3054, %v3022
        %v3056 = vadd.f32 %v3055, %v3024
        %v3057 = vadd.f32 %v3056, %v3026
        %v3058 = vrot.slane %v3057, 4
        %v3059 = vadd.f32 %v3057, %v3058
        %v3060 = vrot.slane %v3059, 2
        %v3061 = vadd.f32 %v3059, %v3060
        %v3062 = vrot.slane %v3061, 1
        %v3063 = vadd.f32 %v3061, %v3062
        %v3064 = vrcp.pop %v3063
        %v3065 = vmul.f32 %v3064, 0.5
        %v3066 = vmul.f32 %v2964, %v3065
        %v3067 = vmul.f32 %v2966, %v3065
        %v3068 = vmul.f32 %v2968, %v3065
        %v3069 = vmul.f32 %v2970, %v3065
        %v3070 = vmul.f32 %v2972, %v3065
        %v3071 = vmul.f32 %v2974, %v3065
        %v3072 = vmul.f32 %v2976, %v3065
        %v3073 = vmul.f32 %v2978, %v3065
        %v3074 = vmul.f32 %v2980, %v3065
        %v3075 = vmul.f32 %v2982, %v3065
        %v3076 = vmul.f32 %v2984, %v3065
        %v3077 = vmul.f32 %v2986, %v3065
        %v3078 = vmul.f32 %v2988, %v3065
        %v3079 = vmul.f32 %v2990, %v3065
        %v3080 = vmul.f32 %v2992, %v3065
        %v3081 = vmul.f32 %v2994, %v3065
        %v3082 = vmul.f32 %v2996, %v3065
        %v3083 = vmul.f32 %v2998, %v3065
        %v3084 = vmul.f32 %v3000, %v3065
        %v3085 = vmul.f32 %v3002, %v3065
        %v3086 = vmul.f32 %v3004, %v3065
        %v3087 = vmul.f32 %v3006, %v3065
        %v3088 = vmul.f32 %v3008, %v3065
        %v3089 = vmul.f32 %v3010, %v3065
        %v3090 = vmul.f32 %v3012, %v3065
        %v3091 = vmul.f32 %v3014, %v3065
        %v3092 = vmul.f32 %v3016, %v3065
        %v3093 = vmul.f32 %v3018, %v3065
        %v3094 = vmul.f32 %v3020, %v3065
        %v3095 = vmul.f32 %v3022, %v3065
        %v3096 = vmul.f32 %v3024, %v3065
        %v3097 = vmul.f32 %v3026, %v3065
        %v3098 = vld [vmem:[#allocation2] sm:$0xff]
        %v3099 = vld [vmem:[#allocation2 + $0x8] sm:$0xff]
        %v3100 = vld [vmem:[#allocation2 + $0x10] sm:$0xff]
        %v3101 = vld [vmem:[#allocation2 + $0x18] sm:$0xff]
        %v3102 = vld [vmem:[#allocation2 + $0x20] sm:$0xff]
        %v3103 = vld [vmem:[#allocation2 + $0x28] sm:$0xff]
        %v3104 = vld [vmem:[#allocation2 + $0x30] sm:$0xff]
        %v3105 = vld [vmem:[#allocation2 + $0x38] sm:$0xff]
        %v3106 = vld [vmem:[#allocation2 + $0x40] sm:$0xff]
        %v3107 = vld [vmem:[#allocation2 + $0x48] sm:$0xff]
        %v3108 = vld [vmem:[#allocation2 + $0x50] sm:$0xff]
        %v3109 = vld [vmem:[#allocation2 + $0x58] sm:$0xff]
        %v3110 = vld [vmem:[#allocation2 + $0x60] sm:$0xff]
        %v3111 = vld [vmem:[#allocation2 + $0x68] sm:$0xff]
        %v3112 = vld [vmem:[#allocation2 + $0x70] sm:$0xff]
        %v3113 = vld [vmem:[#allocation2 + $0x78] sm:$0xff]
        %v3114 = vld [vmem:[#allocation2 + $0x80] sm:$0xff]
        %v3115 = vld [vmem:[#allocation2 + $0x88] sm:$0xff]
        %v3116 = vld [vmem:[#allocation2 + $0x90] sm:$0xff]
        %v3117 = vld [vmem:[#allocation2 + $0x98] sm:$0xff]
        %v3118 = vld [vmem:[#allocation2 + $0xa0] sm:$0xff]
        %v3119 = vld [vmem:[#allocation2 + $0xa8] sm:$0xff]
        %v3120 = vld [vmem:[#allocation2 + $0xb0] sm:$0xff]
        %v3121 = vld [vmem:[#allocation2 + $0xb8] sm:$0xff]
        %v3122 = vld [vmem:[#allocation2 + $0xc0] sm:$0xff]
        %v3123 = vld [vmem:[#allocation2 + $0xc8] sm:$0xff]
        %v3124 = vld [vmem:[#allocation2 + $0xd0] sm:$0xff]
        %v3125 = vld [vmem:[#allocation2 + $0xd8] sm:$0xff]
        %v3126 = vld [vmem:[#allocation2 + $0xe0] sm:$0xff]
        %v3127 = vld [vmem:[#allocation2 + $0xe8] sm:$0xff]
        %v3128 = vld [vmem:[#allocation2 + $0xf0] sm:$0xff]
        %v3129 = vld [vmem:[#allocation2 + $0xf8] sm:$0xff]
        %v3130 = vadd.f32 %v3066, %v3098
        %v3131 = vadd.f32 %v3067, %v3099
        %v3132 = vadd.f32 %v3068, %v3100
        %v3133 = vadd.f32 %v3069, %v3101
        %v3134 = vadd.f32 %v3070, %v3102
        %v3135 = vadd.f32 %v3071, %v3103
        %v3136 = vadd.f32 %v3072, %v3104
        %v3137 = vadd.f32 %v3073, %v3105
        %v3138 = vadd.f32 %v3074, %v3106
        %v3139 = vadd.f32 %v3075, %v3107
        %v3140 = vadd.f32 %v3076, %v3108
        %v3141 = vadd.f32 %v3077, %v3109
        %v3142 = vadd.f32 %v3078, %v3110
        %v3143 = vadd.f32 %v3079, %v3111
        %v3144 = vadd.f32 %v3080, %v3112
        %v3145 = vadd.f32 %v3081, %v3113
        %v3146 = vadd.f32 %v3082, %v3114
        %v3147 = vadd.f32 %v3083, %v3115
        %v3148 = vadd.f32 %v3084, %v3116
        %v3149 = vadd.f32 %v3085, %v3117
        %v3150 = vadd.f32 %v3086, %v3118
        %v3151 = vadd.f32 %v3087, %v3119
        %v3152 = vadd.f32 %v3088, %v3120
        %v3153 = vadd.f32 %v3089, %v3121
        %v3154 = vadd.f32 %v3090, %v3122
        %v3155 = vadd.f32 %v3091, %v3123
        %v3156 = vadd.f32 %v3092, %v3124
        %v3157 = vadd.f32 %v3093, %v3125
        %v3158 = vadd.f32 %v3094, %v3126
        %v3159 = vadd.f32 %v3095, %v3127
        %v3160 = vadd.f32 %v3096, %v3128
        %v3161 = vadd.f32 %v3097, %v3129
        %v3162 = vmax.f32 %v3130, %v3134
        %v3163 = vmax.f32 %v3131, %v3135
        %v3164 = vmax.f32 %v3132, %v3136
        %v3165 = vmax.f32 %v3133, %v3137
        %v3166 = vmax.f32 %v3162, %v3138
        %v3167 = vmax.f32 %v3163, %v3139
        %v3168 = vmax.f32 %v3164, %v3140
        %v3169 = vmax.f32 %v3165, %v3141
        %v3170 = vmax.f32 %v3166, %v3142
        %v3171 = vmax.f32 %v3167, %v3143
        %v3172 = vmax.f32 %v3168, %v3144
        %v3173 = vmax.f32 %v3169, %v3145
        %v3174 = vmax.f32 %v3170, %v3146
        %v3175 = vmax.f32 %v3171, %v3147
        %v3176 = vmax.f32 %v3172, %v3148
        %v3177 = vmax.f32 %v3173, %v3149
        %v3178 = vmax.f32 %v3174, %v3150
        %v3179 = vmax.f32 %v3175, %v3151
        %v3180 = vmax.f32 %v3176, %v3152
        %v3181 = vmax.f32 %v3177, %v3153
        %v3182 = vmax.f32 %v3178, %v3154
        %v3183 = vmax.f32 %v3179, %v3155
        %v3184 = vmax.f32 %v3180, %v3156
        %v3185 = vmax.f32 %v3181, %v3157
        %v3186 = vmax.f32 %v3182, %v3158
        %v3187 = vmax.f32 %v3183, %v3159
        %v3188 = vmax.f32 %v3184, %v3160
        %v3189 = vmax.f32 %v3185, %v3161
        %v3190 = vmax.f32 %v3186, %v3187
        %v3191 = vmax.f32 %v3188, %v3189
        %v3192 = vmax.f32 %v3190, %v3191
        %v3193 = vrot.slane %v3192, 4
        %v3194 = vmax.f32 %v3192, %v3193
        %v3195 = vrot.slane %v3194, 2
        %v3196 = vmax.f32 %v3194, %v3195
        %v3197 = vrot.slane %v3196, 1
        %v3198 = vmax.f32 %v3196, %v3197
        %s3199 = scalar_lea.vmem %s212, %s27 [#allocation8]
        %3200 = vst [vmem:[%s3199] sm:$0x1] %v3198
        %s3201 = sand.u32 %s96, 1
        %s3202 = scalar_lea.sflag [#allocation5], %s3201
        %s3203 = sand.u32 %s96, 1
        %s3204 = smul.addr %s3203, 2
        %s3205 = scalar_lea.vmem [#allocation8], %s3204
        // Predicated region
        $region41: #{tpu_custom_call.1} parent=27 // pred_check
          %p3206 = pneg %p106
        $region42: #{tpu_custom_call.1} parent=27 // pred_check_branch
          %3208 = sbr.rel (%p3206) target = $region44
        $region43: #{tpu_custom_call.1} parent=27 // pred_region
          %s3210 = ssub.s32 32, 32
          %3211 = vsyncadd %s3202, %s3210
          %s3212 = smul.addr %s26, 32
          %s3213 = scalar_lea.hbm %s2, %s3212
          %s3215 = sshll.u32 %s3205, 4
          %s3216 = int_to_ptr.vmem [resolvable:$true] %s3215
          %3218 = dma.vmem_to_hbm [thread:$0]  %s3216, 32, %s3213, %s3202
        $region44: #{tpu_custom_call.1} parent=27 // pred_fallthru
          _
      $region28: #{tpu_custom_call.1} parent=5 // pred_fallthru
        _
      %p3219 = scmp.le.s32.totalorder 2, %s17
      // Predicated region
      $region45: #{tpu_custom_call.1} parent=5 // pred_check
        %p3220 = pneg %p3219
      $region46: #{tpu_custom_call.1} parent=5 // pred_check_branch
        %3222 = sbr.rel (%p3220) target = $region48
      $region47: #{tpu_custom_call.1} parent=5 // pred_region
        %s3223 = ssub.s32 %s17, 2
        // Predicated region
        $region49: #{tpu_custom_call.1} parent=47 // pred_check
          %p3224 = pneg %p112
        $region50: #{tpu_custom_call.1} parent=47 // pred_check_branch
          %3226 = sbr.rel (%p3224) target = $region52
        $region51: #{tpu_custom_call.1} parent=47 // pred_region
          %s3227 = sand.u32 %s97, 1
          %s3228 = scalar_lea.sflag [#allocation5], %s3227
          %s3229 = sand.u32 %s97, 1
          %s3230 = smul.addr %s3229, 2
          %s3231 = scalar_lea.vmem [#allocation8], %s3230
          %3232 = dma.done %s3228, 32
        $region52: #{tpu_custom_call.1} parent=47 // pred_fallthru
          _
      $region48: #{tpu_custom_call.1} parent=5 // pred_fallthru
        _
    $region6: #{tpu_custom_call.1} parent=1 // loop_footer
      %s21 = sadd.s32 1, %s17
    $region7: #{tpu_custom_call.1} parent=1 // loop_footer_branch
      %16 = sbr.rel target = $region3
    $region8: #{tpu_custom_call.1} parent=1 // loop_exit
      _
    %3233 = vsyncpa [#allocation4], 1
    %s3234 = scalar_lea.sflag [#allocation4], 1
    %3235 = vsyncpa %s3234, 1
    %3236 = vsyncpa [#allocation7], 1
    %s3237 = scalar_lea.sflag [#allocation7], 1
    %3238 = vsyncpa %s3237, 1
    %3239 = vsyncpa [#allocation5], 1
    %s3240 = scalar_lea.sflag [#allocation5], 1
    %3241 = vsyncpa %s3240, 1

</llo_original>
